<compile_context>
chip_gen: v7x
topology: tpu7x:2x2x1
jax: 0.10.0
libtpu: 0.0.40
codegen_flags: <defaults>
</compile_context>

<pallas_src>
import functools

import jax
import jax.numpy as jnp
import numpy as np
from jax import lax
from jax.experimental import pallas as pl
from jax.experimental.pallas import tpu as pltpu

LANE = 128


def _round_up(x, m):
    return (x + m - 1) // m * m


def _pick_rows_per_block(H):
    """Largest divisor of H that is <= 16 (row-block size for conv2/conv3)."""
    for r in range(min(H, 16), 0, -1):
        if H % r == 0:
            return r
    return 1


# ----------------------------------------------------------------------------
# Fused Pallas kernel (one batch element per grid step)
# ----------------------------------------------------------------------------

def _bottleneck_kernel(x_ref, w1_ref, w2_ref, w3_ref,
                       b1_ref, b2_ref, b3_ref,
                       o_ref, out1_ref, *, rows_per_block):
    # x_ref:    (1, H, W, Cin_p)          bf16  NHWC, channels zero-padded
    # w1_ref:   (Cin_p, Cmid_p)           bf16  BN1 scale folded in
    # w2_ref:   (9*Cmid_p, Cmid_p)        bf16  taps stacked along K (dy*3+dx),
    #                                           BN2 scale folded in
    # w3_ref:   (Cmid_p, Cout_p)          bf16  BN3 scale folded in
    # b1/b2/b3: (1, C*_p)                 f32   folded BatchNorm biases
    # o_ref:    (1, H, W, Cout_p)         bf16
    # out1_ref: (H+2, Wp, Cmid_p)         bf16  VMEM scratch, Wp = roundup(W+2, 8)
    H, W = o_ref.shape[1], o_ref.shape[2]
    Cin_p = x_ref.shape[3]
    Cmid_p = w1_ref.shape[1]
    Cout_p = o_ref.shape[3]
    Wp = out1_ref.shape[1]
    R = rows_per_block

    # Hoist the (1, C) bias loads out of the loops.
    b1 = b1_ref[...]
    b2 = b2_ref[...]
    b3 = b3_ref[...]

    # ---- zero ONLY the 1-pixel halo ring (interior is fully overwritten) ----
    # Done every grid step (each TensorCore has its own scratch instance under
    # "parallel" semantics); the ring is O(H + W) rows/cols, i.e. cheap.
    zrow = jnp.zeros((1, Wp, Cmid_p), out1_ref.dtype)
    out1_ref[pl.ds(0, 1), :, :] = zrow            # top halo row
    out1_ref[pl.ds(H + 1, 1), :, :] = zrow        # bottom halo row
    zcol = jnp.zeros((H, 1, Cmid_p), out1_ref.dtype)
    out1_ref[pl.ds(1, H), pl.ds(0, 1), :] = zcol          # left halo column
    out1_ref[pl.ds(1, H), pl.ds(W + 1, 1), :] = zcol      # right halo column
    # (columns W+2 .. Wp-1 are alignment padding: never read, left untouched)

    # ---- conv1 (1x1) + bn1 + relu : one whole-image matmul ------------------
    x_flat = x_ref[...].reshape(H * W, Cin_p)
    y1 = jnp.dot(x_flat, w1_ref[...], preferred_element_type=jnp.float32)
    y1 = jnp.maximum(y1 + b1, 0.0).astype(out1_ref.dtype)
    out1_ref[pl.ds(1, H), pl.ds(1, W), :] = y1.reshape(H, W, Cmid_p)

    # ---- conv2 (3x3, pad=1) + bn2 + relu, conv3 (1x1) + bn3 + add + relu ----
    # Row blocks of R rows -> M = R*W; 9 taps stacked along K -> one matmul
    # with K = 9*Cmid_p per block.
    nblk = H // R

    def block_body(blk, carry):
        h0 = pl.multiple_of(blk * R, R)

        taps = []
        for dy in range(3):
            for dx in range(3):
                # output(h, w) needs conv1(h+dy-1, w+dx-1) == scratch(h+dy, w+dx)
                taps.append(out1_ref[pl.ds(h0 + dy, R), pl.ds(dx, W), :])
        stacked = jnp.concatenate(taps, axis=-1).reshape(R * W, 9 * Cmid_p)

        y2 = jnp.dot(stacked, w2_ref[...], preferred_element_type=jnp.float32)
        y2 = jnp.maximum(y2 + b2, 0.0).astype(jnp.bfloat16)

        y3 = jnp.dot(y2, w3_ref[...], preferred_element_type=jnp.float32)
        identity = x_ref[pl.ds(0, 1), pl.ds(h0, R), :, :].reshape(
            R * W, Cin_p).astype(jnp.float32)          # Cin_p == Cout_p
        out = jnp.maximum(y3 + b3 + identity, 0.0).astype(o_ref.dtype)
        o_ref[pl.ds(0, 1), pl.ds(h0, R), :, :] = out.reshape(1, R, W, Cout_p)
        return carry

    lax.fori_loop(0, nblk, block_body, 0, unroll=(nblk <= 4))


# ----------------------------------------------------------------------------
# Wrappers
# ----------------------------------------------------------------------------

def bottleneck_fused_nhwc(x_nhwc, params):
    """Fused bottleneck on NHWC input. Returns (N, H, W, Cout_p) bf16 (lane-padded)."""
    N, H, W, Cin = x_nhwc.shape
    w1, w2, w3 = params["w1"], params["w2"], params["w3"]
    Cin_p, Cmid_p = w1.shape
    Cout_p = w3.shape[1]
    if Cin_p != Cout_p:
        raise ValueError("identity add requires in_channel == out_channel * expansion "
                         "(stride=1, downsample=None)")

    Wp = _round_up(W + 2, 8)          # sublane-aligned scratch row stride
    R = _pick_rows_per_block(H)

    x_p = x_nhwc
    if Cin_p != Cin:
        x_p = jnp.pad(x_nhwc, ((0, 0), (0, 0), (0, 0), (0, Cin_p - Cin)))
    x_p = x_p.astype(jnp.bfloat16)

    kernel = functools.partial(_bottleneck_kernel, rows_per_block=R)

    return pl.pallas_call(
        kernel,
        out_shape=jax.ShapeDtypeStruct((N, H, W, Cout_p), jnp.bfloat16),
        grid_spec=pltpu.PrefetchScalarGridSpec(
            num_scalar_prefetch=0,
            grid=(N,),
            in_specs=[
                pl.BlockSpec((1, H, W, Cin_p), lambda n: (n, 0, 0, 0)),     # x
                pl.BlockSpec((Cin_p, Cmid_p), lambda n: (0, 0)),            # w1
                pl.BlockSpec((9 * Cmid_p, Cmid_p), lambda n: (0, 0)),       # w2 (K-stacked)
                pl.BlockSpec((Cmid_p, Cout_p), lambda n: (0, 0)),           # w3
                pl.BlockSpec((1, Cmid_p), lambda n: (0, 0)),                # b1
                pl.BlockSpec((1, Cmid_p), lambda n: (0, 0)),                # b2
                pl.BlockSpec((1, Cout_p), lambda n: (0, 0)),                # b3
            ],
            out_specs=pl.BlockSpec((1, H, W, Cout_p), lambda n: (n, 0, 0, 0)),
            scratch_shapes=[pltpu.VMEM((H + 2, Wp, Cmid_p), jnp.bfloat16)],
        ),
        compiler_params=pltpu.CompilerParams(
            dimension_semantics=("parallel",),
            vmem_limit_bytes=64 * 1024 * 1024,
        ),
    )(x_p, w1, w2, w3, params["b1"], params["b2"], params["b3"])


def bottleneck_forward(x_nchw, params):
    """PyTorch-compatible NCHW interface (layout conversion only at the edges).

    Note: prefer bottleneck_fused_nhwc when the surrounding network stays NHWC
    lane-padded; the transposes/slice here are model-boundary plumbing only.
    """
    C = x_nchw.shape[1]
    x_nhwc = jnp.transpose(x_nchw, (0, 2, 3, 1))
    out = bottleneck_fused_nhwc(x_nhwc, params)
    out = out[..., :C].astype(jnp.float32)     # drop lane-padding channels
    return jnp.transpose(out, (0, 3, 1, 2))


def pack_params(w1_pt, w2_pt, w3_pt, bn1, bn2, bn3, eps=1e-5):
    """Repack PyTorch OIHW weights + BN stats into lane-padded bf16 kernel params.

    BN scales are folded into the weight output columns; only f32 biases remain
    to be added in-kernel.
    """
    Cmid, Cin = w1_pt.shape[0], w1_pt.shape[1]
    Cout = w3_pt.shape[0]
    assert Cout == Cin, "stride=1 / downsample=None bottleneck requires Cin == Cout*expansion"
    Cin_p = _round_up(Cin, LANE)
    Cmid_p = _round_up(Cmid, LANE)
    Cout_p = _round_up(Cout, LANE)

    def fold(gamma, beta, mean, var):
        s = gamma / jnp.sqrt(var + eps)
        b = beta - mean * s
        return s.astype(jnp.float32), b.astype(jnp.float32)

    s1, b1 = fold(*bn1)
    s2, b2 = fold(*bn2)
    s3, b3 = fold(*bn3)

    # conv1: (O,I,1,1) -> (I,O); fold BN1 scale into output columns.
    w1 = jnp.transpose(w1_pt[:, :, 0, 0], (1, 0)) * s1.reshape(1, Cmid)
    w1 = jnp.pad(w1, ((0, Cin_p - Cin), (0, Cmid_p - Cmid))).astype(jnp.bfloat16)

    # conv2: (O,I,3,3) -> (ky,kx,I,O) -> (9,I,O); fold BN2 scale; pad per tap;
    # flatten taps along the contraction dim -> (9*Cmid_p, Cmid_p).
    w2 = jnp.transpose(w2_pt, (2, 3, 1, 0)).reshape(9, Cmid, Cmid) * s2.reshape(1, 1, Cmid)
    w2 = jnp.pad(w2, ((0, 0), (0, Cmid_p - Cmid), (0, Cmid_p - Cmid)))
    w2 = w2.reshape(9 * Cmid_p, Cmid_p).astype(jnp.bfloat16)

    # conv3: (O,I,1,1) -> (I,O); fold BN3 scale.
    w3 = jnp.transpose(w3_pt[:, :, 0, 0], (1, 0)) * s3.reshape(1, Cout)
    w3 = jnp.pad(w3, ((0, Cmid_p - Cmid), (0, Cout_p - Cout))).astype(jnp.bfloat16)

    def pad_bias(b, cp):
        return jnp.pad(b, (0, cp - b.shape[0])).reshape(1, cp).astype(jnp.float32)

    return dict(w1=w1, w2=w2, w3=w3,
                b1=pad_bias(b1, Cmid_p), b2=pad_bias(b2, Cmid_p),
                b3=pad_bias(b3, Cout_p))


# ----------------------------------------------------------------------------
# Pure-JAX reference (NCHW, mirrors the PyTorch module in eval mode)
# ----------------------------------------------------------------------------

def reference_forward(x, raw):
    def bn(y, g, b, m, v, eps=1e-5):
        g = g.reshape(1, -1, 1, 1)
        b = b.reshape(1, -1, 1, 1)
        m = m.reshape(1, -1, 1, 1)
        v = v.reshape(1, -1, 1, 1)
        return (y - m) / jnp.sqrt(v + eps) * g + b

    dn = ("NCHW", "OIHW", "NCHW")
    identity = x
    out = lax.conv_general_dilated(x, raw["w1_pt"], (1, 1), "VALID",
                                   dimension_numbers=dn)
    out = jnp.maximum(bn(out, *raw["bn1"]), 0.0)
    out = lax.conv_general_dilated(out, raw["w2_pt"], (1, 1), ((1, 1), (1, 1)),
                                   dimension_numbers=dn)
    out = jnp.maximum(bn(out, *raw["bn2"]), 0.0)
    out = lax.conv_general_dilated(out, raw["w3_pt"], (1, 1), "VALID",
                                   dimension_numbers=dn)
    out = bn(out, *raw["bn3"]) + identity
    return jnp.maximum(out, 0.0)


# ----------------------------------------------------------------------------
# Main
# ----------------------------------------------------------------------------

if __name__ == "__main__":
    key = jax.random.PRNGKey(0)
    keys = jax.random.split(key, 16)

    expansion = 4
    out_channel = 4                       # "mid" width
    in_channel = out_channel * expansion  # 16 (so identity add is valid)
    N, H, W = 2, 16, 16

    # Snap x / weights to bf16-representable values so the f32 reference and the
    # bf16-matmul kernel see identical inputs (differences = rounding only).
    # Note: the residual path inside the kernel carries the bf16-cast input.
    def snap(a):
        return a.astype(jnp.bfloat16).astype(jnp.float32)

    x = snap(jax.random.normal(keys[0], (N, in_channel, H, W), jnp.float32))

    w1_pt = snap(jax.random.normal(keys[1], (out_channel, in_channel, 1, 1), jnp.float32) * 0.1)
    w2_pt = snap(jax.random.normal(keys[2], (out_channel, out_channel, 3, 3), jnp.float32) * 0.1)
    w3_pt = snap(jax.random.normal(keys[3], (out_channel * expansion, out_channel, 1, 1), jnp.float32) * 0.1)

    def bn_params(kg, kb, km, kv, c):
        gamma = jax.random.normal(kg, (c,), jnp.float32) * 0.1 + 1.0
        beta = jax.random.normal(kb, (c,), jnp.float32) * 0.1
        mean = jax.random.normal(km, (c,), jnp.float32) * 0.1
        var = jnp.abs(jax.random.normal(kv, (c,), jnp.float32)) * 0.1 + 0.5
        return gamma, beta, mean, var

    bn1 = bn_params(keys[4], keys[5], keys[6], keys[7], out_channel)
    bn2 = bn_params(keys[8], keys[9], keys[10], keys[11], out_channel)
    bn3 = bn_params(keys[12], keys[13], keys[14], keys[15], out_channel * expansion)

    params = pack_params(w1_pt, w2_pt, w3_pt, bn1, bn2, bn3)
    raw = dict(w1_pt=w1_pt, w2_pt=w2_pt, w3_pt=w3_pt, bn1=bn1, bn2=bn2, bn3=bn3)

    out = jax.jit(bottleneck_forward)(x, params)
    out = jax.block_until_ready(out)
    ref = jax.block_until_ready(reference_forward(x, raw))

    np.testing.assert_allclose(np.asarray(out), np.asarray(ref), rtol=2e-2, atol=2e-2)
    assert out.shape == (N, in_channel, H, W)
    print("KERNEL_OK")
</pallas_src>

<mosaic_0001>
module attributes {stable_mosaic.version = 11 : i64} {
  func.func @_bottleneck_kernel(%arg0: i32, %arg1: memref<1x16x16x128xbf16, #tpu.memory_space<vmem>>, %arg2: memref<128x128xbf16, #tpu.memory_space<vmem>>, %arg3: memref<1152x128xbf16, #tpu.memory_space<vmem>>, %arg4: memref<128x128xbf16, #tpu.memory_space<vmem>>, %arg5: memref<1x128xf32, #tpu.memory_space<vmem>>, %arg6: memref<1x128xf32, #tpu.memory_space<vmem>>, %arg7: memref<1x128xf32, #tpu.memory_space<vmem>>, %arg8: memref<1x16x16x128xbf16, #tpu.memory_space<vmem>>, %arg9: memref<18x24x128xbf16, #tpu.memory_space<vmem>>) attributes {dimension_semantics = [#tpu.dimension_semantics<parallel>], iteration_bounds = array<i64: 2>, scalar_prefetch = 0 : i64, scratch_operands = 1 : i64, tpu.core_type = #tpu.core_type<tc>, window_params = [{transform_indices = @transform_0, window_bounds = array<i64: 1, 16, 16, 128>}, {pipeline_mode = #tpu.pipeline_mode<synchronous>, transform_indices = @transform_1, window_bounds = array<i64: 128, 128>}, {pipeline_mode = #tpu.pipeline_mode<synchronous>, transform_indices = @transform_2, window_bounds = array<i64: 1152, 128>}, {pipeline_mode = #tpu.pipeline_mode<synchronous>, transform_indices = @transform_3, window_bounds = array<i64: 128, 128>}, {pipeline_mode = #tpu.pipeline_mode<synchronous>, transform_indices = @transform_4, window_bounds = array<i64: 1, 128>}, {pipeline_mode = #tpu.pipeline_mode<synchronous>, transform_indices = @transform_5, window_bounds = array<i64: 1, 128>}, {pipeline_mode = #tpu.pipeline_mode<synchronous>, transform_indices = @transform_6, window_bounds = array<i64: 1, 128>}, {transform_indices = @transform_7, window_bounds = array<i64: 1, 16, 16, 128>}]} {
    %c0 = arith.constant 0 : index
    %c0_0 = arith.constant 0 : index
    %0 = vector.load %arg5[%c0, %c0_0] : memref<1x128xf32, #tpu.memory_space<vmem>>, vector<1x128xf32>
    %c0_1 = arith.constant 0 : index
    %c0_2 = arith.constant 0 : index
    %1 = vector.load %arg6[%c0_1, %c0_2] : memref<1x128xf32, #tpu.memory_space<vmem>>, vector<1x128xf32>
    %c0_3 = arith.constant 0 : index
    %c0_4 = arith.constant 0 : index
    %2 = vector.load %arg7[%c0_3, %c0_4] : memref<1x128xf32, #tpu.memory_space<vmem>>, vector<1x128xf32>
    %cst = arith.constant 0.000000e+00 : bf16
    %3 = vector.broadcast %cst : bf16 to vector<1x24x128xbf16>
    %c0_5 = arith.constant 0 : index
    %c0_6 = arith.constant 0 : index
    %c0_7 = arith.constant 0 : index
    %4 = vector.load %arg9[%c0_5, %c0_6, %c0_7] : memref<18x24x128xbf16, #tpu.memory_space<vmem>>, vector<1x24x128xbf16>
    tpu.vector_store %arg9[%c0_5, %c0_6, %c0_7], %3 {strides = array<i32>} : memref<18x24x128xbf16, #tpu.memory_space<vmem>>, vector<1x24x128xbf16>,
    %c17 = arith.constant 17 : index
    %c0_8 = arith.constant 0 : index
    %c0_9 = arith.constant 0 : index
    %5 = vector.load %arg9[%c17, %c0_8, %c0_9] : memref<18x24x128xbf16, #tpu.memory_space<vmem>>, vector<1x24x128xbf16>
    tpu.vector_store %arg9[%c17, %c0_8, %c0_9], %3 {strides = array<i32>} : memref<18x24x128xbf16, #tpu.memory_space<vmem>>, vector<1x24x128xbf16>,
    %cst_10 = arith.constant 0.000000e+00 : bf16
    %6 = vector.broadcast %cst_10 : bf16 to vector<16x1x128xbf16>
    %c1 = arith.constant 1 : index
    %c0_11 = arith.constant 0 : index
    %c0_12 = arith.constant 0 : index
    %7 = vector.load %arg9[%c1, %c0_11, %c0_12] : memref<18x24x128xbf16, #tpu.memory_space<vmem>>, vector<16x1x128xbf16>
    tpu.vector_store %arg9[%c1, %c0_11, %c0_12], %6 {strides = array<i32>} : memref<18x24x128xbf16, #tpu.memory_space<vmem>>, vector<16x1x128xbf16>,
    %c1_13 = arith.constant 1 : index
    %c17_14 = arith.constant 17 : index
    %c0_15 = arith.constant 0 : index
    %8 = vector.load %arg9[%c1_13, %c17_14, %c0_15] : memref<18x24x128xbf16, #tpu.memory_space<vmem>>, vector<16x1x128xbf16>
    tpu.vector_store %arg9[%c1_13, %c17_14, %c0_15], %6 {strides = array<i32>} : memref<18x24x128xbf16, #tpu.memory_space<vmem>>, vector<16x1x128xbf16>,
    %c0_16 = arith.constant 0 : index
    %c0_17 = arith.constant 0 : index
    %c0_18 = arith.constant 0 : index
    %c0_19 = arith.constant 0 : index
    %9 = vector.load %arg1[%c0_16, %c0_17, %c0_18, %c0_19] : memref<1x16x16x128xbf16, #tpu.memory_space<vmem>>, vector<1x16x16x128xbf16>
    %10 = vector.shape_cast %9 : vector<1x16x16x128xbf16> to vector<256x128xbf16>
    %c0_20 = arith.constant 0 : index
    %c0_21 = arith.constant 0 : index
    %11 = vector.load %arg2[%c0_20, %c0_21] : memref<128x128xbf16, #tpu.memory_space<vmem>>, vector<128x128xbf16>
    %cst_22 = arith.constant dense<0.000000e+00> : vector<256x128xf32>
    %12 = tpu.matmul %10, %11, %cst_22 {dimension_numbers = #tpu.dot_dimension_numbers<[1], [0], [0], [1], [0, 0, 1, 1], [], []>} : vector<256x128xbf16>, vector<128x128xbf16>, vector<256x128xf32> -> vector<256x128xf32>
    %13 = vector.broadcast %0 : vector<1x128xf32> to vector<256x128xf32>
    %14 = arith.addf %12, %13 : vector<256x128xf32>
    %cst_23 = arith.constant 0.000000e+00 : f32
    %15 = vector.broadcast %cst_23 : f32 to vector<256x128xf32>
    %16 = arith.maximumf %14, %15 : vector<256x128xf32>
    %17 = arith.truncf %16 : vector<256x128xf32> to vector<256x128xbf16>
    %18 = vector.shape_cast %17 : vector<256x128xbf16> to vector<16x16x128xbf16>
    %c1_24 = arith.constant 1 : index
    %c1_25 = arith.constant 1 : index
    %c0_26 = arith.constant 0 : index
    %19 = vector.load %arg9[%c1_24, %c1_25, %c0_26] : memref<18x24x128xbf16, #tpu.memory_space<vmem>>, vector<16x16x128xbf16>
    tpu.vector_store %arg9[%c1_24, %c1_25, %c0_26], %18 {strides = array<i32>} : memref<18x24x128xbf16, #tpu.memory_space<vmem>>, vector<16x16x128xbf16>,
    %c0_i32 = arith.constant 0 : i32
    %c16_i32 = arith.constant 16 : i32
    %20 = arith.muli %c0_i32, %c16_i32 : i32
    %21 = tpu.assume_multiple %20, 16 : i32
    %c0_i32_27 = arith.constant 0 : i32
    %22 = arith.addi %21, %c0_i32_27 : i32
    %23 = arith.index_cast %22 : i32 to index
    %c0_28 = arith.constant 0 : index
    %c0_29 = arith.constant 0 : index
    %24 = vector.load %arg9[%23, %c0_28, %c0_29] : memref<18x24x128xbf16, #tpu.memory_space<vmem>>, vector<16x16x128xbf16>
    %c0_i32_30 = arith.constant 0 : i32
    %25 = arith.addi %21, %c0_i32_30 : i32
    %26 = arith.index_cast %25 : i32 to index
    %c1_31 = arith.constant 1 : index
    %c0_32 = arith.constant 0 : index
    %27 = vector.load %arg9[%26, %c1_31, %c0_32] : memref<18x24x128xbf16, #tpu.memory_space<vmem>>, vector<16x16x128xbf16>
    %c0_i32_33 = arith.constant 0 : i32
    %28 = arith.addi %21, %c0_i32_33 : i32
    %29 = arith.index_cast %28 : i32 to index
    %c2 = arith.constant 2 : index
    %c0_34 = arith.constant 0 : index
    %30 = vector.load %arg9[%29, %c2, %c0_34] : memref<18x24x128xbf16, #tpu.memory_space<vmem>>, vector<16x16x128xbf16>
    %c1_i32 = arith.constant 1 : i32
    %31 = arith.addi %21, %c1_i32 : i32
    %32 = arith.index_cast %31 : i32 to index
    %c0_35 = arith.constant 0 : index
    %c0_36 = arith.constant 0 : index
    %33 = vector.load %arg9[%32, %c0_35, %c0_36] : memref<18x24x128xbf16, #tpu.memory_space<vmem>>, vector<16x16x128xbf16>
    %c1_i32_37 = arith.constant 1 : i32
    %34 = arith.addi %21, %c1_i32_37 : i32
    %35 = arith.index_cast %34 : i32 to index
    %c1_38 = arith.constant 1 : index
    %c0_39 = arith.constant 0 : index
    %36 = vector.load %arg9[%35, %c1_38, %c0_39] : memref<18x24x128xbf16, #tpu.memory_space<vmem>>, vector<16x16x128xbf16>
    %c1_i32_40 = arith.constant 1 : i32
    %37 = arith.addi %21, %c1_i32_40 : i32
    %38 = arith.index_cast %37 : i32 to index
    %c2_41 = arith.constant 2 : index
    %c0_42 = arith.constant 0 : index
    %39 = vector.load %arg9[%38, %c2_41, %c0_42] : memref<18x24x128xbf16, #tpu.memory_space<vmem>>, vector<16x16x128xbf16>
    %c2_i32 = arith.constant 2 : i32
    %40 = arith.addi %21, %c2_i32 : i32
    %41 = arith.index_cast %40 : i32 to index
    %c0_43 = arith.constant 0 : index
    %c0_44 = arith.constant 0 : index
    %42 = vector.load %arg9[%41, %c0_43, %c0_44] : memref<18x24x128xbf16, #tpu.memory_space<vmem>>, vector<16x16x128xbf16>
    %c2_i32_45 = arith.constant 2 : i32
    %43 = arith.addi %21, %c2_i32_45 : i32
    %44 = arith.index_cast %43 : i32 to index
    %c1_46 = arith.constant 1 : index
    %c0_47 = arith.constant 0 : index
    %45 = vector.load %arg9[%44, %c1_46, %c0_47] : memref<18x24x128xbf16, #tpu.memory_space<vmem>>, vector<16x16x128xbf16>
    %c2_i32_48 = arith.constant 2 : i32
    %46 = arith.addi %21, %c2_i32_48 : i32
    %47 = arith.index_cast %46 : i32 to index
    %c2_49 = arith.constant 2 : index
    %c0_50 = arith.constant 0 : index
    %48 = vector.load %arg9[%47, %c2_49, %c0_50] : memref<18x24x128xbf16, #tpu.memory_space<vmem>>, vector<16x16x128xbf16>
    %49 = tpu.concatenate %24, %27, %30, %33, %36, %39, %42, %45, %48 in 2 : vector<16x16x128xbf16>, vector<16x16x128xbf16>, vector<16x16x128xbf16>, vector<16x16x128xbf16>, vector<16x16x128xbf16>, vector<16x16x128xbf16>, vector<16x16x128xbf16>, vector<16x16x128xbf16>, vector<16x16x128xbf16> -> vector<16x16x1152xbf16>
    %50 = vector.shape_cast %49 : vector<16x16x1152xbf16> to vector<256x1152xbf16>
    %c0_51 = arith.constant 0 : index
    %c0_52 = arith.constant 0 : index
    %51 = vector.load %arg3[%c0_51, %c0_52] : memref<1152x128xbf16, #tpu.memory_space<vmem>>, vector<1152x128xbf16>
    %cst_53 = arith.constant dense<0.000000e+00> : vector<256x128xf32>
    %52 = tpu.matmul %50, %51, %cst_53 {dimension_numbers = #tpu.dot_dimension_numbers<[1], [0], [0], [1], [0, 0, 1, 1], [], []>} : vector<256x1152xbf16>, vector<1152x128xbf16>, vector<256x128xf32> -> vector<256x128xf32>
    %53 = vector.broadcast %1 : vector<1x128xf32> to vector<256x128xf32>
    %54 = arith.addf %52, %53 : vector<256x128xf32>
    %cst_54 = arith.constant 0.000000e+00 : f32
    %55 = vector.broadcast %cst_54 : f32 to vector<256x128xf32>
    %56 = arith.maximumf %54, %55 : vector<256x128xf32>
    %57 = arith.truncf %56 : vector<256x128xf32> to vector<256x128xbf16>
    %c0_55 = arith.constant 0 : index
    %c0_56 = arith.constant 0 : index
    %58 = vector.load %arg4[%c0_55, %c0_56] : memref<128x128xbf16, #tpu.memory_space<vmem>>, vector<128x128xbf16>
    %cst_57 = arith.constant dense<0.000000e+00> : vector<256x128xf32>
    %59 = tpu.matmul %57, %58, %cst_57 {dimension_numbers = #tpu.dot_dimension_numbers<[1], [0], [0], [1], [0, 0, 1, 1], [], []>} : vector<256x128xbf16>, vector<128x128xbf16>, vector<256x128xf32> -> vector<256x128xf32>
    %c0_58 = arith.constant 0 : index
    %60 = arith.index_cast %21 : i32 to index
    %c0_59 = arith.constant 0 : index
    %c0_60 = arith.constant 0 : index
    %61 = vector.load %arg1[%c0_58, %60, %c0_59, %c0_60] : memref<1x16x16x128xbf16, #tpu.memory_space<vmem>>, vector<1x16x16x128xbf16>
    %62 = vector.shape_cast %61 : vector<1x16x16x128xbf16> to vector<256x128xbf16>
    %63 = arith.extf %62 : vector<256x128xbf16> to vector<256x128xf32>
    %64 = vector.broadcast %2 : vector<1x128xf32> to vector<256x128xf32>
    %65 = arith.addf %59, %64 : vector<256x128xf32>
    %66 = arith.addf %65, %63 : vector<256x128xf32>
    %cst_61 = arith.constant 0.000000e+00 : f32
    %67 = vector.broadcast %cst_61 : f32 to vector<256x128xf32>
    %68 = arith.maximumf %66, %67 : vector<256x128xf32>
    %69 = arith.truncf %68 : vector<256x128xf32> to vector<256x128xbf16>
    %70 = vector.shape_cast %69 : vector<256x128xbf16> to vector<1x16x16x128xbf16>
    %c0_62 = arith.constant 0 : index
    %71 = arith.index_cast %21 : i32 to index
    %c0_63 = arith.constant 0 : index
    %c0_64 = arith.constant 0 : index
    %72 = vector.load %arg8[%c0_62, %71, %c0_63, %c0_64] : memref<1x16x16x128xbf16, #tpu.memory_space<vmem>>, vector<1x16x16x128xbf16>
    tpu.vector_store %arg8[%c0_62, %71, %c0_63, %c0_64], %70 {strides = array<i32>} : memref<1x16x16x128xbf16, #tpu.memory_space<vmem>>, vector<1x16x16x128xbf16>,
    %c1_i32_65 = arith.constant 1 : i32
    return
  }
  func.func @transform_0(%arg0: i32) -> (i32, i32, i32, i32) {
    %c0_i32 = arith.constant 0 : i32
    %c0_i32_0 = arith.constant 0 : i32
    %c0_i32_1 = arith.constant 0 : i32
    %c0_i32_2 = arith.constant 0 : i32
    return %arg0, %c0_i32, %c0_i32_0, %c0_i32_1 : i32, i32, i32, i32
  }
  func.func @transform_1(%arg0: i32) -> (i32, i32) {
    %c0_i32 = arith.constant 0 : i32
    %c0_i32_0 = arith.constant 0 : i32
    %c0_i32_1 = arith.constant 0 : i32
    return %c0_i32, %c0_i32_0 : i32, i32
  }
  func.func @transform_2(%arg0: i32) -> (i32, i32) {
    %c0_i32 = arith.constant 0 : i32
    %c0_i32_0 = arith.constant 0 : i32
    %c0_i32_1 = arith.constant 0 : i32
    return %c0_i32, %c0_i32_0 : i32, i32
  }
  func.func @transform_3(%arg0: i32) -> (i32, i32) {
    %c0_i32 = arith.constant 0 : i32
    %c0_i32_0 = arith.constant 0 : i32
    %c0_i32_1 = arith.constant 0 : i32
    return %c0_i32, %c0_i32_0 : i32, i32
  }
  func.func @transform_4(%arg0: i32) -> (i32, i32) {
    %c0_i32 = arith.constant 0 : i32
    %c0_i32_0 = arith.constant 0 : i32
    %c0_i32_1 = arith.constant 0 : i32
    return %c0_i32, %c0_i32_0 : i32, i32
  }
  func.func @transform_5(%arg0: i32) -> (i32, i32) {
    %c0_i32 = arith.constant 0 : i32
    %c0_i32_0 = arith.constant 0 : i32
    %c0_i32_1 = arith.constant 0 : i32
    return %c0_i32, %c0_i32_0 : i32, i32
  }
  func.func @transform_6(%arg0: i32) -> (i32, i32) {
    %c0_i32 = arith.constant 0 : i32
    %c0_i32_0 = arith.constant 0 : i32
    %c0_i32_1 = arith.constant 0 : i32
    return %c0_i32, %c0_i32_0 : i32, i32
  }
  func.func @transform_7(%arg0: i32) -> (i32, i32, i32, i32) {
    %c0_i32 = arith.constant 0 : i32
    %c0_i32_0 = arith.constant 0 : i32
    %c0_i32_1 = arith.constant 0 : i32
    %c0_i32_2 = arith.constant 0 : i32
    return %arg0, %c0_i32, %c0_i32_0, %c0_i32_1 : i32, i32, i32, i32
  }
}

</mosaic_0001>

<llo_original>
// kernel: bottleneck_forward.1
$region0: #{bottleneck_forward.1}
  #allocation0 [shape = 'u32[]', space=smem, size = 0x4, offset = 0x4, fixed_abs, tag = 'smem constant byte address 0x4 - core index']
  #allocation1 [shape = 'u32[144,128]{1,0:T(1,128)}', space=vmem, size = 0x12000, scoped, tag = 'internal scratch']
  #allocation2 [shape = 'bf16[18,24,128]{2,1,0:T(8,128)(2,1)}', space=vmem, size = 0x1b000, scoped, tag = 'scratch operand']
  %s0 = inlined_call_operand.hbm [shape: bf16[2,16,16,128], index: 0, kind: input, shape index: {}]
  %s1 = inlined_call_operand.hbm [shape: bf16[128,128], index: 1, kind: input, shape index: {}]
  %s2 = inlined_call_operand.hbm [shape: bf16[1152,128], index: 2, kind: input, shape index: {}]
  %s3 = inlined_call_operand.hbm [shape: bf16[128,128], index: 3, kind: input, shape index: {}]
  %s4 = inlined_call_operand.hbm [shape: f32[1,128], index: 4, kind: input, shape index: {}]
  %s5 = inlined_call_operand.hbm [shape: f32[1,128], index: 5, kind: input, shape index: {}]
  %s6 = inlined_call_operand.hbm [shape: f32[1,128], index: 6, kind: input, shape index: {}]
  %s7 = inlined_call_operand.hbm [shape: bf16[2,16,16,128], index: 7, kind: output, shape index: {}]
  %s8 = sld [smem:[#allocation0]]
  $region89: #{bottleneck_forward.1} parent=0
    _
  %s10 = ssub.s32 1, %s8
  %s11 = scalar_select 0, %s10, %s8
  $region1: #{bottleneck_forward.1} parent=0
    #allocation3 [shape = 'u8[131072]{0}', space=vmem, size = 0x20000, scoped, tag = 'input window, operand 0']
    #allocation4 [shape = 's32[2]{0}', space=sflag, size = 0x8, scoped, tag = 'scoped memory for bottleneck_forward.1']
    #allocation5 [shape = 's32[2]{0}', space=sflag, size = 0x8, scoped, tag = 'scoped memory for bottleneck_forward.1']
    #allocation6 [shape = 'u8[32768]{0}', space=vmem, size = 0x8000, scoped, tag = 'input window, operand 1, single buffered']
    #allocation7 [shape = 's32[1]{0}', space=sflag, size = 0x4, scoped, tag = 'scoped memory for bottleneck_forward.1']
    #allocation8 [shape = 'u8[294912]{0}', space=vmem, size = 0x48000, scoped, tag = 'input window, operand 2, single buffered']
    #allocation9 [shape = 'u8[32768]{0}', space=vmem, size = 0x8000, scoped, tag = 'input window, operand 3, single buffered']
    #allocation10 [shape = 's32[1]{0}', space=sflag, size = 0x4, scoped, tag = 'scoped memory for bottleneck_forward.1']
    #allocation11 [shape = 'u8[512]{0}', space=vmem, size = 0x400, scoped, tag = 'input window, operand 4, single buffered']
    #allocation12 [shape = 'u8[512]{0}', space=vmem, size = 0x400, scoped, tag = 'input window, operand 5, single buffered']
    #allocation13 [shape = 's32[1]{0}', space=sflag, size = 0x4, scoped, tag = 'scoped memory for bottleneck_forward.1']
    #allocation14 [shape = 'u8[512]{0}', space=vmem, size = 0x400, scoped, tag = 'input window, operand 6, single buffered']
    #allocation15 [shape = 'u8[131072]{0}', space=vmem, size = 0x20000, scoped, tag = 'output window, operand 0']
    %12 = vsyncpa [#allocation4], 0
    %s13 = scalar_lea.sflag [#allocation4], 1
    %14 = vsyncpa %s13, 0
    %15 = vsyncpa [#allocation7], 0
    %16 = vsyncpa [#allocation10], 0
    %17 = vsyncpa [#allocation13], 0
    %18 = vsyncpa [#allocation5], 0
    %s19 = scalar_lea.sflag [#allocation5], 1
    %20 = vsyncpa %s19, 0
    loop: start=0, step=1, limit=4
    $region2: #{bottleneck_forward.1} parent=1 // loop_pre_header
      _
    $region3: #{bottleneck_forward.1} parent=1 // loop_header
      %s22 = sphi 0, %s26
      %p23 = scmp.ge.s32.totalorder %s22, 4
      %s32 = sphi 0, %s34
      %s35 = sphi 0, %s32
      %s36 = sphi 0, %s35
      %s52 = sphi 0, %s36
      %s56 = sphi 0, %s56
      %s58 = sphi 0, %s56
      %s59 = sphi 0, %s58
      %s73 = sphi 0, %s59
      %s77 = sphi 0, %s77
      %s79 = sphi 0, %s77
      %s80 = sphi 0, %s79
      %s94 = sphi 0, %s80
      %s98 = sphi 0, %s98
      %s100 = sphi 0, %s98
      %s101 = sphi 0, %s100
      %s115 = sphi 0, %s101
      %s119 = sphi 0, %s119
      %s121 = sphi 0, %s119
      %s122 = sphi 0, %s121
      %s136 = sphi 0, %s122
      %s140 = sphi 0, %s140
      %s142 = sphi 0, %s140
      %s143 = sphi 0, %s142
      %s157 = sphi 0, %s143
      %s161 = sphi 0, %s161
      %s163 = sphi 0, %s161
      %s164 = sphi 0, %s163
      %s178 = sphi 0, %s164
      %s184 = sphi 0, %s186
      %s187 = sphi 0, %s184
      %s188 = sphi 0, %s187
      %s204 = sphi 0, %s188
    $region4: #{bottleneck_forward.1} parent=1 // loop_header_branch
      %25 = sbr.rel (%p23) target = $region8
    $region5: #{bottleneck_forward.1} parent=1 // loop_body
      %s27 = ssub.s32 %s22, 1
      %s28 = ssub.s32 %s22, 2
      %s29 = sadd.s32 %s22, 1
      %s30 = ssub.s32 %s22, %s29
      %p31 = scmp.eq.s32.totalorder %s30, 0
      %s33 = sadd.s32 %s32, 1
      %s34 = scalar_select %p31, %s32, %s33
      %p37 = pneg %p31
      %p38 = scmp.eq.s32.totalorder %s22, 1
      %p39 = por %p37, %p38
      %p40 = scmp.ne.s32.totalorder %s32, %s35
      %p41 = scmp.eq.s32.totalorder %s22, 0
      %p42 = por %p40, %p41
      %p43 = scmp.ne.s32.totalorder %s32, %s35
      %p44 = scmp.eq.s32.totalorder %s27, 1
      %p45 = por %p43, %p44
      %p46 = scmp.ne.s32.totalorder %s35, %s36
      %p47 = scmp.eq.s32.totalorder %s27, 0
      %p48 = por %p46, %p47
      %p49 = scmp.ne.s32.totalorder %s35, %s36
      %p50 = scmp.eq.s32.totalorder %s28, 1
      %p51 = por %p49, %p50
      %p53 = scmp.ne.s32.totalorder %s36, %s52
      %p54 = scmp.eq.s32.totalorder %s28, 0
      %p55 = por %p53, %p54
      %s57 = sadd.s32 %s56, 1
      %p60 = scmp.eq.s32.totalorder %s22, 1
      %p61 = scmp.ne.s32.totalorder %s56, %s58
      %p62 = scmp.eq.s32.totalorder %s22, 0
      %p63 = por %p61, %p62
      %p64 = scmp.ne.s32.totalorder %s56, %s58
      %p65 = scmp.eq.s32.totalorder %s27, 1
      %p66 = por %p64, %p65
      %p67 = scmp.ne.s32.totalorder %s58, %s59
      %p68 = scmp.eq.s32.totalorder %s27, 0
      %p69 = por %p67, %p68
      %p70 = scmp.ne.s32.totalorder %s58, %s59
      %p71 = scmp.eq.s32.totalorder %s28, 1
      %p72 = por %p70, %p71
      %p74 = scmp.ne.s32.totalorder %s59, %s73
      %p75 = scmp.eq.s32.totalorder %s28, 0
      %p76 = por %p74, %p75
      %s78 = sadd.s32 %s77, 1
      %p81 = scmp.eq.s32.totalorder %s22, 1
      %p82 = scmp.ne.s32.totalorder %s77, %s79
      %p83 = scmp.eq.s32.totalorder %s22, 0
      %p84 = por %p82, %p83
      %p85 = scmp.ne.s32.totalorder %s77, %s79
      %p86 = scmp.eq.s32.totalorder %s27, 1
      %p87 = por %p85, %p86
      %p88 = scmp.ne.s32.totalorder %s79, %s80
      %p89 = scmp.eq.s32.totalorder %s27, 0
      %p90 = por %p88, %p89
      %p91 = scmp.ne.s32.totalorder %s79, %s80
      %p92 = scmp.eq.s32.totalorder %s28, 1
      %p93 = por %p91, %p92
      %p95 = scmp.ne.s32.totalorder %s80, %s94
      %p96 = scmp.eq.s32.totalorder %s28, 0
      %p97 = por %p95, %p96
      %s99 = sadd.s32 %s98, 1
      %p102 = scmp.eq.s32.totalorder %s22, 1
      %p103 = scmp.ne.s32.totalorder %s98, %s100
      %p104 = scmp.eq.s32.totalorder %s22, 0
      %p105 = por %p103, %p104
      %p106 = scmp.ne.s32.totalorder %s98, %s100
      %p107 = scmp.eq.s32.totalorder %s27, 1
      %p108 = por %p106, %p107
      %p109 = scmp.ne.s32.totalorder %s100, %s101
      %p110 = scmp.eq.s32.totalorder %s27, 0
      %p111 = por %p109, %p110
      %p112 = scmp.ne.s32.totalorder %s100, %s101
      %p113 = scmp.eq.s32.totalorder %s28, 1
      %p114 = por %p112, %p113
      %p116 = scmp.ne.s32.totalorder %s101, %s115
      %p117 = scmp.eq.s32.totalorder %s28, 0
      %p118 = por %p116, %p117
      %s120 = sadd.s32 %s119, 1
      %p123 = scmp.eq.s32.totalorder %s22, 1
      %p124 = scmp.ne.s32.totalorder %s119, %s121
      %p125 = scmp.eq.s32.totalorder %s22, 0
      %p126 = por %p124, %p125
      %p127 = scmp.ne.s32.totalorder %s119, %s121
      %p128 = scmp.eq.s32.totalorder %s27, 1
      %p129 = por %p127, %p128
      %p130 = scmp.ne.s32.totalorder %s121, %s122
      %p131 = scmp.eq.s32.totalorder %s27, 0
      %p132 = por %p130, %p131
      %p133 = scmp.ne.s32.totalorder %s121, %s122
      %p134 = scmp.eq.s32.totalorder %s28, 1
      %p135 = por %p133, %p134
      %p137 = scmp.ne.s32.totalorder %s122, %s136
      %p138 = scmp.eq.s32.totalorder %s28, 0
      %p139 = por %p137, %p138
      %s141 = sadd.s32 %s140, 1
      %p144 = scmp.eq.s32.totalorder %s22, 1
      %p145 = scmp.ne.s32.totalorder %s140, %s142
      %p146 = scmp.eq.s32.totalorder %s22, 0
      %p147 = por %p145, %p146
      %p148 = scmp.ne.s32.totalorder %s140, %s142
      %p149 = scmp.eq.s32.totalorder %s27, 1
      %p150 = por %p148, %p149
      %p151 = scmp.ne.s32.totalorder %s142, %s143
      %p152 = scmp.eq.s32.totalorder %s27, 0
      %p153 = por %p151, %p152
      %p154 = scmp.ne.s32.totalorder %s142, %s143
      %p155 = scmp.eq.s32.totalorder %s28, 1
      %p156 = por %p154, %p155
      %p158 = scmp.ne.s32.totalorder %s143, %s157
      %p159 = scmp.eq.s32.totalorder %s28, 0
      %p160 = por %p158, %p159
      %s162 = sadd.s32 %s161, 1
      %p165 = scmp.eq.s32.totalorder %s22, 1
      %p166 = scmp.ne.s32.totalorder %s161, %s163
      %p167 = scmp.eq.s32.totalorder %s22, 0
      %p168 = por %p166, %p167
      %p169 = scmp.ne.s32.totalorder %s161, %s163
      %p170 = scmp.eq.s32.totalorder %s27, 1
      %p171 = por %p169, %p170
      %p172 = scmp.ne.s32.totalorder %s163, %s164
      %p173 = scmp.eq.s32.totalorder %s27, 0
      %p174 = por %p172, %p173
      %p175 = scmp.ne.s32.totalorder %s163, %s164
      %p176 = scmp.eq.s32.totalorder %s28, 1
      %p177 = por %p175, %p176
      %p179 = scmp.ne.s32.totalorder %s164, %s178
      %p180 = scmp.eq.s32.totalorder %s28, 0
      %p181 = por %p179, %p180
      %s182 = ssub.s32 %s22, %s29
      %p183 = scmp.eq.s32.totalorder %s182, 0
      %s185 = sadd.s32 %s184, 1
      %s186 = scalar_select %p183, %s184, %s185
      %p189 = pneg %p183
      %p190 = scmp.eq.s32.totalorder %s22, 1
      %p191 = por %p189, %p190
      %p192 = scmp.ne.s32.totalorder %s184, %s187
      %p193 = scmp.eq.s32.totalorder %s22, 0
      %p194 = por %p192, %p193
      %p195 = scmp.ne.s32.totalorder %s184, %s187
      %p196 = scmp.eq.s32.totalorder %s27, 1
      %p197 = por %p195, %p196
      %p198 = scmp.ne.s32.totalorder %s187, %s188
      %p199 = scmp.eq.s32.totalorder %s27, 0
      %p200 = por %p198, %p199
      %p201 = scmp.ne.s32.totalorder %s187, %s188
      %p202 = scmp.eq.s32.totalorder %s28, 1
      %p203 = por %p201, %p202
      %p205 = scmp.ne.s32.totalorder %s188, %s204
      %p206 = scmp.eq.s32.totalorder %s28, 0
      %p207 = por %p205, %p206
      %p208 = scmp.le.s32.totalorder 1, %s22
      %p209 = scmp.lt.s32.totalorder %s22, 3
      %p210 = pnand %p208, %p209
      %p211 = pneg %p210
      // Predicated region
      $region9: #{bottleneck_forward.1} parent=5 // pred_check
        _
      $region10: #{bottleneck_forward.1} parent=5 // pred_check_branch
        %213 = sbr.rel (%p210) target = $region12
      $region11: #{bottleneck_forward.1} parent=5 // pred_region
        %s214 = ssub.s32 %s22, 1
        // Predicated region
        $region13: #{bottleneck_forward.1} parent=11 // pred_check
          %p215 = pneg %p69
        $region14: #{bottleneck_forward.1} parent=11 // pred_check_branch
          %217 = sbr.rel (%p215) target = $region16
        $region15: #{bottleneck_forward.1} parent=11 // pred_region
          %s219 = ssub.s32 1024, 1024
          %220 = vsyncadd [#allocation7], %s219
          %s221 = sshll.u32 [#allocation6], 4
          %s222 = int_to_ptr.vmem [resolvable:$true] %s221
          %227 = dma.hbm_to_vmem [thread:$0]  %s1, 1024, %s222, [#allocation7], 64, 64, 4
        $region16: #{bottleneck_forward.1} parent=11 // pred_fallthru
          _
        // Predicated region
        $region17: #{bottleneck_forward.1} parent=11 // pred_check
          %p228 = pneg %p90
        $region18: #{bottleneck_forward.1} parent=11 // pred_check_branch
          %230 = sbr.rel (%p228) target = $region20
        $region19: #{bottleneck_forward.1} parent=11 // pred_region
          %s232 = ssub.s32 9216, 9216
          %233 = vsyncadd [#allocation7], %s232
          %s234 = sshll.u32 [#allocation8], 4
          %s235 = int_to_ptr.vmem [resolvable:$true] %s234
          %240 = dma.hbm_to_vmem [thread:$0]  %s2, 9216, %s235, [#allocation7], 64, 64, 4
        $region20: #{bottleneck_forward.1} parent=11 // pred_fallthru
          _
        // Predicated region
        $region21: #{bottleneck_forward.1} parent=11 // pred_check
          %p241 = pneg %p111
        $region22: #{bottleneck_forward.1} parent=11 // pred_check_branch
          %243 = sbr.rel (%p241) target = $region24
        $region23: #{bottleneck_forward.1} parent=11 // pred_region
          %s245 = ssub.s32 1024, 1024
          %246 = vsyncadd [#allocation10], %s245
          %s247 = sshll.u32 [#allocation9], 4
          %s248 = int_to_ptr.vmem [resolvable:$true] %s247
          %253 = dma.hbm_to_vmem [thread:$0]  %s3, 1024, %s248, [#allocation10], 64, 64, 4
        $region24: #{bottleneck_forward.1} parent=11 // pred_fallthru
          _
        // Predicated region
        $region25: #{bottleneck_forward.1} parent=11 // pred_check
          %p254 = pneg %p132
        $region26: #{bottleneck_forward.1} parent=11 // pred_check_branch
          %256 = sbr.rel (%p254) target = $region28
        $region27: #{bottleneck_forward.1} parent=11 // pred_region
          %s258 = ssub.s32 16, 16
          %259 = vsyncadd [#allocation10], %s258
          %s261 = sshll.u32 [#allocation11], 4
          %s262 = int_to_ptr.vmem [resolvable:$true] %s261
          %264 = dma.hbm_to_vmem [thread:$0]  %s4, 16, %s262, [#allocation10]
        $region28: #{bottleneck_forward.1} parent=11 // pred_fallthru
          _
        // Predicated region
        $region29: #{bottleneck_forward.1} parent=11 // pred_check
          %p265 = pneg %p153
        $region30: #{bottleneck_forward.1} parent=11 // pred_check_branch
          %267 = sbr.rel (%p265) target = $region32
        $region31: #{bottleneck_forward.1} parent=11 // pred_region
          %s269 = ssub.s32 16, 16
          %270 = vsyncadd [#allocation13], %s269
          %s272 = sshll.u32 [#allocation12], 4
          %s273 = int_to_ptr.vmem [resolvable:$true] %s272
          %275 = dma.hbm_to_vmem [thread:$0]  %s5, 16, %s273, [#allocation13]
        $region32: #{bottleneck_forward.1} parent=11 // pred_fallthru
          _
        // Predicated region
        $region33: #{bottleneck_forward.1} parent=11 // pred_check
          %p276 = pneg %p174
        $region34: #{bottleneck_forward.1} parent=11 // pred_check_branch
          %278 = sbr.rel (%p276) target = $region36
        $region35: #{bottleneck_forward.1} parent=11 // pred_region
          %s280 = ssub.s32 16, 16
          %281 = vsyncadd [#allocation13], %s280
          %s283 = sshll.u32 [#allocation14], 4
          %s284 = int_to_ptr.vmem [resolvable:$true] %s283
          %286 = dma.hbm_to_vmem [thread:$0]  %s6, 16, %s284, [#allocation13]
        $region36: #{bottleneck_forward.1} parent=11 // pred_fallthru
          _
      $region12: #{bottleneck_forward.1} parent=5 // pred_fallthru
        _
      %p287 = scmp.lt.s32.totalorder %s22, 2
      // Predicated region
      $region37: #{bottleneck_forward.1} parent=5 // pred_check
        %p288 = pneg %p287
      $region38: #{bottleneck_forward.1} parent=5 // pred_check_branch
        %290 = sbr.rel (%p288) target = $region40
      $region39: #{bottleneck_forward.1} parent=5 // pred_region
        // Predicated region
        $region41: #{bottleneck_forward.1} parent=39 // pred_check
          %p291 = pneg %p42
        $region42: #{bottleneck_forward.1} parent=39 // pred_check_branch
          %293 = sbr.rel (%p291) target = $region44
        $region43: #{bottleneck_forward.1} parent=39 // pred_region
          %s294 = sand.u32 %s32, 1
          %s295 = scalar_lea.sflag [#allocation4], %s294
          %s296 = sand.u32 %s32, 1
          %s297 = smul.addr %s296, 128
          %s298 = scalar_lea.vmem [#allocation3], %s297
          %s300 = ssub.s32 2048, 2048
          %301 = vsyncadd %s295, %s300
          %s302 = smul.addr %s22, 32
          %s303 = smul.addr %s302, 64
          %s304 = scalar_lea.hbm %s0, %s303
          %s305 = sshll.u32 %s298, 4
          %s306 = int_to_ptr.vmem [resolvable:$true] %s305
          %311 = dma.hbm_to_vmem [thread:$0]  %s304, 2048, %s306, %s295, 64, 64, 4
        $region44: #{bottleneck_forward.1} parent=39 // pred_fallthru
          _
      $region40: #{bottleneck_forward.1} parent=5 // pred_fallthru
        _
      %p312 = scmp.le.s32.totalorder 1, %s22
      %p313 = scmp.lt.s32.totalorder %s22, 3
      %p314 = pnand %p312, %p313
      %p315 = pneg %p314
      // Predicated region
      $region45: #{bottleneck_forward.1} parent=5 // pred_check
        _
      $region46: #{bottleneck_forward.1} parent=5 // pred_check_branch
        %317 = sbr.rel (%p314) target = $region48
      $region47: #{bottleneck_forward.1} parent=5 // pred_region
        %s318 = ssub.s32 %s22, 1
        %s319 = sand.u32 %s35, 1
        %s320 = scalar_lea.sflag [#allocation4], %s319
        %s321 = sand.u32 %s35, 1
        %s322 = smul.addr %s321, 128
        %s323 = scalar_lea.vmem [#allocation3], %s322
        // Predicated region
        $region49: #{bottleneck_forward.1} parent=47 // pred_check
          %p324 = pneg %p48
        $region50: #{bottleneck_forward.1} parent=47 // pred_check_branch
          %326 = sbr.rel (%p324) target = $region52
        $region51: #{bottleneck_forward.1} parent=47 // pred_region
          %327 = dma.done %s320, 2048
        $region52: #{bottleneck_forward.1} parent=47 // pred_fallthru
          _
        // Predicated region
        $region53: #{bottleneck_forward.1} parent=47 // pred_check
          %p328 = pneg %p69
        $region54: #{bottleneck_forward.1} parent=47 // pred_check_branch
          %330 = sbr.rel (%p328) target = $region56
        $region55: #{bottleneck_forward.1} parent=47 // pred_region
          %331 = dma.done [#allocation7], 1024
        $region56: #{bottleneck_forward.1} parent=47 // pred_fallthru
          _
        // Predicated region
        $region57: #{bottleneck_forward.1} parent=47 // pred_check
          %p332 = pneg %p90
        $region58: #{bottleneck_forward.1} parent=47 // pred_check_branch
          %334 = sbr.rel (%p332) target = $region60
        $region59: #{bottleneck_forward.1} parent=47 // pred_region
          %335 = dma.done [#allocation7], 9216
        $region60: #{bottleneck_forward.1} parent=47 // pred_fallthru
          _
        // Predicated region
        $region61: #{bottleneck_forward.1} parent=47 // pred_check
          %p336 = pneg %p111
        $region62: #{bottleneck_forward.1} parent=47 // pred_check_branch
          %338 = sbr.rel (%p336) target = $region64
        $region63: #{bottleneck_forward.1} parent=47 // pred_region
          %339 = dma.done [#allocation10], 1024
        $region64: #{bottleneck_forward.1} parent=47 // pred_fallthru
          _
        // Predicated region
        $region65: #{bottleneck_forward.1} parent=47 // pred_check
          %p340 = pneg %p132
        $region66: #{bottleneck_forward.1} parent=47 // pred_check_branch
          %342 = sbr.rel (%p340) target = $region68
        $region67: #{bottleneck_forward.1} parent=47 // pred_region
          %343 = dma.done [#allocation10], 16
        $region68: #{bottleneck_forward.1} parent=47 // pred_fallthru
          _
        // Predicated region
        $region69: #{bottleneck_forward.1} parent=47 // pred_check
          %p344 = pneg %p153
        $region70: #{bottleneck_forward.1} parent=47 // pred_check_branch
          %346 = sbr.rel (%p344) target = $region72
        $region71: #{bottleneck_forward.1} parent=47 // pred_region
          %347 = dma.done [#allocation13], 16
        $region72: #{bottleneck_forward.1} parent=47 // pred_fallthru
          _
        // Predicated region
        $region73: #{bottleneck_forward.1} parent=47 // pred_check
          %p348 = pneg %p174
        $region74: #{bottleneck_forward.1} parent=47 // pred_check_branch
          %350 = sbr.rel (%p348) target = $region76
        $region75: #{bottleneck_forward.1} parent=47 // pred_region
          %351 = dma.done [#allocation13], 16
        $region76: #{bottleneck_forward.1} parent=47 // pred_fallthru
          _
        %s352 = sand.u32 %s35, 1
        %s353 = scalar_lea.sflag [#allocation4], %s352
        %s354 = sand.u32 %s35, 1
        %s355 = smul.addr %s354, 128
        %s356 = scalar_lea.vmem [#allocation3], %s355
        %p357 = pneg %p48
        %p358 = pneg %p45
        %p359 = pneg %p69
        %p360 = pneg %p66
        %p361 = pneg %p90
        %p362 = pneg %p87
        %p363 = pneg %p111
        %p364 = pneg %p108
        %p365 = pneg %p132
        %p366 = pneg %p129
        %p367 = pneg %p153
        %p368 = pneg %p150
        %p369 = pneg %p174
        %p370 = pneg %p171
        %p371 = pneg %p200
        %p372 = pneg %p197
        %s373 = sand.u32 %s187, 1
        %s374 = scalar_lea.sflag [#allocation5], %s373
        %s375 = sand.u32 %s187, 1
        %s376 = smul.addr %s375, 128
        %s377 = scalar_lea.vmem [#allocation15], %s376
        %v379 = vld [vmem:[#allocation11] sm:$0x1]
        %v380 = vld [vmem:[#allocation12] sm:$0x1]
        %v381 = vld [vmem:[#allocation14] sm:$0x1]
        %382 = vst [vmem:[#allocation2] sm:$0xf] 0
        %383 = vst [vmem:[#allocation2 + $0x4] sm:$0xf] 0
        %384 = vst [vmem:[#allocation2 + $0x8] sm:$0xf] 0
        %s385 = scalar_lea.vmem [#allocation2], 204
        %386 = vst [vmem:[%s385] sm:$0xf] 0
        %387 = vst [vmem:[%s385 + $0x4] sm:$0xf] 0
        %388 = vst [vmem:[%s385 + $0x8] sm:$0xf] 0
        %s389 = scalar_lea.vmem [#allocation2], 12
        %vm390 = vcmask 1040384
        %vm391 = vsmask.f32 256
        %vm392 = vmand %vm390, %vm391
        %v393 = vld [vmem:[%s389] sm:$0x1]
        %v394 = vsel %vm392, 0, %v393
        %395 = vst [vmem:[%s389] sm:$0x1] %v394
        %v396 = vld [vmem:[%s389 + $0xc] sm:$0x1]
        %v397 = vsel %vm392, 0, %v396
        %398 = vst [vmem:[%s389 + $0xc] sm:$0x1] %v397
        %v399 = vld [vmem:[%s389 + $0x18] sm:$0x1]
        %v400 = vsel %vm392, 0, %v399
        %401 = vst [vmem:[%s389 + $0x18] sm:$0x1] %v400
        %v402 = vld [vmem:[%s389 + $0x24] sm:$0x1]
        %v403 = vsel %vm392, 0, %v402
        %404 = vst [vmem:[%s389 + $0x24] sm:$0x1] %v403
        %v405 = vld [vmem:[%s389 + $0x30] sm:$0x1]
        %v406 = vsel %vm392, 0, %v405
        %407 = vst [vmem:[%s389 + $0x30] sm:$0x1] %v406
        %v408 = vld [vmem:[%s389 + $0x3c] sm:$0x1]
        %v409 = vsel %vm392, 0, %v408
        %410 = vst [vmem:[%s389 + $0x3c] sm:$0x1] %v409
        %v411 = vld [vmem:[%s389 + $0x48] sm:$0x1]
        %v412 = vsel %vm392, 0, %v411
        %413 = vst [vmem:[%s389 + $0x48] sm:$0x1] %v412
        %v414 = vld [vmem:[%s389 + $0x54] sm:$0x1]
        %v415 = vsel %vm392, 0, %v414
        %416 = vst [vmem:[%s389 + $0x54] sm:$0x1] %v415
        %v417 = vld [vmem:[%s389 + $0x60] sm:$0x1]
        %v418 = vsel %vm392, 0, %v417
        %419 = vst [vmem:[%s389 + $0x60] sm:$0x1] %v418
        %v420 = vld [vmem:[%s389 + $0x6c] sm:$0x1]
        %v421 = vsel %vm392, 0, %v420
        %422 = vst [vmem:[%s389 + $0x6c] sm:$0x1] %v421
        %v423 = vld [vmem:[%s389 + $0x78] sm:$0x1]
        %v424 = vsel %vm392, 0, %v423
        %425 = vst [vmem:[%s389 + $0x78] sm:$0x1] %v424
        %v426 = vld [vmem:[%s389 + $0x84] sm:$0x1]
        %v427 = vsel %vm392, 0, %v426
        %428 = vst [vmem:[%s389 + $0x84] sm:$0x1] %v427
        %v429 = vld [vmem:[%s389 + $0x90] sm:$0x1]
        %v430 = vsel %vm392, 0, %v429
        %431 = vst [vmem:[%s389 + $0x90] sm:$0x1] %v430
        %v432 = vld [vmem:[%s389 + $0x9c] sm:$0x1]
        %v433 = vsel %vm392, 0, %v432
        %434 = vst [vmem:[%s389 + $0x9c] sm:$0x1] %v433
        %v435 = vld [vmem:[%s389 + $0xa8] sm:$0x1]
        %v436 = vsel %vm392, 0, %v435
        %437 = vst [vmem:[%s389 + $0xa8] sm:$0x1] %v436
        %v438 = vld [vmem:[%s389 + $0xb4] sm:$0x1]
        %v439 = vsel %vm392, 0, %v438
        %440 = vst [vmem:[%s389 + $0xb4] sm:$0x1] %v439
        %vm441 = vsmask.f32 7938
        %vm442 = vmand %vm390, %vm441
        %v443 = vld [vmem:[%s389 + $0x8] sm:$0x1]
        %v444 = vsel %vm442, 0, %v443
        %445 = vst [vmem:[%s389 + $0x8] sm:$0x1] %v444
        %v446 = vld [vmem:[%s389 + $0x14] sm:$0x1]
        %v447 = vsel %vm442, 0, %v446
        %448 = vst [vmem:[%s389 + $0x14] sm:$0x1] %v447
        %v449 = vld [vmem:[%s389 + $0x20] sm:$0x1]
        %v450 = vsel %vm442, 0, %v449
        %451 = vst [vmem:[%s389 + $0x20] sm:$0x1] %v450
        %v452 = vld [vmem:[%s389 + $0x2c] sm:$0x1]
        %v453 = vsel %vm442, 0, %v452
        %454 = vst [vmem:[%s389 + $0x2c] sm:$0x1] %v453
        %v455 = vld [vmem:[%s389 + $0x38] sm:$0x1]
        %v456 = vsel %vm442, 0, %v455
        %457 = vst [vmem:[%s389 + $0x38] sm:$0x1] %v456
        %v458 = vld [vmem:[%s389 + $0x44] sm:$0x1]
        %v459 = vsel %vm442, 0, %v458
        %460 = vst [vmem:[%s389 + $0x44] sm:$0x1] %v459
        %v461 = vld [vmem:[%s389 + $0x50] sm:$0x1]
        %v462 = vsel %vm442, 0, %v461
        %463 = vst [vmem:[%s389 + $0x50] sm:$0x1] %v462
        %v464 = vld [vmem:[%s389 + $0x5c] sm:$0x1]
        %v465 = vsel %vm442, 0, %v464
        %466 = vst [vmem:[%s389 + $0x5c] sm:$0x1] %v465
        %v467 = vld [vmem:[%s389 + $0x68] sm:$0x1]
        %v468 = vsel %vm442, 0, %v467
        %469 = vst [vmem:[%s389 + $0x68] sm:$0x1] %v468
        %v470 = vld [vmem:[%s389 + $0x74] sm:$0x1]
        %v471 = vsel %vm442, 0, %v470
        %472 = vst [vmem:[%s389 + $0x74] sm:$0x1] %v471
        %v473 = vld [vmem:[%s389 + $0x80] sm:$0x1]
        %v474 = vsel %vm442, 0, %v473
        %475 = vst [vmem:[%s389 + $0x80] sm:$0x1] %v474
        %v476 = vld [vmem:[%s389 + $0x8c] sm:$0x1]
        %v477 = vsel %vm442, 0, %v476
        %478 = vst [vmem:[%s389 + $0x8c] sm:$0x1] %v477
        %v479 = vld [vmem:[%s389 + $0x98] sm:$0x1]
        %v480 = vsel %vm442, 0, %v479
        %481 = vst [vmem:[%s389 + $0x98] sm:$0x1] %v480
        %v482 = vld [vmem:[%s389 + $0xa4] sm:$0x1]
        %v483 = vsel %vm442, 0, %v482
        %484 = vst [vmem:[%s389 + $0xa4] sm:$0x1] %v483
        %v485 = vld [vmem:[%s389 + $0xb0] sm:$0x1]
        %v486 = vsel %vm442, 0, %v485
        %487 = vst [vmem:[%s389 + $0xb0] sm:$0x1] %v486
        %v488 = vld [vmem:[%s389 + $0xbc] sm:$0x1]
        %v489 = vsel %vm442, 0, %v488
        %490 = vst [vmem:[%s389 + $0xbc] sm:$0x1] %v489
        %v491 = vld [vmem:[%s323] sm:$0xf]
        %v492 = vld [vmem:[%s323 + $0x4] sm:$0xf]
        %v493 = vld [vmem:[%s323 + $0x8] sm:$0xf]
        %v494 = vld [vmem:[%s323 + $0xc] sm:$0xf]
        %v495 = vld [vmem:[%s323 + $0x10] sm:$0xf]
        %v496 = vld [vmem:[%s323 + $0x14] sm:$0xf]
        %v497 = vld [vmem:[%s323 + $0x18] sm:$0xf]
        %v498 = vld [vmem:[%s323 + $0x1c] sm:$0xf]
        %v499 = vld [vmem:[%s323 + $0x20] sm:$0xf]
        %v500 = vld [vmem:[%s323 + $0x24] sm:$0xf]
        %v501 = vld [vmem:[%s323 + $0x28] sm:$0xf]
        %v502 = vld [vmem:[%s323 + $0x2c] sm:$0xf]
        %v503 = vld [vmem:[%s323 + $0x30] sm:$0xf]
        %v504 = vld [vmem:[%s323 + $0x34] sm:$0xf]
        %v505 = vld [vmem:[%s323 + $0x38] sm:$0xf]
        %v506 = vld [vmem:[%s323 + $0x3c] sm:$0xf]
        %v507 = vld [vmem:[%s323 + $0x40] sm:$0xf]
        %v508 = vld [vmem:[%s323 + $0x44] sm:$0xf]
        %v509 = vld [vmem:[%s323 + $0x48] sm:$0xf]
        %v510 = vld [vmem:[%s323 + $0x4c] sm:$0xf]
        %v511 = vld [vmem:[%s323 + $0x50] sm:$0xf]
        %v512 = vld [vmem:[%s323 + $0x54] sm:$0xf]
        %v513 = vld [vmem:[%s323 + $0x58] sm:$0xf]
        %v514 = vld [vmem:[%s323 + $0x5c] sm:$0xf]
        %v515 = vld [vmem:[%s323 + $0x60] sm:$0xf]
        %v516 = vld [vmem:[%s323 + $0x64] sm:$0xf]
        %v517 = vld [vmem:[%s323 + $0x68] sm:$0xf]
        %v518 = vld [vmem:[%s323 + $0x6c] sm:$0xf]
        %v519 = vld [vmem:[%s323 + $0x70] sm:$0xf]
        %v520 = vld [vmem:[%s323 + $0x74] sm:$0xf]
        %v521 = vld [vmem:[%s323 + $0x78] sm:$0xf]
        %v522 = vld [vmem:[%s323 + $0x7c] sm:$0xf]
        %v523 = vld [vmem:[#allocation6] sm:$0xf]
        %v524 = vld [vmem:[#allocation6 + $0x4] sm:$0xf]
        %v525 = vld [vmem:[#allocation6 + $0x8] sm:$0xf]
        %v526 = vld [vmem:[#allocation6 + $0xc] sm:$0xf]
        %v527 = vld [vmem:[#allocation6 + $0x10] sm:$0xf]
        %v528 = vld [vmem:[#allocation6 + $0x14] sm:$0xf]
        %v529 = vld [vmem:[#allocation6 + $0x18] sm:$0xf]
        %v530 = vld [vmem:[#allocation6 + $0x1c] sm:$0xf]
        %v531 = vld [vmem:[#allocation6 + $0x20] sm:$0xf]
        %v532 = vld [vmem:[#allocation6 + $0x24] sm:$0xf]
        %v533 = vld [vmem:[#allocation6 + $0x28] sm:$0xf]
        %v534 = vld [vmem:[#allocation6 + $0x2c] sm:$0xf]
        %v535 = vld [vmem:[#allocation6 + $0x30] sm:$0xf]
        %v536 = vld [vmem:[#allocation6 + $0x34] sm:$0xf]
        %v537 = vld [vmem:[#allocation6 + $0x38] sm:$0xf]
        %v538 = vld [vmem:[#allocation6 + $0x3c] sm:$0xf]
        %v540 = vlaneseq
        %v541 = vshrl.u32 %v540, 7
        %v542 = vsub.s32 0, %v541
        %v543 = vrot.slane %v379, %v542
        %v577 = vunpack.c.l.b16 %v491
        %v578 = vunpack.c.l.b16 %v492
        %v579 = vunpack.c.l.b16 %v493
        %v580 = vunpack.c.l.b16 %v494
        %v581 = vunpack.c.l.b16 %v495
        %v582 = vunpack.c.l.b16 %v496
        %v583 = vunpack.c.l.b16 %v497
        %v584 = vunpack.c.l.b16 %v498
        %v585 = vunpack.c.l.b16 %v499
        %v586 = vunpack.c.l.b16 %v500
        %v587 = vunpack.c.l.b16 %v501
        %v588 = vunpack.c.l.b16 %v502
        %v589 = vunpack.c.l.b16 %v503
        %v590 = vunpack.c.l.b16 %v504
        %v591 = vunpack.c.l.b16 %v505
        %v592 = vunpack.c.l.b16 %v506
        %v593 = vunpack.c.l.b16 %v507
        %v594 = vunpack.c.l.b16 %v508
        %v595 = vunpack.c.l.b16 %v509
        %v596 = vunpack.c.l.b16 %v510
        %v597 = vunpack.c.l.b16 %v511
        %v598 = vunpack.c.l.b16 %v512
        %v599 = vunpack.c.l.b16 %v513
        %v600 = vunpack.c.l.b16 %v514
        %v601 = vunpack.c.l.b16 %v515
        %v602 = vunpack.c.l.b16 %v516
        %v603 = vunpack.c.l.b16 %v517
        %v604 = vunpack.c.l.b16 %v518
        %v605 = vunpack.c.l.b16 %v519
        %v606 = vunpack.c.l.b16 %v520
        %v607 = vunpack.c.l.b16 %v521
        %v608 = vunpack.c.l.b16 %v522
        %v609 = vpack.c.b16 %v578, %v577
        %v610 = vpack.c.b16 %v580, %v579
        %v611 = vpack.c.b16 %v582, %v581
        %v612 = vpack.c.b16 %v584, %v583
        %v613 = vpack.c.b16 %v586, %v585
        %v614 = vpack.c.b16 %v588, %v587
        %v615 = vpack.c.b16 %v590, %v589
        %v616 = vpack.c.b16 %v592, %v591
        %v617 = vpack.c.b16 %v594, %v593
        %v618 = vpack.c.b16 %v596, %v595
        %v619 = vpack.c.b16 %v598, %v597
        %v620 = vpack.c.b16 %v600, %v599
        %v621 = vpack.c.b16 %v602, %v601
        %v622 = vpack.c.b16 %v604, %v603
        %v623 = vpack.c.b16 %v606, %v605
        %v624 = vpack.c.b16 %v608, %v607
        %v657 = vunpack.c.l.b16 %v523
        %v658 = vunpack.c.l.b16 %v524
        %v659 = vunpack.c.l.b16 %v525
        %v660 = vunpack.c.l.b16 %v526
        %v661 = vunpack.c.l.b16 %v527
        %v662 = vunpack.c.l.b16 %v528
        %v663 = vunpack.c.l.b16 %v529
        %v664 = vunpack.c.l.b16 %v530
        %v665 = vunpack.c.l.b16 %v531
        %v666 = vunpack.c.l.b16 %v532
        %v667 = vunpack.c.l.b16 %v533
        %v668 = vunpack.c.l.b16 %v534
        %v669 = vunpack.c.l.b16 %v535
        %v670 = vunpack.c.l.b16 %v536
        %v671 = vunpack.c.l.b16 %v537
        %v672 = vunpack.c.l.b16 %v538
        %v673 = vpack.c.b16 %v658, %v657
        %v674 = vpack.c.b16 %v660, %v659
        %v675 = vpack.c.b16 %v662, %v661
        %v676 = vpack.c.b16 %v664, %v663
        %v677 = vpack.c.b16 %v666, %v665
        %v678 = vpack.c.b16 %v668, %v667
        %v679 = vpack.c.b16 %v670, %v669
        %v680 = vpack.c.b16 %v672, %v671
        %689 = vmatprep.subr.bf16.mxu0 0
        %690 = vmatpush1.bf16.msra.mxu0 %v673
        %691 = vmatprep.subr.bf16.mxu0 0
        %692 = vmatpush1.bf16.msra.mxu0 %v674
        %693 = vmatprep.subr.bf16.mxu0 0
        %694 = vmatpush1.bf16.msra.mxu0 %v675
        %695 = vmatprep.subr.bf16.mxu0 0
        %696 = vmatpush1.bf16.msra.mxu0 %v676
        %697 = vmatprep.subr.bf16.mxu0 0
        %698 = vmatpush1.bf16.msra.mxu0 %v677
        %699 = vmatprep.subr.bf16.mxu0 0
        %700 = vmatpush1.bf16.msra.mxu0 %v678
        %701 = vmatprep.subr.bf16.mxu0 0
        %702 = vmatpush1.bf16.msra.mxu0 %v679
        %703 = vmatprep.subr.bf16.mxu0 0
        %704 = vmatpush1.bf16.msra.mxu0 %v680
        %705 = vmatprep.subr.bf16.mxu0 0
        %706 = vmatpush1.bf16.msra.mxu0 0
        %707 = vmatprep.subr.bf16.mxu0 0
        %708 = vmatpush1.bf16.msra.mxu0 0
        %709 = vmatprep.subr.bf16.mxu0 0
        %710 = vmatpush1.bf16.msra.mxu0 0
        %711 = vmatprep.subr.bf16.mxu0 0
        %712 = vmatpush1.bf16.msra.mxu0 0
        %713 = vmatprep.subr.bf16.mxu0 0
        %714 = vmatpush1.bf16.msra.mxu0 0
        %715 = vmatprep.subr.bf16.mxu0 0
        %716 = vmatpush1.bf16.msra.mxu0 0
        %717 = vmatprep.subr.bf16.mxu0 0
        %718 = vmatpush1.bf16.msra.mxu0 0
        %719 = vmatprep.subr.bf16.mxu0 0
        %720 = vmatpush1.bf16.msra.mxu0 0
        %721 = vmatprep.mubr.bf16.mxu0 0
        %722 = vmatmul.mubr.bf16.gmra.mrb[0].mxu0 %v609
        %v723 = vpop.f32.mrb[0].mxu0
        %v724 = vadd.f32 %v543, %v723
        %v725 = vpop.f32.mrb[0].mxu0
        %v726 = vpop.f32.mrb[0].mxu0
        %v727 = vadd.f32 %v543, %v726
        %v728 = vpop.f32.mrb[0].mxu0
        %729 = vmatprep.mubr.bf16.mxu0 0
        %730 = vmatmul.mubr.bf16.gmra.mrb[0].mxu0 %v610
        %v731 = vpop.f32.mrb[0].mxu0
        %v732 = vadd.f32 %v543, %v731
        %v733 = vpop.f32.mrb[0].mxu0
        %v734 = vpop.f32.mrb[0].mxu0
        %v735 = vadd.f32 %v543, %v734
        %v736 = vpop.f32.mrb[0].mxu0
        %737 = vmatprep.mubr.bf16.mxu0 0
        %738 = vmatmul.mubr.bf16.gmra.mrb[0].mxu0 %v611
        %v739 = vpop.f32.mrb[0].mxu0
        %v740 = vadd.f32 %v543, %v739
        %v741 = vpop.f32.mrb[0].mxu0
        %v742 = vpop.f32.mrb[0].mxu0
        %v743 = vadd.f32 %v543, %v742
        %v744 = vpop.f32.mrb[0].mxu0
        %745 = vmatprep.mubr.bf16.mxu0 0
        %746 = vmatmul.mubr.bf16.gmra.mrb[0].mxu0 %v612
        %v747 = vpop.f32.mrb[0].mxu0
        %v748 = vadd.f32 %v543, %v747
        %v749 = vpop.f32.mrb[0].mxu0
        %v750 = vpop.f32.mrb[0].mxu0
        %v751 = vadd.f32 %v543, %v750
        %v752 = vpop.f32.mrb[0].mxu0
        %753 = vmatprep.mubr.bf16.mxu0 0
        %754 = vmatmul.mubr.bf16.gmra.mrb[0].mxu0 %v613
        %v755 = vpop.f32.mrb[0].mxu0
        %v756 = vadd.f32 %v543, %v755
        %v757 = vpop.f32.mrb[0].mxu0
        %v758 = vpop.f32.mrb[0].mxu0
        %v759 = vadd.f32 %v543, %v758
        %v760 = vpop.f32.mrb[0].mxu0
        %761 = vmatprep.mubr.bf16.mxu0 0
        %762 = vmatmul.mubr.bf16.gmra.mrb[0].mxu0 %v614
        %v763 = vpop.f32.mrb[0].mxu0
        %v764 = vadd.f32 %v543, %v763
        %v765 = vpop.f32.mrb[0].mxu0
        %v766 = vpop.f32.mrb[0].mxu0
        %v767 = vadd.f32 %v543, %v766
        %v768 = vpop.f32.mrb[0].mxu0
        %769 = vmatprep.mubr.bf16.mxu0 0
        %770 = vmatmul.mubr.bf16.gmra.mrb[0].mxu0 %v615
        %v771 = vpop.f32.mrb[0].mxu0
        %v772 = vadd.f32 %v543, %v771
        %v773 = vpop.f32.mrb[0].mxu0
        %v774 = vpop.f32.mrb[0].mxu0
        %v775 = vadd.f32 %v543, %v774
        %v776 = vpop.f32.mrb[0].mxu0
        %777 = vmatprep.mubr.bf16.mxu0 0
        %778 = vmatmul.mubr.bf16.gmra.mrb[0].mxu0 %v616
        %v779 = vpop.f32.mrb[0].mxu0
        %v780 = vadd.f32 %v543, %v779
        %v781 = vpop.f32.mrb[0].mxu0
        %v782 = vpop.f32.mrb[0].mxu0
        %v783 = vadd.f32 %v543, %v782
        %v784 = vpop.f32.mrb[0].mxu0
        %785 = vmatprep.mubr.bf16.mxu0 0
        %786 = vmatmul.mubr.bf16.gmra.mrb[0].mxu0 %v617
        %v787 = vpop.f32.mrb[0].mxu0
        %v788 = vadd.f32 %v543, %v787
        %v789 = vpop.f32.mrb[0].mxu0
        %v790 = vpop.f32.mrb[0].mxu0
        %v791 = vadd.f32 %v543, %v790
        %v792 = vpop.f32.mrb[0].mxu0
        %793 = vmatprep.mubr.bf16.mxu0 0
        %794 = vmatmul.mubr.bf16.gmra.mrb[0].mxu0 %v618
        %v795 = vpop.f32.mrb[0].mxu0
        %v796 = vadd.f32 %v543, %v795
        %v797 = vpop.f32.mrb[0].mxu0
        %v798 = vpop.f32.mrb[0].mxu0
        %v799 = vadd.f32 %v543, %v798
        %v800 = vpop.f32.mrb[0].mxu0
        %801 = vmatprep.mubr.bf16.mxu0 0
        %802 = vmatmul.mubr.bf16.gmra.mrb[0].mxu0 %v619
        %v803 = vpop.f32.mrb[0].mxu0
        %v804 = vadd.f32 %v543, %v803
        %v805 = vpop.f32.mrb[0].mxu0
        %v806 = vpop.f32.mrb[0].mxu0
        %v807 = vadd.f32 %v543, %v806
        %v808 = vpop.f32.mrb[0].mxu0
        %809 = vmatprep.mubr.bf16.mxu0 0
        %810 = vmatmul.mubr.bf16.gmra.mrb[0].mxu0 %v620
        %v811 = vpop.f32.mrb[0].mxu0
        %v812 = vadd.f32 %v543, %v811
        %v813 = vpop.f32.mrb[0].mxu0
        %v814 = vpop.f32.mrb[0].mxu0
        %v815 = vadd.f32 %v543, %v814
        %v816 = vpop.f32.mrb[0].mxu0
        %817 = vmatprep.mubr.bf16.mxu0 0
        %818 = vmatmul.mubr.bf16.gmra.mrb[0].mxu0 %v621
        %v819 = vpop.f32.mrb[0].mxu0
        %v820 = vadd.f32 %v543, %v819
        %v821 = vpop.f32.mrb[0].mxu0
        %v822 = vpop.f32.mrb[0].mxu0
        %v823 = vadd.f32 %v543, %v822
        %v824 = vpop.f32.mrb[0].mxu0
        %825 = vmatprep.mubr.bf16.mxu0 0
        %826 = vmatmul.mubr.bf16.gmra.mrb[0].mxu0 %v622
        %v827 = vpop.f32.mrb[0].mxu0
        %v828 = vadd.f32 %v543, %v827
        %v829 = vpop.f32.mrb[0].mxu0
        %v830 = vpop.f32.mrb[0].mxu0
        %v831 = vadd.f32 %v543, %v830
        %v832 = vpop.f32.mrb[0].mxu0
        %833 = vmatprep.mubr.bf16.mxu0 0
        %834 = vmatmul.mubr.bf16.gmra.mrb[0].mxu0 %v623
        %v835 = vpop.f32.mrb[0].mxu0
        %v836 = vadd.f32 %v543, %v835
        %v837 = vpop.f32.mrb[0].mxu0
        %v838 = vpop.f32.mrb[0].mxu0
        %v839 = vadd.f32 %v543, %v838
        %v840 = vpop.f32.mrb[0].mxu0
        %841 = vmatprep.mubr.bf16.mxu0 0
        %842 = vmatmul.mubr.bf16.gmra.mrb[0].mxu0 %v624
        %v843 = vpop.f32.mrb[0].mxu0
        %v844 = vadd.f32 %v543, %v843
        %v845 = vpop.f32.mrb[0].mxu0
        %v846 = vpop.f32.mrb[0].mxu0
        %v847 = vadd.f32 %v543, %v846
        %v848 = vpop.f32.mrb[0].mxu0
        %849 = vdwg.mxu0
        %v850 = vmax.f32 %v724, 0.0
        %v851 = vmax.f32 %v727, 0.0
        %v852 = vmax.f32 %v732, 0.0
        %v853 = vmax.f32 %v735, 0.0
        %v854 = vmax.f32 %v740, 0.0
        %v855 = vmax.f32 %v743, 0.0
        %v856 = vmax.f32 %v748, 0.0
        %v857 = vmax.f32 %v751, 0.0
        %v858 = vmax.f32 %v756, 0.0
        %v859 = vmax.f32 %v759, 0.0
        %v860 = vmax.f32 %v764, 0.0
        %v861 = vmax.f32 %v767, 0.0
        %v862 = vmax.f32 %v772, 0.0
        %v863 = vmax.f32 %v775, 0.0
        %v864 = vmax.f32 %v780, 0.0
        %v865 = vmax.f32 %v783, 0.0
        %v866 = vmax.f32 %v788, 0.0
        %v867 = vmax.f32 %v791, 0.0
        %v868 = vmax.f32 %v796, 0.0
        %v869 = vmax.f32 %v799, 0.0
        %v870 = vmax.f32 %v804, 0.0
        %v871 = vmax.f32 %v807, 0.0
        %v872 = vmax.f32 %v812, 0.0
        %v873 = vmax.f32 %v815, 0.0
        %v874 = vmax.f32 %v820, 0.0
        %v875 = vmax.f32 %v823, 0.0
        %v876 = vmax.f32 %v828, 0.0
        %v877 = vmax.f32 %v831, 0.0
        %v878 = vmax.f32 %v836, 0.0
        %v879 = vmax.f32 %v839, 0.0
        %v880 = vmax.f32 %v844, 0.0
        %v881 = vmax.f32 %v847, 0.0
        %v882 = vpack.c.bf16 %v851, %v850
        %v883 = vpack.c.bf16 %v853, %v852
        %v884 = vpack.c.bf16 %v855, %v854
        %v885 = vpack.c.bf16 %v857, %v856
        %v886 = vpack.c.bf16 %v859, %v858
        %v887 = vpack.c.bf16 %v861, %v860
        %v888 = vpack.c.bf16 %v863, %v862
        %v889 = vpack.c.bf16 %v865, %v864
        %v890 = vpack.c.bf16 %v867, %v866
        %v891 = vpack.c.bf16 %v869, %v868
        %v892 = vpack.c.bf16 %v871, %v870
        %v893 = vpack.c.bf16 %v873, %v872
        %v894 = vpack.c.bf16 %v875, %v874
        %v895 = vpack.c.bf16 %v877, %v876
        %v896 = vpack.c.bf16 %v879, %v878
        %v897 = vpack.c.bf16 %v881, %v880
        %v914 = vunpack.c.l.b16 %v882
        %v915 = vunpack.c.h.b16 %v882
        %v916 = vunpack.c.l.b16 %v883
        %v917 = vunpack.c.h.b16 %v883
        %v918 = vunpack.c.l.b16 %v884
        %v919 = vunpack.c.h.b16 %v884
        %v920 = vunpack.c.l.b16 %v885
        %v921 = vunpack.c.h.b16 %v885
        %v922 = vunpack.c.l.b16 %v886
        %v923 = vunpack.c.h.b16 %v886
        %v924 = vunpack.c.l.b16 %v887
        %v925 = vunpack.c.h.b16 %v887
        %v926 = vunpack.c.l.b16 %v888
        %v927 = vunpack.c.h.b16 %v888
        %v928 = vunpack.c.l.b16 %v889
        %v929 = vunpack.c.h.b16 %v889
        %v930 = vunpack.c.l.b16 %v890
        %v931 = vunpack.c.h.b16 %v890
        %v932 = vunpack.c.l.b16 %v891
        %v933 = vunpack.c.h.b16 %v891
        %v934 = vunpack.c.l.b16 %v892
        %v935 = vunpack.c.h.b16 %v892
        %v936 = vunpack.c.l.b16 %v893
        %v937 = vunpack.c.h.b16 %v893
        %v938 = vunpack.c.l.b16 %v894
        %v939 = vunpack.c.h.b16 %v894
        %v940 = vunpack.c.l.b16 %v895
        %v941 = vunpack.c.h.b16 %v895
        %v942 = vunpack.c.l.b16 %v896
        %v943 = vunpack.c.h.b16 %v896
        %v944 = vunpack.c.l.b16 %v897
        %v945 = vunpack.c.h.b16 %v897
        %v946 = vpack.c.b16 %v914, %v914
        %v947 = vpack.c.b16 %v915, %v915
        %v948 = vpack.c.b16 %v916, %v916
        %v949 = vpack.c.b16 %v917, %v917
        %v950 = vpack.c.b16 %v918, %v918
        %v951 = vpack.c.b16 %v919, %v919
        %v952 = vpack.c.b16 %v920, %v920
        %v953 = vpack.c.b16 %v921, %v921
        %v954 = vpack.c.b16 %v922, %v922
        %v955 = vpack.c.b16 %v923, %v923
        %v956 = vpack.c.b16 %v924, %v924
        %v957 = vpack.c.b16 %v925, %v925
        %v958 = vpack.c.b16 %v926, %v926
        %v959 = vpack.c.b16 %v927, %v927
        %v960 = vpack.c.b16 %v928, %v928
        %v961 = vpack.c.b16 %v929, %v929
        %v962 = vpack.c.b16 %v930, %v930
        %v963 = vpack.c.b16 %v931, %v931
        %v964 = vpack.c.b16 %v932, %v932
        %v965 = vpack.c.b16 %v933, %v933
        %v966 = vpack.c.b16 %v934, %v934
        %v967 = vpack.c.b16 %v935, %v935
        %v968 = vpack.c.b16 %v936, %v936
        %v969 = vpack.c.b16 %v937, %v937
        %v970 = vpack.c.b16 %v938, %v938
        %v971 = vpack.c.b16 %v939, %v939
        %v972 = vpack.c.b16 %v940, %v940
        %v973 = vpack.c.b16 %v941, %v941
        %v974 = vpack.c.b16 %v942, %v942
        %v975 = vpack.c.b16 %v943, %v943
        %v976 = vpack.c.b16 %v944, %v944
        %v977 = vpack.c.b16 %v945, %v945
        %vm978 = vsmask.f32 4368
        %vm979 = vmor %vm391, %vm978
        %v981 = vshrl.u32 %v946, 16
        %v983 = vrot.slane %v981, 7
        %v984 = vshll.u32 %v946, 16
        %v986 = vor.u32 %v983, %v984
        %v987 = vrot.slane %v983, 4
        %v989 = vshrl.u32 %v947, 16
        %v991 = vrot.slane %v989, 7
        %v992 = vshll.u32 %v947, 16
        %v994 = vor.u32 %v991, %v992
        %v995 = vsel %vm979, %v987, %v994
        %v996 = vrot.slane %v991, 4
        %v998 = vshrl.u32 %v948, 16
        %v1000 = vrot.slane %v998, 7
        %v1001 = vshll.u32 %v948, 16
        %v1003 = vor.u32 %v1000, %v1001
        %v1004 = vrot.slane %v1000, 4
        %v1006 = vshrl.u32 %v949, 16
        %v1008 = vrot.slane %v1006, 7
        %v1009 = vshll.u32 %v949, 16
        %v1011 = vor.u32 %v1008, %v1009
        %v1012 = vsel %vm979, %v1004, %v1011
        %v1013 = vrot.slane %v1008, 4
        %v1015 = vshrl.u32 %v950, 16
        %v1017 = vrot.slane %v1015, 7
        %v1018 = vshll.u32 %v950, 16
        %v1020 = vor.u32 %v1017, %v1018
        %v1021 = vrot.slane %v1017, 4
        %v1023 = vshrl.u32 %v951, 16
        %v1025 = vrot.slane %v1023, 7
        %v1026 = vshll.u32 %v951, 16
        %v1028 = vor.u32 %v1025, %v1026
        %v1029 = vsel %vm979, %v1021, %v1028
        %v1030 = vrot.slane %v1025, 4
        %v1032 = vshrl.u32 %v952, 16
        %v1034 = vrot.slane %v1032, 7
        %v1035 = vshll.u32 %v952, 16
        %v1037 = vor.u32 %v1034, %v1035
        %v1038 = vrot.slane %v1034, 4
        %v1040 = vshrl.u32 %v953, 16
        %v1042 = vrot.slane %v1040, 7
        %v1043 = vshll.u32 %v953, 16
        %v1045 = vor.u32 %v1042, %v1043
        %v1046 = vsel %vm979, %v1038, %v1045
        %v1047 = vrot.slane %v1042, 4
        %v1049 = vshrl.u32 %v954, 16
        %v1051 = vrot.slane %v1049, 7
        %v1052 = vshll.u32 %v954, 16
        %v1054 = vor.u32 %v1051, %v1052
        %v1055 = vrot.slane %v1051, 4
        %v1057 = vshrl.u32 %v955, 16
        %v1059 = vrot.slane %v1057, 7
        %v1060 = vshll.u32 %v955, 16
        %v1062 = vor.u32 %v1059, %v1060
        %v1063 = vsel %vm979, %v1055, %v1062
        %v1064 = vrot.slane %v1059, 4
        %v1066 = vshrl.u32 %v956, 16
        %v1068 = vrot.slane %v1066, 7
        %v1069 = vshll.u32 %v956, 16
        %v1071 = vor.u32 %v1068, %v1069
        %v1072 = vrot.slane %v1068, 4
        %v1074 = vshrl.u32 %v957, 16
        %v1076 = vrot.slane %v1074, 7
        %v1077 = vshll.u32 %v957, 16
        %v1079 = vor.u32 %v1076, %v1077
        %v1080 = vsel %vm979, %v1072, %v1079
        %v1081 = vrot.slane %v1076, 4
        %v1083 = vshrl.u32 %v958, 16
        %v1085 = vrot.slane %v1083, 7
        %v1086 = vshll.u32 %v958, 16
        %v1088 = vor.u32 %v1085, %v1086
        %v1089 = vrot.slane %v1085, 4
        %v1091 = vshrl.u32 %v959, 16
        %v1093 = vrot.slane %v1091, 7
        %v1094 = vshll.u32 %v959, 16
        %v1096 = vor.u32 %v1093, %v1094
        %v1097 = vsel %vm979, %v1089, %v1096
        %v1098 = vrot.slane %v1093, 4
        %v1100 = vshrl.u32 %v960, 16
        %v1102 = vrot.slane %v1100, 7
        %v1103 = vshll.u32 %v960, 16
        %v1105 = vor.u32 %v1102, %v1103
        %v1106 = vrot.slane %v1102, 4
        %v1108 = vshrl.u32 %v961, 16
        %v1110 = vrot.slane %v1108, 7
        %v1111 = vshll.u32 %v961, 16
        %v1113 = vor.u32 %v1110, %v1111
        %v1114 = vsel %vm979, %v1106, %v1113
        %v1115 = vrot.slane %v1110, 4
        %v1117 = vshrl.u32 %v962, 16
        %v1119 = vrot.slane %v1117, 7
        %v1120 = vshll.u32 %v962, 16
        %v1122 = vor.u32 %v1119, %v1120
        %v1123 = vrot.slane %v1119, 4
        %v1125 = vshrl.u32 %v963, 16
        %v1127 = vrot.slane %v1125, 7
        %v1128 = vshll.u32 %v963, 16
        %v1130 = vor.u32 %v1127, %v1128
        %v1131 = vsel %vm979, %v1123, %v1130
        %v1132 = vrot.slane %v1127, 4
        %v1134 = vshrl.u32 %v964, 16
        %v1136 = vrot.slane %v1134, 7
        %v1137 = vshll.u32 %v964, 16
        %v1139 = vor.u32 %v1136, %v1137
        %v1140 = vrot.slane %v1136, 4
        %v1142 = vshrl.u32 %v965, 16
        %v1144 = vrot.slane %v1142, 7
        %v1145 = vshll.u32 %v965, 16
        %v1147 = vor.u32 %v1144, %v1145
        %v1148 = vsel %vm979, %v1140, %v1147
        %v1149 = vrot.slane %v1144, 4
        %v1151 = vshrl.u32 %v966, 16
        %v1153 = vrot.slane %v1151, 7
        %v1154 = vshll.u32 %v966, 16
        %v1156 = vor.u32 %v1153, %v1154
        %v1157 = vrot.slane %v1153, 4
        %v1159 = vshrl.u32 %v967, 16
        %v1161 = vrot.slane %v1159, 7
        %v1162 = vshll.u32 %v967, 16
        %v1164 = vor.u32 %v1161, %v1162
        %v1165 = vsel %vm979, %v1157, %v1164
        %v1166 = vrot.slane %v1161, 4
        %v1168 = vshrl.u32 %v968, 16
        %v1170 = vrot.slane %v1168, 7
        %v1171 = vshll.u32 %v968, 16
        %v1173 = vor.u32 %v1170, %v1171
        %v1174 = vrot.slane %v1170, 4
        %v1176 = vshrl.u32 %v969, 16
        %v1178 = vrot.slane %v1176, 7
        %v1179 = vshll.u32 %v969, 16
        %v1181 = vor.u32 %v1178, %v1179
        %v1182 = vsel %vm979, %v1174, %v1181
        %v1183 = vrot.slane %v1178, 4
        %v1185 = vshrl.u32 %v970, 16
        %v1187 = vrot.slane %v1185, 7
        %v1188 = vshll.u32 %v970, 16
        %v1190 = vor.u32 %v1187, %v1188
        %v1191 = vrot.slane %v1187, 4
        %v1193 = vshrl.u32 %v971, 16
        %v1195 = vrot.slane %v1193, 7
        %v1196 = vshll.u32 %v971, 16
        %v1198 = vor.u32 %v1195, %v1196
        %v1199 = vsel %vm979, %v1191, %v1198
        %v1200 = vrot.slane %v1195, 4
        %v1202 = vshrl.u32 %v972, 16
        %v1204 = vrot.slane %v1202, 7
        %v1205 = vshll.u32 %v972, 16
        %v1207 = vor.u32 %v1204, %v1205
        %v1208 = vrot.slane %v1204, 4
        %v1210 = vshrl.u32 %v973, 16
        %v1212 = vrot.slane %v1210, 7
        %v1213 = vshll.u32 %v973, 16
        %v1215 = vor.u32 %v1212, %v1213
        %v1216 = vsel %vm979, %v1208, %v1215
        %v1217 = vrot.slane %v1212, 4
        %v1219 = vshrl.u32 %v974, 16
        %v1221 = vrot.slane %v1219, 7
        %v1222 = vshll.u32 %v974, 16
        %v1224 = vor.u32 %v1221, %v1222
        %v1225 = vrot.slane %v1221, 4
        %v1227 = vshrl.u32 %v975, 16
        %v1229 = vrot.slane %v1227, 7
        %v1230 = vshll.u32 %v975, 16
        %v1232 = vor.u32 %v1229, %v1230
        %v1233 = vsel %vm979, %v1225, %v1232
        %v1234 = vrot.slane %v1229, 4
        %v1236 = vshrl.u32 %v976, 16
        %v1238 = vrot.slane %v1236, 7
        %v1239 = vshll.u32 %v976, 16
        %v1241 = vor.u32 %v1238, %v1239
        %v1242 = vrot.slane %v1238, 4
        %v1244 = vshrl.u32 %v977, 16
        %v1246 = vrot.slane %v1244, 7
        %v1247 = vshll.u32 %v977, 16
        %v1249 = vor.u32 %v1246, %v1247
        %v1250 = vsel %vm979, %v1242, %v1249
        %v1251 = vrot.slane %v1246, 4
        %vm1300 = vcmask 1043456
        %vm1301 = vmand %vm1300, %vm441
        %v1302 = vld [vmem:[%s389] sm:$0xf]
        %v1303 = vsel %vm1301, %v986, %v1302
        %1304 = vst [vmem:[%s389] sm:$0xf] %v1303
        %1305 = vst [vmem:[%s389 + $0x4] sm:$0xf] %v995
        %v1306 = vld [vmem:[%s389 + $0x8] sm:$0x1]
        %v1307 = vsel %vm392, %v996, %v1306
        %1308 = vst [vmem:[%s389 + $0x8] sm:$0x1] %v1307
        %v1309 = vld [vmem:[%s389 + $0xc] sm:$0xf]
        %v1310 = vsel %vm1301, %v1003, %v1309
        %1311 = vst [vmem:[%s389 + $0xc] sm:$0xf] %v1310
        %1312 = vst [vmem:[%s389 + $0x10] sm:$0xf] %v1012
        %v1313 = vld [vmem:[%s389 + $0x14] sm:$0x1]
        %v1314 = vsel %vm392, %v1013, %v1313
        %1315 = vst [vmem:[%s389 + $0x14] sm:$0x1] %v1314
        %v1316 = vld [vmem:[%s389 + $0x18] sm:$0xf]
        %v1317 = vsel %vm1301, %v1020, %v1316
        %1318 = vst [vmem:[%s389 + $0x18] sm:$0xf] %v1317
        %1319 = vst [vmem:[%s389 + $0x1c] sm:$0xf] %v1029
        %v1320 = vld [vmem:[%s389 + $0x20] sm:$0x1]
        %v1321 = vsel %vm392, %v1030, %v1320
        %1322 = vst [vmem:[%s389 + $0x20] sm:$0x1] %v1321
        %v1323 = vld [vmem:[%s389 + $0x24] sm:$0xf]
        %v1324 = vsel %vm1301, %v1037, %v1323
        %1325 = vst [vmem:[%s389 + $0x24] sm:$0xf] %v1324
        %1326 = vst [vmem:[%s389 + $0x28] sm:$0xf] %v1046
        %v1327 = vld [vmem:[%s389 + $0x2c] sm:$0x1]
        %v1328 = vsel %vm392, %v1047, %v1327
        %1329 = vst [vmem:[%s389 + $0x2c] sm:$0x1] %v1328
        %v1330 = vld [vmem:[%s389 + $0x30] sm:$0xf]
        %v1331 = vsel %vm1301, %v1054, %v1330
        %1332 = vst [vmem:[%s389 + $0x30] sm:$0xf] %v1331
        %1333 = vst [vmem:[%s389 + $0x34] sm:$0xf] %v1063
        %v1334 = vld [vmem:[%s389 + $0x38] sm:$0x1]
        %v1335 = vsel %vm392, %v1064, %v1334
        %1336 = vst [vmem:[%s389 + $0x38] sm:$0x1] %v1335
        %v1337 = vld [vmem:[%s389 + $0x3c] sm:$0xf]
        %v1338 = vsel %vm1301, %v1071, %v1337
        %1339 = vst [vmem:[%s389 + $0x3c] sm:$0xf] %v1338
        %1340 = vst [vmem:[%s389 + $0x40] sm:$0xf] %v1080
        %v1341 = vld [vmem:[%s389 + $0x44] sm:$0x1]
        %v1342 = vsel %vm392, %v1081, %v1341
        %1343 = vst [vmem:[%s389 + $0x44] sm:$0x1] %v1342
        %v1344 = vld [vmem:[%s389 + $0x48] sm:$0xf]
        %v1345 = vsel %vm1301, %v1088, %v1344
        %1346 = vst [vmem:[%s389 + $0x48] sm:$0xf] %v1345
        %1347 = vst [vmem:[%s389 + $0x4c] sm:$0xf] %v1097
        %v1348 = vld [vmem:[%s389 + $0x50] sm:$0x1]
        %v1349 = vsel %vm392, %v1098, %v1348
        %1350 = vst [vmem:[%s389 + $0x50] sm:$0x1] %v1349
        %v1351 = vld [vmem:[%s389 + $0x54] sm:$0xf]
        %v1352 = vsel %vm1301, %v1105, %v1351
        %1353 = vst [vmem:[%s389 + $0x54] sm:$0xf] %v1352
        %1354 = vst [vmem:[%s389 + $0x58] sm:$0xf] %v1114
        %v1355 = vld [vmem:[%s389 + $0x5c] sm:$0x1]
        %v1356 = vsel %vm392, %v1115, %v1355
        %1357 = vst [vmem:[%s389 + $0x5c] sm:$0x1] %v1356
        %v1358 = vld [vmem:[%s389 + $0x60] sm:$0xf]
        %v1359 = vsel %vm1301, %v1122, %v1358
        %1360 = vst [vmem:[%s389 + $0x60] sm:$0xf] %v1359
        %1361 = vst [vmem:[%s389 + $0x64] sm:$0xf] %v1131
        %v1362 = vld [vmem:[%s389 + $0x68] sm:$0x1]
        %v1363 = vsel %vm392, %v1132, %v1362
        %1364 = vst [vmem:[%s389 + $0x68] sm:$0x1] %v1363
        %v1365 = vld [vmem:[%s389 + $0x6c] sm:$0xf]
        %v1366 = vsel %vm1301, %v1139, %v1365
        %1367 = vst [vmem:[%s389 + $0x6c] sm:$0xf] %v1366
        %1368 = vst [vmem:[%s389 + $0x70] sm:$0xf] %v1148
        %v1369 = vld [vmem:[%s389 + $0x74] sm:$0x1]
        %v1370 = vsel %vm392, %v1149, %v1369
        %1371 = vst [vmem:[%s389 + $0x74] sm:$0x1] %v1370
        %v1372 = vld [vmem:[%s389 + $0x78] sm:$0xf]
        %v1373 = vsel %vm1301, %v1156, %v1372
        %1374 = vst [vmem:[%s389 + $0x78] sm:$0xf] %v1373
        %1375 = vst [vmem:[%s389 + $0x7c] sm:$0xf] %v1165
        %v1376 = vld [vmem:[%s389 + $0x80] sm:$0x1]
        %v1377 = vsel %vm392, %v1166, %v1376
        %1378 = vst [vmem:[%s389 + $0x80] sm:$0x1] %v1377
        %v1379 = vld [vmem:[%s389 + $0x84] sm:$0xf]
        %v1380 = vsel %vm1301, %v1173, %v1379
        %1381 = vst [vmem:[%s389 + $0x84] sm:$0xf] %v1380
        %1382 = vst [vmem:[%s389 + $0x88] sm:$0xf] %v1182
        %v1383 = vld [vmem:[%s389 + $0x8c] sm:$0x1]
        %v1384 = vsel %vm392, %v1183, %v1383
        %1385 = vst [vmem:[%s389 + $0x8c] sm:$0x1] %v1384
        %v1386 = vld [vmem:[%s389 + $0x90] sm:$0xf]
        %v1387 = vsel %vm1301, %v1190, %v1386
        %1388 = vst [vmem:[%s389 + $0x90] sm:$0xf] %v1387
        %1389 = vst [vmem:[%s389 + $0x94] sm:$0xf] %v1199
        %v1390 = vld [vmem:[%s389 + $0x98] sm:$0x1]
        %v1391 = vsel %vm392, %v1200, %v1390
        %1392 = vst [vmem:[%s389 + $0x98] sm:$0x1] %v1391
        %v1393 = vld [vmem:[%s389 + $0x9c] sm:$0xf]
        %v1394 = vsel %vm1301, %v1207, %v1393
        %1395 = vst [vmem:[%s389 + $0x9c] sm:$0xf] %v1394
        %1396 = vst [vmem:[%s389 + $0xa0] sm:$0xf] %v1216
        %v1397 = vld [vmem:[%s389 + $0xa4] sm:$0x1]
        %v1398 = vsel %vm392, %v1217, %v1397
        %1399 = vst [vmem:[%s389 + $0xa4] sm:$0x1] %v1398
        %v1400 = vld [vmem:[%s389 + $0xa8] sm:$0xf]
        %v1401 = vsel %vm1301, %v1224, %v1400
        %1402 = vst [vmem:[%s389 + $0xa8] sm:$0xf] %v1401
        %1403 = vst [vmem:[%s389 + $0xac] sm:$0xf] %v1233
        %v1404 = vld [vmem:[%s389 + $0xb0] sm:$0x1]
        %v1405 = vsel %vm392, %v1234, %v1404
        %1406 = vst [vmem:[%s389 + $0xb0] sm:$0x1] %v1405
        %v1407 = vld [vmem:[%s389 + $0xb4] sm:$0xf]
        %v1408 = vsel %vm1301, %v1241, %v1407
        %1409 = vst [vmem:[%s389 + $0xb4] sm:$0xf] %v1408
        %1410 = vst [vmem:[%s389 + $0xb8] sm:$0xf] %v1250
        %v1411 = vld [vmem:[%s389 + $0xbc] sm:$0x1]
        %v1412 = vsel %vm392, %v1251, %v1411
        %1413 = vst [vmem:[%s389 + $0xbc] sm:$0x1] %v1412
        %s1414 = smul.u32 0, 3
        %s1415 = smul.addr %s1414, 4
        %s1416 = scalar_lea.vmem [#allocation2], %s1415
        %v1417 = vld [vmem:[%s1416] sm:$0xf]
        %v1418 = vld [vmem:[%s1416 + $0x4] sm:$0xf]
        %v1419 = vld [vmem:[%s1416 + $0xc] sm:$0xf]
        %v1420 = vld [vmem:[%s1416 + $0x10] sm:$0xf]
        %v1421 = vld [vmem:[%s1416 + $0x18] sm:$0xf]
        %v1422 = vld [vmem:[%s1416 + $0x1c] sm:$0xf]
        %v1423 = vld [vmem:[%s1416 + $0x24] sm:$0xf]
        %v1424 = vld [vmem:[%s1416 + $0x28] sm:$0xf]
        %v1425 = vld [vmem:[%s1416 + $0x30] sm:$0xf]
        %v1426 = vld [vmem:[%s1416 + $0x34] sm:$0xf]
        %v1427 = vld [vmem:[%s1416 + $0x3c] sm:$0xf]
        %v1428 = vld [vmem:[%s1416 + $0x40] sm:$0xf]
        %v1429 = vld [vmem:[%s1416 + $0x48] sm:$0xf]
        %v1430 = vld [vmem:[%s1416 + $0x4c] sm:$0xf]
        %v1431 = vld [vmem:[%s1416 + $0x54] sm:$0xf]
        %v1432 = vld [vmem:[%s1416 + $0x58] sm:$0xf]
        %v1433 = vld [vmem:[%s1416 + $0x60] sm:$0xf]
        %v1434 = vld [vmem:[%s1416 + $0x64] sm:$0xf]
        %v1435 = vld [vmem:[%s1416 + $0x6c] sm:$0xf]
        %v1436 = vld [vmem:[%s1416 + $0x70] sm:$0xf]
        %v1437 = vld [vmem:[%s1416 + $0x78] sm:$0xf]
        %v1438 = vld [vmem:[%s1416 + $0x7c] sm:$0xf]
        %v1439 = vld [vmem:[%s1416 + $0x84] sm:$0xf]
        %v1440 = vld [vmem:[%s1416 + $0x88] sm:$0xf]
        %v1441 = vld [vmem:[%s1416 + $0x90] sm:$0xf]
        %v1442 = vld [vmem:[%s1416 + $0x94] sm:$0xf]
        %v1443 = vld [vmem:[%s1416 + $0x9c] sm:$0xf]
        %v1444 = vld [vmem:[%s1416 + $0xa0] sm:$0xf]
        %v1445 = vld [vmem:[%s1416 + $0xa8] sm:$0xf]
        %v1446 = vld [vmem:[%s1416 + $0xac] sm:$0xf]
        %v1447 = vld [vmem:[%s1416 + $0xb4] sm:$0xf]
        %v1448 = vld [vmem:[%s1416 + $0xb8] sm:$0xf]
        %v1449 = vld [vmem:[%s1416 + $0x8] sm:$0x1]
        %v1450 = vld [vmem:[%s1416 + $0x14] sm:$0x1]
        %v1451 = vld [vmem:[%s1416 + $0x20] sm:$0x1]
        %v1452 = vld [vmem:[%s1416 + $0x2c] sm:$0x1]
        %v1453 = vld [vmem:[%s1416 + $0x38] sm:$0x1]
        %v1454 = vld [vmem:[%s1416 + $0x44] sm:$0x1]
        %v1455 = vld [vmem:[%s1416 + $0x50] sm:$0x1]
        %v1456 = vld [vmem:[%s1416 + $0x5c] sm:$0x1]
        %v1457 = vld [vmem:[%s1416 + $0x68] sm:$0x1]
        %v1458 = vld [vmem:[%s1416 + $0x74] sm:$0x1]
        %v1459 = vld [vmem:[%s1416 + $0x80] sm:$0x1]
        %v1460 = vld [vmem:[%s1416 + $0x8c] sm:$0x1]
        %v1461 = vld [vmem:[%s1416 + $0x98] sm:$0x1]
        %v1462 = vld [vmem:[%s1416 + $0xa4] sm:$0x1]
        %v1463 = vld [vmem:[%s1416 + $0xb0] sm:$0x1]
        %v1464 = vld [vmem:[%s1416 + $0xbc] sm:$0x1]
        %v1465 = vld [vmem:[%s1416] sm:$0xe]
        %v1466 = vld [vmem:[%s1416 + $0xc] sm:$0xe]
        %v1467 = vld [vmem:[%s1416 + $0x18] sm:$0xe]
        %v1468 = vld [vmem:[%s1416 + $0x24] sm:$0xe]
        %v1469 = vld [vmem:[%s1416 + $0x30] sm:$0xe]
        %v1470 = vld [vmem:[%s1416 + $0x3c] sm:$0xe]
        %v1471 = vld [vmem:[%s1416 + $0x48] sm:$0xe]
        %v1472 = vld [vmem:[%s1416 + $0x54] sm:$0xe]
        %v1473 = vld [vmem:[%s1416 + $0x60] sm:$0xe]
        %v1474 = vld [vmem:[%s1416 + $0x6c] sm:$0xe]
        %v1475 = vld [vmem:[%s1416 + $0x78] sm:$0xe]
        %v1476 = vld [vmem:[%s1416 + $0x84] sm:$0xe]
        %v1477 = vld [vmem:[%s1416 + $0x90] sm:$0xe]
        %v1478 = vld [vmem:[%s1416 + $0x9c] sm:$0xe]
        %v1479 = vld [vmem:[%s1416 + $0xa8] sm:$0xe]
        %v1480 = vld [vmem:[%s1416 + $0xb4] sm:$0xe]
        %s1481 = sadd.s32 0, 1
        %s1482 = smul.u32 %s1481, 3
        %s1483 = smul.addr %s1482, 4
        %s1484 = scalar_lea.vmem [#allocation2], %s1483
        %v1485 = vld [vmem:[%s1484] sm:$0xf]
        %v1486 = vld [vmem:[%s1484 + $0x4] sm:$0xf]
        %v1487 = vld [vmem:[%s1484 + $0xc] sm:$0xf]
        %v1488 = vld [vmem:[%s1484 + $0x10] sm:$0xf]
        %v1489 = vld [vmem:[%s1484 + $0x18] sm:$0xf]
        %v1490 = vld [vmem:[%s1484 + $0x1c] sm:$0xf]
        %v1491 = vld [vmem:[%s1484 + $0x24] sm:$0xf]
        %v1492 = vld [vmem:[%s1484 + $0x28] sm:$0xf]
        %v1493 = vld [vmem:[%s1484 + $0x30] sm:$0xf]
        %v1494 = vld [vmem:[%s1484 + $0x34] sm:$0xf]
        %v1495 = vld [vmem:[%s1484 + $0x3c] sm:$0xf]
        %v1496 = vld [vmem:[%s1484 + $0x40] sm:$0xf]
        %v1497 = vld [vmem:[%s1484 + $0x48] sm:$0xf]
        %v1498 = vld [vmem:[%s1484 + $0x4c] sm:$0xf]
        %v1499 = vld [vmem:[%s1484 + $0x54] sm:$0xf]
        %v1500 = vld [vmem:[%s1484 + $0x58] sm:$0xf]
        %v1501 = vld [vmem:[%s1484 + $0x60] sm:$0xf]
        %v1502 = vld [vmem:[%s1484 + $0x64] sm:$0xf]
        %v1503 = vld [vmem:[%s1484 + $0x6c] sm:$0xf]
        %v1504 = vld [vmem:[%s1484 + $0x70] sm:$0xf]
        %v1505 = vld [vmem:[%s1484 + $0x78] sm:$0xf]
        %v1506 = vld [vmem:[%s1484 + $0x7c] sm:$0xf]
        %v1507 = vld [vmem:[%s1484 + $0x84] sm:$0xf]
        %v1508 = vld [vmem:[%s1484 + $0x88] sm:$0xf]
        %v1509 = vld [vmem:[%s1484 + $0x90] sm:$0xf]
        %v1510 = vld [vmem:[%s1484 + $0x94] sm:$0xf]
        %v1511 = vld [vmem:[%s1484 + $0x9c] sm:$0xf]
        %v1512 = vld [vmem:[%s1484 + $0xa0] sm:$0xf]
        %v1513 = vld [vmem:[%s1484 + $0xa8] sm:$0xf]
        %v1514 = vld [vmem:[%s1484 + $0xac] sm:$0xf]
        %v1515 = vld [vmem:[%s1484 + $0xb4] sm:$0xf]
        %v1516 = vld [vmem:[%s1484 + $0xb8] sm:$0xf]
        %v1517 = vld [vmem:[%s1484 + $0x8] sm:$0x1]
        %v1518 = vld [vmem:[%s1484 + $0x14] sm:$0x1]
        %v1519 = vld [vmem:[%s1484 + $0x20] sm:$0x1]
        %v1520 = vld [vmem:[%s1484 + $0x2c] sm:$0x1]
        %v1521 = vld [vmem:[%s1484 + $0x38] sm:$0x1]
        %v1522 = vld [vmem:[%s1484 + $0x44] sm:$0x1]
        %v1523 = vld [vmem:[%s1484 + $0x50] sm:$0x1]
        %v1524 = vld [vmem:[%s1484 + $0x5c] sm:$0x1]
        %v1525 = vld [vmem:[%s1484 + $0x68] sm:$0x1]
        %v1526 = vld [vmem:[%s1484 + $0x74] sm:$0x1]
        %v1527 = vld [vmem:[%s1484 + $0x80] sm:$0x1]
        %v1528 = vld [vmem:[%s1484 + $0x8c] sm:$0x1]
        %v1529 = vld [vmem:[%s1484 + $0x98] sm:$0x1]
        %v1530 = vld [vmem:[%s1484 + $0xa4] sm:$0x1]
        %v1531 = vld [vmem:[%s1484 + $0xb0] sm:$0x1]
        %v1532 = vld [vmem:[%s1484 + $0xbc] sm:$0x1]
        %v1533 = vld [vmem:[%s1484] sm:$0xe]
        %v1534 = vld [vmem:[%s1484 + $0xc] sm:$0xe]
        %v1535 = vld [vmem:[%s1484 + $0x18] sm:$0xe]
        %v1536 = vld [vmem:[%s1484 + $0x24] sm:$0xe]
        %v1537 = vld [vmem:[%s1484 + $0x30] sm:$0xe]
        %v1538 = vld [vmem:[%s1484 + $0x3c] sm:$0xe]
        %v1539 = vld [vmem:[%s1484 + $0x48] sm:$0xe]
        %v1540 = vld [vmem:[%s1484 + $0x54] sm:$0xe]
        %v1541 = vld [vmem:[%s1484 + $0x60] sm:$0xe]
        %v1542 = vld [vmem:[%s1484 + $0x6c] sm:$0xe]
        %v1543 = vld [vmem:[%s1484 + $0x78] sm:$0xe]
        %v1544 = vld [vmem:[%s1484 + $0x84] sm:$0xe]
        %v1545 = vld [vmem:[%s1484 + $0x90] sm:$0xe]
        %v1546 = vld [vmem:[%s1484 + $0x9c] sm:$0xe]
        %v1547 = vld [vmem:[%s1484 + $0xa8] sm:$0xe]
        %v1548 = vld [vmem:[%s1484 + $0xb4] sm:$0xe]
        %s1549 = sadd.s32 0, 2
        %s1550 = smul.u32 %s1549, 3
        %s1551 = smul.addr %s1550, 4
        %s1552 = scalar_lea.vmem [#allocation2], %s1551
        %v1553 = vld [vmem:[%s1552] sm:$0xf]
        %v1554 = vld [vmem:[%s1552 + $0x4] sm:$0xf]
        %v1555 = vld [vmem:[%s1552 + $0xc] sm:$0xf]
        %v1556 = vld [vmem:[%s1552 + $0x10] sm:$0xf]
        %v1557 = vld [vmem:[%s1552 + $0x18] sm:$0xf]
        %v1558 = vld [vmem:[%s1552 + $0x1c] sm:$0xf]
        %v1559 = vld [vmem:[%s1552 + $0x24] sm:$0xf]
        %v1560 = vld [vmem:[%s1552 + $0x28] sm:$0xf]
        %v1561 = vld [vmem:[%s1552 + $0x30] sm:$0xf]
        %v1562 = vld [vmem:[%s1552 + $0x34] sm:$0xf]
        %v1563 = vld [vmem:[%s1552 + $0x3c] sm:$0xf]
        %v1564 = vld [vmem:[%s1552 + $0x40] sm:$0xf]
        %v1565 = vld [vmem:[%s1552 + $0x48] sm:$0xf]
        %v1566 = vld [vmem:[%s1552 + $0x4c] sm:$0xf]
        %v1567 = vld [vmem:[%s1552 + $0x54] sm:$0xf]
        %v1568 = vld [vmem:[%s1552 + $0x58] sm:$0xf]
        %v1569 = vld [vmem:[%s1552 + $0x60] sm:$0xf]
        %v1570 = vld [vmem:[%s1552 + $0x64] sm:$0xf]
        %v1571 = vld [vmem:[%s1552 + $0x6c] sm:$0xf]
        %v1572 = vld [vmem:[%s1552 + $0x70] sm:$0xf]
        %v1573 = vld [vmem:[%s1552 + $0x78] sm:$0xf]
        %v1574 = vld [vmem:[%s1552 + $0x7c] sm:$0xf]
        %v1575 = vld [vmem:[%s1552 + $0x84] sm:$0xf]
        %v1576 = vld [vmem:[%s1552 + $0x88] sm:$0xf]
        %v1577 = vld [vmem:[%s1552 + $0x90] sm:$0xf]
        %v1578 = vld [vmem:[%s1552 + $0x94] sm:$0xf]
        %v1579 = vld [vmem:[%s1552 + $0x9c] sm:$0xf]
        %v1580 = vld [vmem:[%s1552 + $0xa0] sm:$0xf]
        %v1581 = vld [vmem:[%s1552 + $0xa8] sm:$0xf]
        %v1582 = vld [vmem:[%s1552 + $0xac] sm:$0xf]
        %v1583 = vld [vmem:[%s1552 + $0xb4] sm:$0xf]
        %v1584 = vld [vmem:[%s1552 + $0xb8] sm:$0xf]
        %v1585 = vld [vmem:[%s1552 + $0x8] sm:$0x1]
        %v1586 = vld [vmem:[%s1552 + $0x14] sm:$0x1]
        %v1587 = vld [vmem:[%s1552 + $0x20] sm:$0x1]
        %v1588 = vld [vmem:[%s1552 + $0x2c] sm:$0x1]
        %v1589 = vld [vmem:[%s1552 + $0x38] sm:$0x1]
        %v1590 = vld [vmem:[%s1552 + $0x44] sm:$0x1]
        %v1591 = vld [vmem:[%s1552 + $0x50] sm:$0x1]
        %v1592 = vld [vmem:[%s1552 + $0x5c] sm:$0x1]
        %v1593 = vld [vmem:[%s1552 + $0x68] sm:$0x1]
        %v1594 = vld [vmem:[%s1552 + $0x74] sm:$0x1]
        %v1595 = vld [vmem:[%s1552 + $0x80] sm:$0x1]
        %v1596 = vld [vmem:[%s1552 + $0x8c] sm:$0x1]
        %v1597 = vld [vmem:[%s1552 + $0x98] sm:$0x1]
        %v1598 = vld [vmem:[%s1552 + $0xa4] sm:$0x1]
        %v1599 = vld [vmem:[%s1552 + $0xb0] sm:$0x1]
        %v1600 = vld [vmem:[%s1552 + $0xbc] sm:$0x1]
        %v1601 = vld [vmem:[%s1552] sm:$0xe]
        %v1602 = vld [vmem:[%s1552 + $0xc] sm:$0xe]
        %v1603 = vld [vmem:[%s1552 + $0x18] sm:$0xe]
        %v1604 = vld [vmem:[%s1552 + $0x24] sm:$0xe]
        %v1605 = vld [vmem:[%s1552 + $0x30] sm:$0xe]
        %v1606 = vld [vmem:[%s1552 + $0x3c] sm:$0xe]
        %v1607 = vld [vmem:[%s1552 + $0x48] sm:$0xe]
        %v1608 = vld [vmem:[%s1552 + $0x54] sm:$0xe]
        %v1609 = vld [vmem:[%s1552 + $0x60] sm:$0xe]
        %v1610 = vld [vmem:[%s1552 + $0x6c] sm:$0xe]
        %v1611 = vld [vmem:[%s1552 + $0x78] sm:$0xe]
        %v1612 = vld [vmem:[%s1552 + $0x84] sm:$0xe]
        %v1613 = vld [vmem:[%s1552 + $0x90] sm:$0xe]
        %v1614 = vld [vmem:[%s1552 + $0x9c] sm:$0xe]
        %v1615 = vld [vmem:[%s1552 + $0xa8] sm:$0xe]
        %v1616 = vld [vmem:[%s1552 + $0xb4] sm:$0xe]
        %v1649 = vunpack.c.l.b16 %v1417
        %v1650 = vunpack.c.l.b16 %v1418
        %v1651 = vunpack.c.l.b16 %v1419
        %v1652 = vunpack.c.l.b16 %v1420
        %v1653 = vunpack.c.l.b16 %v1421
        %v1654 = vunpack.c.l.b16 %v1422
        %v1655 = vunpack.c.l.b16 %v1423
        %v1656 = vunpack.c.l.b16 %v1424
        %v1657 = vunpack.c.l.b16 %v1425
        %v1658 = vunpack.c.l.b16 %v1426
        %v1659 = vunpack.c.l.b16 %v1427
        %v1660 = vunpack.c.l.b16 %v1428
        %v1661 = vunpack.c.l.b16 %v1429
        %v1662 = vunpack.c.l.b16 %v1430
        %v1663 = vunpack.c.l.b16 %v1431
        %v1664 = vunpack.c.l.b16 %v1432
        %v1665 = vunpack.c.l.b16 %v1433
        %v1666 = vunpack.c.l.b16 %v1434
        %v1667 = vunpack.c.l.b16 %v1435
        %v1668 = vunpack.c.l.b16 %v1436
        %v1669 = vunpack.c.l.b16 %v1437
        %v1670 = vunpack.c.l.b16 %v1438
        %v1671 = vunpack.c.l.b16 %v1439
        %v1672 = vunpack.c.l.b16 %v1440
        %v1673 = vunpack.c.l.b16 %v1441
        %v1674 = vunpack.c.l.b16 %v1442
        %v1675 = vunpack.c.l.b16 %v1443
        %v1676 = vunpack.c.l.b16 %v1444
        %v1677 = vunpack.c.l.b16 %v1445
        %v1678 = vunpack.c.l.b16 %v1446
        %v1679 = vunpack.c.l.b16 %v1447
        %v1680 = vunpack.c.l.b16 %v1448
        %v1681 = vpack.c.b16 %v1650, %v1649
        %v1682 = vpack.c.b16 %v1652, %v1651
        %v1683 = vpack.c.b16 %v1654, %v1653
        %v1684 = vpack.c.b16 %v1656, %v1655
        %v1685 = vpack.c.b16 %v1658, %v1657
        %v1686 = vpack.c.b16 %v1660, %v1659
        %v1687 = vpack.c.b16 %v1662, %v1661
        %v1688 = vpack.c.b16 %v1664, %v1663
        %v1689 = vpack.c.b16 %v1666, %v1665
        %v1690 = vpack.c.b16 %v1668, %v1667
        %v1691 = vpack.c.b16 %v1670, %v1669
        %v1692 = vpack.c.b16 %v1672, %v1671
        %v1693 = vpack.c.b16 %v1674, %v1673
        %v1694 = vpack.c.b16 %v1676, %v1675
        %v1695 = vpack.c.b16 %v1678, %v1677
        %v1696 = vpack.c.b16 %v1680, %v1679
        %v1729 = vunpack.c.l.b16 %v1449
        %v1730 = vunpack.c.l.b16 %v1450
        %v1731 = vunpack.c.l.b16 %v1451
        %v1732 = vunpack.c.l.b16 %v1452
        %v1733 = vunpack.c.l.b16 %v1453
        %v1734 = vunpack.c.l.b16 %v1454
        %v1735 = vunpack.c.l.b16 %v1455
        %v1736 = vunpack.c.l.b16 %v1456
        %v1737 = vunpack.c.l.b16 %v1457
        %v1738 = vunpack.c.l.b16 %v1458
        %v1739 = vunpack.c.l.b16 %v1459
        %v1740 = vunpack.c.l.b16 %v1460
        %v1741 = vunpack.c.l.b16 %v1461
        %v1742 = vunpack.c.l.b16 %v1462
        %v1743 = vunpack.c.l.b16 %v1463
        %v1744 = vunpack.c.l.b16 %v1464
        %v1745 = vpack.c.b16 %v1729, %v1729
        %v1746 = vpack.c.b16 %v1730, %v1730
        %v1747 = vpack.c.b16 %v1731, %v1731
        %v1748 = vpack.c.b16 %v1732, %v1732
        %v1749 = vpack.c.b16 %v1733, %v1733
        %v1750 = vpack.c.b16 %v1734, %v1734
        %v1751 = vpack.c.b16 %v1735, %v1735
        %v1752 = vpack.c.b16 %v1736, %v1736
        %v1753 = vpack.c.b16 %v1737, %v1737
        %v1754 = vpack.c.b16 %v1738, %v1738
        %v1755 = vpack.c.b16 %v1739, %v1739
        %v1756 = vpack.c.b16 %v1740, %v1740
        %v1757 = vpack.c.b16 %v1741, %v1741
        %v1758 = vpack.c.b16 %v1742, %v1742
        %v1759 = vpack.c.b16 %v1743, %v1743
        %v1760 = vpack.c.b16 %v1744, %v1744
        %vm1761 = vsmask.f32 7424
        %v1763 = vshrl.u32 %v1681, 16
        %v1765 = vshll.u32 %v1681, 16
        %v1767 = vrot.slane %v1765, 1
        %v1768 = vor.u32 %v1763, %v1767
        %v1770 = vshll.u32 %v1745, 16
        %v1772 = vrot.slane %v1770, 1
        %v1773 = vsel %vm1761, %v1768, %v1772
        %v1775 = vshrl.u32 %v1682, 16
        %v1777 = vshll.u32 %v1682, 16
        %v1779 = vrot.slane %v1777, 1
        %v1780 = vor.u32 %v1775, %v1779
        %v1782 = vshll.u32 %v1746, 16
        %v1784 = vrot.slane %v1782, 1
        %v1785 = vsel %vm1761, %v1780, %v1784
        %v1787 = vshrl.u32 %v1683, 16
        %v1789 = vshll.u32 %v1683, 16
        %v1791 = vrot.slane %v1789, 1
        %v1792 = vor.u32 %v1787, %v1791
        %v1794 = vshll.u32 %v1747, 16
        %v1796 = vrot.slane %v1794, 1
        %v1797 = vsel %vm1761, %v1792, %v1796
        %v1799 = vshrl.u32 %v1684, 16
        %v1801 = vshll.u32 %v1684, 16
        %v1803 = vrot.slane %v1801, 1
        %v1804 = vor.u32 %v1799, %v1803
        %v1806 = vshll.u32 %v1748, 16
        %v1808 = vrot.slane %v1806, 1
        %v1809 = vsel %vm1761, %v1804, %v1808
        %v1811 = vshrl.u32 %v1685, 16
        %v1813 = vshll.u32 %v1685, 16
        %v1815 = vrot.slane %v1813, 1
        %v1816 = vor.u32 %v1811, %v1815
        %v1818 = vshll.u32 %v1749, 16
        %v1820 = vrot.slane %v1818, 1
        %v1821 = vsel %vm1761, %v1816, %v1820
        %v1823 = vshrl.u32 %v1686, 16
        %v1825 = vshll.u32 %v1686, 16
        %v1827 = vrot.slane %v1825, 1
        %v1828 = vor.u32 %v1823, %v1827
        %v1830 = vshll.u32 %v1750, 16
        %v1832 = vrot.slane %v1830, 1
        %v1833 = vsel %vm1761, %v1828, %v1832
        %v1835 = vshrl.u32 %v1687, 16
        %v1837 = vshll.u32 %v1687, 16
        %v1839 = vrot.slane %v1837, 1
        %v1840 = vor.u32 %v1835, %v1839
        %v1842 = vshll.u32 %v1751, 16
        %v1844 = vrot.slane %v1842, 1
        %v1845 = vsel %vm1761, %v1840, %v1844
        %v1847 = vshrl.u32 %v1688, 16
        %v1849 = vshll.u32 %v1688, 16
        %v1851 = vrot.slane %v1849, 1
        %v1852 = vor.u32 %v1847, %v1851
        %v1854 = vshll.u32 %v1752, 16
        %v1856 = vrot.slane %v1854, 1
        %v1857 = vsel %vm1761, %v1852, %v1856
        %v1859 = vshrl.u32 %v1689, 16
        %v1861 = vshll.u32 %v1689, 16
        %v1863 = vrot.slane %v1861, 1
        %v1864 = vor.u32 %v1859, %v1863
        %v1866 = vshll.u32 %v1753, 16
        %v1868 = vrot.slane %v1866, 1
        %v1869 = vsel %vm1761, %v1864, %v1868
        %v1871 = vshrl.u32 %v1690, 16
        %v1873 = vshll.u32 %v1690, 16
        %v1875 = vrot.slane %v1873, 1
        %v1876 = vor.u32 %v1871, %v1875
        %v1878 = vshll.u32 %v1754, 16
        %v1880 = vrot.slane %v1878, 1
        %v1881 = vsel %vm1761, %v1876, %v1880
        %v1883 = vshrl.u32 %v1691, 16
        %v1885 = vshll.u32 %v1691, 16
        %v1887 = vrot.slane %v1885, 1
        %v1888 = vor.u32 %v1883, %v1887
        %v1890 = vshll.u32 %v1755, 16
        %v1892 = vrot.slane %v1890, 1
        %v1893 = vsel %vm1761, %v1888, %v1892
        %v1895 = vshrl.u32 %v1692, 16
        %v1897 = vshll.u32 %v1692, 16
        %v1899 = vrot.slane %v1897, 1
        %v1900 = vor.u32 %v1895, %v1899
        %v1902 = vshll.u32 %v1756, 16
        %v1904 = vrot.slane %v1902, 1
        %v1905 = vsel %vm1761, %v1900, %v1904
        %v1907 = vshrl.u32 %v1693, 16
        %v1909 = vshll.u32 %v1693, 16
        %v1911 = vrot.slane %v1909, 1
        %v1912 = vor.u32 %v1907, %v1911
        %v1914 = vshll.u32 %v1757, 16
        %v1916 = vrot.slane %v1914, 1
        %v1917 = vsel %vm1761, %v1912, %v1916
        %v1919 = vshrl.u32 %v1694, 16
        %v1921 = vshll.u32 %v1694, 16
        %v1923 = vrot.slane %v1921, 1
        %v1924 = vor.u32 %v1919, %v1923
        %v1926 = vshll.u32 %v1758, 16
        %v1928 = vrot.slane %v1926, 1
        %v1929 = vsel %vm1761, %v1924, %v1928
        %v1931 = vshrl.u32 %v1695, 16
        %v1933 = vshll.u32 %v1695, 16
        %v1935 = vrot.slane %v1933, 1
        %v1936 = vor.u32 %v1931, %v1935
        %v1938 = vshll.u32 %v1759, 16
        %v1940 = vrot.slane %v1938, 1
        %v1941 = vsel %vm1761, %v1936, %v1940
        %v1943 = vshrl.u32 %v1696, 16
        %v1945 = vshll.u32 %v1696, 16
        %v1947 = vrot.slane %v1945, 1
        %v1948 = vor.u32 %v1943, %v1947
        %v1950 = vshll.u32 %v1760, 16
        %v1952 = vrot.slane %v1950, 1
        %v1953 = vsel %vm1761, %v1948, %v1952
        %v1986 = vunpack.c.l.b16 %v1465
        %v1987 = vunpack.c.l.b16 %v1466
        %v1988 = vunpack.c.l.b16 %v1467
        %v1989 = vunpack.c.l.b16 %v1468
        %v1990 = vunpack.c.l.b16 %v1469
        %v1991 = vunpack.c.l.b16 %v1470
        %v1992 = vunpack.c.l.b16 %v1471
        %v1993 = vunpack.c.l.b16 %v1472
        %v1994 = vunpack.c.l.b16 %v1473
        %v1995 = vunpack.c.l.b16 %v1474
        %v1996 = vunpack.c.l.b16 %v1475
        %v1997 = vunpack.c.l.b16 %v1476
        %v1998 = vunpack.c.l.b16 %v1477
        %v1999 = vunpack.c.l.b16 %v1478
        %v2000 = vunpack.c.l.b16 %v1479
        %v2001 = vunpack.c.l.b16 %v1480
        %v2002 = vpack.c.b16 %v1650, %v1986
        %v2003 = vpack.c.b16 %v1652, %v1987
        %v2004 = vpack.c.b16 %v1654, %v1988
        %v2005 = vpack.c.b16 %v1656, %v1989
        %v2006 = vpack.c.b16 %v1658, %v1990
        %v2007 = vpack.c.b16 %v1660, %v1991
        %v2008 = vpack.c.b16 %v1662, %v1992
        %v2009 = vpack.c.b16 %v1664, %v1993
        %v2010 = vpack.c.b16 %v1666, %v1994
        %v2011 = vpack.c.b16 %v1668, %v1995
        %v2012 = vpack.c.b16 %v1670, %v1996
        %v2013 = vpack.c.b16 %v1672, %v1997
        %v2014 = vpack.c.b16 %v1674, %v1998
        %v2015 = vpack.c.b16 %v1676, %v1999
        %v2016 = vpack.c.b16 %v1678, %v2000
        %v2017 = vpack.c.b16 %v1680, %v2001
        %vm2018 = vcmask 1046528
        %v2019 = vrot.slane %v2002, 1
        %v2020 = vrot.slane %v1745, 1
        %v2021 = vsel %vm2018, %v2019, %v2020
        %v2022 = vrot.slane %v2003, 1
        %v2023 = vrot.slane %v1746, 1
        %v2024 = vsel %vm2018, %v2022, %v2023
        %v2025 = vrot.slane %v2004, 1
        %v2026 = vrot.slane %v1747, 1
        %v2027 = vsel %vm2018, %v2025, %v2026
        %v2028 = vrot.slane %v2005, 1
        %v2029 = vrot.slane %v1748, 1
        %v2030 = vsel %vm2018, %v2028, %v2029
        %v2031 = vrot.slane %v2006, 1
        %v2032 = vrot.slane %v1749, 1
        %v2033 = vsel %vm2018, %v2031, %v2032
        %v2034 = vrot.slane %v2007, 1
        %v2035 = vrot.slane %v1750, 1
        %v2036 = vsel %vm2018, %v2034, %v2035
        %v2037 = vrot.slane %v2008, 1
        %v2038 = vrot.slane %v1751, 1
        %v2039 = vsel %vm2018, %v2037, %v2038
        %v2040 = vrot.slane %v2009, 1
        %v2041 = vrot.slane %v1752, 1
        %v2042 = vsel %vm2018, %v2040, %v2041
        %v2043 = vrot.slane %v2010, 1
        %v2044 = vrot.slane %v1753, 1
        %v2045 = vsel %vm2018, %v2043, %v2044
        %v2046 = vrot.slane %v2011, 1
        %v2047 = vrot.slane %v1754, 1
        %v2048 = vsel %vm2018, %v2046, %v2047
        %v2049 = vrot.slane %v2012, 1
        %v2050 = vrot.slane %v1755, 1
        %v2051 = vsel %vm2018, %v2049, %v2050
        %v2052 = vrot.slane %v2013, 1
        %v2053 = vrot.slane %v1756, 1
        %v2054 = vsel %vm2018, %v2052, %v2053
        %v2055 = vrot.slane %v2014, 1
        %v2056 = vrot.slane %v1757, 1
        %v2057 = vsel %vm2018, %v2055, %v2056
        %v2058 = vrot.slane %v2015, 1
        %v2059 = vrot.slane %v1758, 1
        %v2060 = vsel %vm2018, %v2058, %v2059
        %v2061 = vrot.slane %v2016, 1
        %v2062 = vrot.slane %v1759, 1
        %v2063 = vsel %vm2018, %v2061, %v2062
        %v2064 = vrot.slane %v2017, 1
        %v2065 = vrot.slane %v1760, 1
        %v2066 = vsel %vm2018, %v2064, %v2065
        %v2115 = vunpack.c.l.b16 %v1485
        %v2116 = vunpack.c.l.b16 %v1486
        %v2117 = vunpack.c.l.b16 %v1487
        %v2118 = vunpack.c.l.b16 %v1488
        %v2119 = vunpack.c.l.b16 %v1489
        %v2120 = vunpack.c.l.b16 %v1490
        %v2121 = vunpack.c.l.b16 %v1491
        %v2122 = vunpack.c.l.b16 %v1492
        %v2123 = vunpack.c.l.b16 %v1493
        %v2124 = vunpack.c.l.b16 %v1494
        %v2125 = vunpack.c.l.b16 %v1495
        %v2126 = vunpack.c.l.b16 %v1496
        %v2127 = vunpack.c.l.b16 %v1497
        %v2128 = vunpack.c.l.b16 %v1498
        %v2129 = vunpack.c.l.b16 %v1499
        %v2130 = vunpack.c.l.b16 %v1500
        %v2131 = vunpack.c.l.b16 %v1501
        %v2132 = vunpack.c.l.b16 %v1502
        %v2133 = vunpack.c.l.b16 %v1503
        %v2134 = vunpack.c.l.b16 %v1504
        %v2135 = vunpack.c.l.b16 %v1505
        %v2136 = vunpack.c.l.b16 %v1506
        %v2137 = vunpack.c.l.b16 %v1507
        %v2138 = vunpack.c.l.b16 %v1508
        %v2139 = vunpack.c.l.b16 %v1509
        %v2140 = vunpack.c.l.b16 %v1510
        %v2141 = vunpack.c.l.b16 %v1511
        %v2142 = vunpack.c.l.b16 %v1512
        %v2143 = vunpack.c.l.b16 %v1513
        %v2144 = vunpack.c.l.b16 %v1514
        %v2145 = vunpack.c.l.b16 %v1515
        %v2146 = vunpack.c.l.b16 %v1516
        %v2147 = vpack.c.b16 %v2116, %v2115
        %v2148 = vpack.c.b16 %v2118, %v2117
        %v2149 = vpack.c.b16 %v2120, %v2119
        %v2150 = vpack.c.b16 %v2122, %v2121
        %v2151 = vpack.c.b16 %v2124, %v2123
        %v2152 = vpack.c.b16 %v2126, %v2125
        %v2153 = vpack.c.b16 %v2128, %v2127
        %v2154 = vpack.c.b16 %v2130, %v2129
        %v2155 = vpack.c.b16 %v2132, %v2131
        %v2156 = vpack.c.b16 %v2134, %v2133
        %v2157 = vpack.c.b16 %v2136, %v2135
        %v2158 = vpack.c.b16 %v2138, %v2137
        %v2159 = vpack.c.b16 %v2140, %v2139
        %v2160 = vpack.c.b16 %v2142, %v2141
        %v2161 = vpack.c.b16 %v2144, %v2143
        %v2162 = vpack.c.b16 %v2146, %v2145
        %v2195 = vunpack.c.l.b16 %v1517
        %v2196 = vunpack.c.l.b16 %v1518
        %v2197 = vunpack.c.l.b16 %v1519
        %v2198 = vunpack.c.l.b16 %v1520
        %v2199 = vunpack.c.l.b16 %v1521
        %v2200 = vunpack.c.l.b16 %v1522
        %v2201 = vunpack.c.l.b16 %v1523
        %v2202 = vunpack.c.l.b16 %v1524
        %v2203 = vunpack.c.l.b16 %v1525
        %v2204 = vunpack.c.l.b16 %v1526
        %v2205 = vunpack.c.l.b16 %v1527
        %v2206 = vunpack.c.l.b16 %v1528
        %v2207 = vunpack.c.l.b16 %v1529
        %v2208 = vunpack.c.l.b16 %v1530
        %v2209 = vunpack.c.l.b16 %v1531
        %v2210 = vunpack.c.l.b16 %v1532
        %v2211 = vpack.c.b16 %v2195, %v2195
        %v2212 = vpack.c.b16 %v2196, %v2196
        %v2213 = vpack.c.b16 %v2197, %v2197
        %v2214 = vpack.c.b16 %v2198, %v2198
        %v2215 = vpack.c.b16 %v2199, %v2199
        %v2216 = vpack.c.b16 %v2200, %v2200
        %v2217 = vpack.c.b16 %v2201, %v2201
        %v2218 = vpack.c.b16 %v2202, %v2202
        %v2219 = vpack.c.b16 %v2203, %v2203
        %v2220 = vpack.c.b16 %v2204, %v2204
        %v2221 = vpack.c.b16 %v2205, %v2205
        %v2222 = vpack.c.b16 %v2206, %v2206
        %v2223 = vpack.c.b16 %v2207, %v2207
        %v2224 = vpack.c.b16 %v2208, %v2208
        %v2225 = vpack.c.b16 %v2209, %v2209
        %v2226 = vpack.c.b16 %v2210, %v2210
        %v2228 = vshrl.u32 %v2147, 16
        %v2230 = vshll.u32 %v2147, 16
        %v2232 = vrot.slane %v2230, 1
        %v2233 = vor.u32 %v2228, %v2232
        %v2235 = vshll.u32 %v2211, 16
        %v2237 = vrot.slane %v2235, 1
        %v2238 = vsel %vm1761, %v2233, %v2237
        %v2240 = vshrl.u32 %v2148, 16
        %v2242 = vshll.u32 %v2148, 16
        %v2244 = vrot.slane %v2242, 1
        %v2245 = vor.u32 %v2240, %v2244
        %v2247 = vshll.u32 %v2212, 16
        %v2249 = vrot.slane %v2247, 1
        %v2250 = vsel %vm1761, %v2245, %v2249
        %v2252 = vshrl.u32 %v2149, 16
        %v2254 = vshll.u32 %v2149, 16
        %v2256 = vrot.slane %v2254, 1
        %v2257 = vor.u32 %v2252, %v2256
        %v2259 = vshll.u32 %v2213, 16
        %v2261 = vrot.slane %v2259, 1
        %v2262 = vsel %vm1761, %v2257, %v2261
        %v2264 = vshrl.u32 %v2150, 16
        %v2266 = vshll.u32 %v2150, 16
        %v2268 = vrot.slane %v2266, 1
        %v2269 = vor.u32 %v2264, %v2268
        %v2271 = vshll.u32 %v2214, 16
        %v2273 = vrot.slane %v2271, 1
        %v2274 = vsel %vm1761, %v2269, %v2273
        %v2276 = vshrl.u32 %v2151, 16
        %v2278 = vshll.u32 %v2151, 16
        %v2280 = vrot.slane %v2278, 1
        %v2281 = vor.u32 %v2276, %v2280
        %v2283 = vshll.u32 %v2215, 16
        %v2285 = vrot.slane %v2283, 1
        %v2286 = vsel %vm1761, %v2281, %v2285
        %v2288 = vshrl.u32 %v2152, 16
        %v2290 = vshll.u32 %v2152, 16
        %v2292 = vrot.slane %v2290, 1
        %v2293 = vor.u32 %v2288, %v2292
        %v2295 = vshll.u32 %v2216, 16
        %v2297 = vrot.slane %v2295, 1
        %v2298 = vsel %vm1761, %v2293, %v2297
        %v2300 = vshrl.u32 %v2153, 16
        %v2302 = vshll.u32 %v2153, 16
        %v2304 = vrot.slane %v2302, 1
        %v2305 = vor.u32 %v2300, %v2304
        %v2307 = vshll.u32 %v2217, 16
        %v2309 = vrot.slane %v2307, 1
        %v2310 = vsel %vm1761, %v2305, %v2309
        %v2312 = vshrl.u32 %v2154, 16
        %v2314 = vshll.u32 %v2154, 16
        %v2316 = vrot.slane %v2314, 1
        %v2317 = vor.u32 %v2312, %v2316
        %v2319 = vshll.u32 %v2218, 16
        %v2321 = vrot.slane %v2319, 1
        %v2322 = vsel %vm1761, %v2317, %v2321
        %v2324 = vshrl.u32 %v2155, 16
        %v2326 = vshll.u32 %v2155, 16
        %v2328 = vrot.slane %v2326, 1
        %v2329 = vor.u32 %v2324, %v2328
        %v2331 = vshll.u32 %v2219, 16
        %v2333 = vrot.slane %v2331, 1
        %v2334 = vsel %vm1761, %v2329, %v2333
        %v2336 = vshrl.u32 %v2156, 16
        %v2338 = vshll.u32 %v2156, 16
        %v2340 = vrot.slane %v2338, 1
        %v2341 = vor.u32 %v2336, %v2340
        %v2343 = vshll.u32 %v2220, 16
        %v2345 = vrot.slane %v2343, 1
        %v2346 = vsel %vm1761, %v2341, %v2345
        %v2348 = vshrl.u32 %v2157, 16
        %v2350 = vshll.u32 %v2157, 16
        %v2352 = vrot.slane %v2350, 1
        %v2353 = vor.u32 %v2348, %v2352
        %v2355 = vshll.u32 %v2221, 16
        %v2357 = vrot.slane %v2355, 1
        %v2358 = vsel %vm1761, %v2353, %v2357
        %v2360 = vshrl.u32 %v2158, 16
        %v2362 = vshll.u32 %v2158, 16
        %v2364 = vrot.slane %v2362, 1
        %v2365 = vor.u32 %v2360, %v2364
        %v2367 = vshll.u32 %v2222, 16
        %v2369 = vrot.slane %v2367, 1
        %v2370 = vsel %vm1761, %v2365, %v2369
        %v2372 = vshrl.u32 %v2159, 16
        %v2374 = vshll.u32 %v2159, 16
        %v2376 = vrot.slane %v2374, 1
        %v2377 = vor.u32 %v2372, %v2376
        %v2379 = vshll.u32 %v2223, 16
        %v2381 = vrot.slane %v2379, 1
        %v2382 = vsel %vm1761, %v2377, %v2381
        %v2384 = vshrl.u32 %v2160, 16
        %v2386 = vshll.u32 %v2160, 16
        %v2388 = vrot.slane %v2386, 1
        %v2389 = vor.u32 %v2384, %v2388
        %v2391 = vshll.u32 %v2224, 16
        %v2393 = vrot.slane %v2391, 1
        %v2394 = vsel %vm1761, %v2389, %v2393
        %v2396 = vshrl.u32 %v2161, 16
        %v2398 = vshll.u32 %v2161, 16
        %v2400 = vrot.slane %v2398, 1
        %v2401 = vor.u32 %v2396, %v2400
        %v2403 = vshll.u32 %v2225, 16
        %v2405 = vrot.slane %v2403, 1
        %v2406 = vsel %vm1761, %v2401, %v2405
        %v2408 = vshrl.u32 %v2162, 16
        %v2410 = vshll.u32 %v2162, 16
        %v2412 = vrot.slane %v2410, 1
        %v2413 = vor.u32 %v2408, %v2412
        %v2415 = vshll.u32 %v2226, 16
        %v2417 = vrot.slane %v2415, 1
        %v2418 = vsel %vm1761, %v2413, %v2417
        %v2451 = vunpack.c.l.b16 %v1533
        %v2452 = vunpack.c.l.b16 %v1534
        %v2453 = vunpack.c.l.b16 %v1535
        %v2454 = vunpack.c.l.b16 %v1536
        %v2455 = vunpack.c.l.b16 %v1537
        %v2456 = vunpack.c.l.b16 %v1538
        %v2457 = vunpack.c.l.b16 %v1539
        %v2458 = vunpack.c.l.b16 %v1540
        %v2459 = vunpack.c.l.b16 %v1541
        %v2460 = vunpack.c.l.b16 %v1542
        %v2461 = vunpack.c.l.b16 %v1543
        %v2462 = vunpack.c.l.b16 %v1544
        %v2463 = vunpack.c.l.b16 %v1545
        %v2464 = vunpack.c.l.b16 %v1546
        %v2465 = vunpack.c.l.b16 %v1547
        %v2466 = vunpack.c.l.b16 %v1548
        %v2467 = vpack.c.b16 %v2116, %v2451
        %v2468 = vpack.c.b16 %v2118, %v2452
        %v2469 = vpack.c.b16 %v2120, %v2453
        %v2470 = vpack.c.b16 %v2122, %v2454
        %v2471 = vpack.c.b16 %v2124, %v2455
        %v2472 = vpack.c.b16 %v2126, %v2456
        %v2473 = vpack.c.b16 %v2128, %v2457
        %v2474 = vpack.c.b16 %v2130, %v2458
        %v2475 = vpack.c.b16 %v2132, %v2459
        %v2476 = vpack.c.b16 %v2134, %v2460
        %v2477 = vpack.c.b16 %v2136, %v2461
        %v2478 = vpack.c.b16 %v2138, %v2462
        %v2479 = vpack.c.b16 %v2140, %v2463
        %v2480 = vpack.c.b16 %v2142, %v2464
        %v2481 = vpack.c.b16 %v2144, %v2465
        %v2482 = vpack.c.b16 %v2146, %v2466
        %v2483 = vrot.slane %v2467, 1
        %v2484 = vrot.slane %v2211, 1
        %v2485 = vsel %vm2018, %v2483, %v2484
        %v2486 = vrot.slane %v2468, 1
        %v2487 = vrot.slane %v2212, 1
        %v2488 = vsel %vm2018, %v2486, %v2487
        %v2489 = vrot.slane %v2469, 1
        %v2490 = vrot.slane %v2213, 1
        %v2491 = vsel %vm2018, %v2489, %v2490
        %v2492 = vrot.slane %v2470, 1
        %v2493 = vrot.slane %v2214, 1
        %v2494 = vsel %vm2018, %v2492, %v2493
        %v2495 = vrot.slane %v2471, 1
        %v2496 = vrot.slane %v2215, 1
        %v2497 = vsel %vm2018, %v2495, %v2496
        %v2498 = vrot.slane %v2472, 1
        %v2499 = vrot.slane %v2216, 1
        %v2500 = vsel %vm2018, %v2498, %v2499
        %v2501 = vrot.slane %v2473, 1
        %v2502 = vrot.slane %v2217, 1
        %v2503 = vsel %vm2018, %v2501, %v2502
        %v2504 = vrot.slane %v2474, 1
        %v2505 = vrot.slane %v2218, 1
        %v2506 = vsel %vm2018, %v2504, %v2505
        %v2507 = vrot.slane %v2475, 1
        %v2508 = vrot.slane %v2219, 1
        %v2509 = vsel %vm2018, %v2507, %v2508
        %v2510 = vrot.slane %v2476, 1
        %v2511 = vrot.slane %v2220, 1
        %v2512 = vsel %vm2018, %v2510, %v2511
        %v2513 = vrot.slane %v2477, 1
        %v2514 = vrot.slane %v2221, 1
        %v2515 = vsel %vm2018, %v2513, %v2514
        %v2516 = vrot.slane %v2478, 1
        %v2517 = vrot.slane %v2222, 1
        %v2518 = vsel %vm2018, %v2516, %v2517
        %v2519 = vrot.slane %v2479, 1
        %v2520 = vrot.slane %v2223, 1
        %v2521 = vsel %vm2018, %v2519, %v2520
        %v2522 = vrot.slane %v2480, 1
        %v2523 = vrot.slane %v2224, 1
        %v2524 = vsel %vm2018, %v2522, %v2523
        %v2525 = vrot.slane %v2481, 1
        %v2526 = vrot.slane %v2225, 1
        %v2527 = vsel %vm2018, %v2525, %v2526
        %v2528 = vrot.slane %v2482, 1
        %v2529 = vrot.slane %v2226, 1
        %v2530 = vsel %vm2018, %v2528, %v2529
        %v2579 = vunpack.c.l.b16 %v1553
        %v2580 = vunpack.c.l.b16 %v1554
        %v2581 = vunpack.c.l.b16 %v1555
        %v2582 = vunpack.c.l.b16 %v1556
        %v2583 = vunpack.c.l.b16 %v1557
        %v2584 = vunpack.c.l.b16 %v1558
        %v2585 = vunpack.c.l.b16 %v1559
        %v2586 = vunpack.c.l.b16 %v1560
        %v2587 = vunpack.c.l.b16 %v1561
        %v2588 = vunpack.c.l.b16 %v1562
        %v2589 = vunpack.c.l.b16 %v1563
        %v2590 = vunpack.c.l.b16 %v1564
        %v2591 = vunpack.c.l.b16 %v1565
        %v2592 = vunpack.c.l.b16 %v1566
        %v2593 = vunpack.c.l.b16 %v1567
        %v2594 = vunpack.c.l.b16 %v1568
        %v2595 = vunpack.c.l.b16 %v1569
        %v2596 = vunpack.c.l.b16 %v1570
        %v2597 = vunpack.c.l.b16 %v1571
        %v2598 = vunpack.c.l.b16 %v1572
        %v2599 = vunpack.c.l.b16 %v1573
        %v2600 = vunpack.c.l.b16 %v1574
        %v2601 = vunpack.c.l.b16 %v1575
        %v2602 = vunpack.c.l.b16 %v1576
        %v2603 = vunpack.c.l.b16 %v1577
        %v2604 = vunpack.c.l.b16 %v1578
        %v2605 = vunpack.c.l.b16 %v1579
        %v2606 = vunpack.c.l.b16 %v1580
        %v2607 = vunpack.c.l.b16 %v1581
        %v2608 = vunpack.c.l.b16 %v1582
        %v2609 = vunpack.c.l.b16 %v1583
        %v2610 = vunpack.c.l.b16 %v1584
        %v2611 = vpack.c.b16 %v2580, %v2579
        %v2612 = vpack.c.b16 %v2582, %v2581
        %v2613 = vpack.c.b16 %v2584, %v2583
        %v2614 = vpack.c.b16 %v2586, %v2585
        %v2615 = vpack.c.b16 %v2588, %v2587
        %v2616 = vpack.c.b16 %v2590, %v2589
        %v2617 = vpack.c.b16 %v2592, %v2591
        %v2618 = vpack.c.b16 %v2594, %v2593
        %v2619 = vpack.c.b16 %v2596, %v2595
        %v2620 = vpack.c.b16 %v2598, %v2597
        %v2621 = vpack.c.b16 %v2600, %v2599
        %v2622 = vpack.c.b16 %v2602, %v2601
        %v2623 = vpack.c.b16 %v2604, %v2603
        %v2624 = vpack.c.b16 %v2606, %v2605
        %v2625 = vpack.c.b16 %v2608, %v2607
        %v2626 = vpack.c.b16 %v2610, %v2609
        %v2659 = vunpack.c.l.b16 %v1585
        %v2660 = vunpack.c.l.b16 %v1586
        %v2661 = vunpack.c.l.b16 %v1587
        %v2662 = vunpack.c.l.b16 %v1588
        %v2663 = vunpack.c.l.b16 %v1589
        %v2664 = vunpack.c.l.b16 %v1590
        %v2665 = vunpack.c.l.b16 %v1591
        %v2666 = vunpack.c.l.b16 %v1592
        %v2667 = vunpack.c.l.b16 %v1593
        %v2668 = vunpack.c.l.b16 %v1594
        %v2669 = vunpack.c.l.b16 %v1595
        %v2670 = vunpack.c.l.b16 %v1596
        %v2671 = vunpack.c.l.b16 %v1597
        %v2672 = vunpack.c.l.b16 %v1598
        %v2673 = vunpack.c.l.b16 %v1599
        %v2674 = vunpack.c.l.b16 %v1600
        %v2675 = vpack.c.b16 %v2659, %v2659
        %v2676 = vpack.c.b16 %v2660, %v2660
        %v2677 = vpack.c.b16 %v2661, %v2661
        %v2678 = vpack.c.b16 %v2662, %v2662
        %v2679 = vpack.c.b16 %v2663, %v2663
        %v2680 = vpack.c.b16 %v2664, %v2664
        %v2681 = vpack.c.b16 %v2665, %v2665
        %v2682 = vpack.c.b16 %v2666, %v2666
        %v2683 = vpack.c.b16 %v2667, %v2667
        %v2684 = vpack.c.b16 %v2668, %v2668
        %v2685 = vpack.c.b16 %v2669, %v2669
        %v2686 = vpack.c.b16 %v2670, %v2670
        %v2687 = vpack.c.b16 %v2671, %v2671
        %v2688 = vpack.c.b16 %v2672, %v2672
        %v2689 = vpack.c.b16 %v2673, %v2673
        %v2690 = vpack.c.b16 %v2674, %v2674
        %v2692 = vshrl.u32 %v2611, 16
        %v2694 = vshll.u32 %v2611, 16
        %v2696 = vrot.slane %v2694, 1
        %v2697 = vor.u32 %v2692, %v2696
        %v2699 = vshll.u32 %v2675, 16
        %v2701 = vrot.slane %v2699, 1
        %v2702 = vsel %vm1761, %v2697, %v2701
        %v2704 = vshrl.u32 %v2612, 16
        %v2706 = vshll.u32 %v2612, 16
        %v2708 = vrot.slane %v2706, 1
        %v2709 = vor.u32 %v2704, %v2708
        %v2711 = vshll.u32 %v2676, 16
        %v2713 = vrot.slane %v2711, 1
        %v2714 = vsel %vm1761, %v2709, %v2713
        %v2716 = vshrl.u32 %v2613, 16
        %v2718 = vshll.u32 %v2613, 16
        %v2720 = vrot.slane %v2718, 1
        %v2721 = vor.u32 %v2716, %v2720
        %v2723 = vshll.u32 %v2677, 16
        %v2725 = vrot.slane %v2723, 1
        %v2726 = vsel %vm1761, %v2721, %v2725
        %v2728 = vshrl.u32 %v2614, 16
        %v2730 = vshll.u32 %v2614, 16
        %v2732 = vrot.slane %v2730, 1
        %v2733 = vor.u32 %v2728, %v2732
        %v2735 = vshll.u32 %v2678, 16
        %v2737 = vrot.slane %v2735, 1
        %v2738 = vsel %vm1761, %v2733, %v2737
        %v2740 = vshrl.u32 %v2615, 16
        %v2742 = vshll.u32 %v2615, 16
        %v2744 = vrot.slane %v2742, 1
        %v2745 = vor.u32 %v2740, %v2744
        %v2747 = vshll.u32 %v2679, 16
        %v2749 = vrot.slane %v2747, 1
        %v2750 = vsel %vm1761, %v2745, %v2749
        %v2752 = vshrl.u32 %v2616, 16
        %v2754 = vshll.u32 %v2616, 16
        %v2756 = vrot.slane %v2754, 1
        %v2757 = vor.u32 %v2752, %v2756
        %v2759 = vshll.u32 %v2680, 16
        %v2761 = vrot.slane %v2759, 1
        %v2762 = vsel %vm1761, %v2757, %v2761
        %v2764 = vshrl.u32 %v2617, 16
        %v2766 = vshll.u32 %v2617, 16
        %v2768 = vrot.slane %v2766, 1
        %v2769 = vor.u32 %v2764, %v2768
        %v2771 = vshll.u32 %v2681, 16
        %v2773 = vrot.slane %v2771, 1
        %v2774 = vsel %vm1761, %v2769, %v2773
        %v2776 = vshrl.u32 %v2618, 16
        %v2778 = vshll.u32 %v2618, 16
        %v2780 = vrot.slane %v2778, 1
        %v2781 = vor.u32 %v2776, %v2780
        %v2783 = vshll.u32 %v2682, 16
        %v2785 = vrot.slane %v2783, 1
        %v2786 = vsel %vm1761, %v2781, %v2785
        %v2788 = vshrl.u32 %v2619, 16
        %v2790 = vshll.u32 %v2619, 16
        %v2792 = vrot.slane %v2790, 1
        %v2793 = vor.u32 %v2788, %v2792
        %v2795 = vshll.u32 %v2683, 16
        %v2797 = vrot.slane %v2795, 1
        %v2798 = vsel %vm1761, %v2793, %v2797
        %v2800 = vshrl.u32 %v2620, 16
        %v2802 = vshll.u32 %v2620, 16
        %v2804 = vrot.slane %v2802, 1
        %v2805 = vor.u32 %v2800, %v2804
        %v2807 = vshll.u32 %v2684, 16
        %v2809 = vrot.slane %v2807, 1
        %v2810 = vsel %vm1761, %v2805, %v2809
        %v2812 = vshrl.u32 %v2621, 16
        %v2814 = vshll.u32 %v2621, 16
        %v2816 = vrot.slane %v2814, 1
        %v2817 = vor.u32 %v2812, %v2816
        %v2819 = vshll.u32 %v2685, 16
        %v2821 = vrot.slane %v2819, 1
        %v2822 = vsel %vm1761, %v2817, %v2821
        %v2824 = vshrl.u32 %v2622, 16
        %v2826 = vshll.u32 %v2622, 16
        %v2828 = vrot.slane %v2826, 1
        %v2829 = vor.u32 %v2824, %v2828
        %v2831 = vshll.u32 %v2686, 16
        %v2833 = vrot.slane %v2831, 1
        %v2834 = vsel %vm1761, %v2829, %v2833
        %v2836 = vshrl.u32 %v2623, 16
        %v2838 = vshll.u32 %v2623, 16
        %v2840 = vrot.slane %v2838, 1
        %v2841 = vor.u32 %v2836, %v2840
        %v2843 = vshll.u32 %v2687, 16
        %v2845 = vrot.slane %v2843, 1
        %v2846 = vsel %vm1761, %v2841, %v2845
        %v2848 = vshrl.u32 %v2624, 16
        %v2850 = vshll.u32 %v2624, 16
        %v2852 = vrot.slane %v2850, 1
        %v2853 = vor.u32 %v2848, %v2852
        %v2855 = vshll.u32 %v2688, 16
        %v2857 = vrot.slane %v2855, 1
        %v2858 = vsel %vm1761, %v2853, %v2857
        %v2860 = vshrl.u32 %v2625, 16
        %v2862 = vshll.u32 %v2625, 16
        %v2864 = vrot.slane %v2862, 1
        %v2865 = vor.u32 %v2860, %v2864
        %v2867 = vshll.u32 %v2689, 16
        %v2869 = vrot.slane %v2867, 1
        %v2870 = vsel %vm1761, %v2865, %v2869
        %v2872 = vshrl.u32 %v2626, 16
        %v2874 = vshll.u32 %v2626, 16
        %v2876 = vrot.slane %v2874, 1
        %v2877 = vor.u32 %v2872, %v2876
        %v2879 = vshll.u32 %v2690, 16
        %v2881 = vrot.slane %v2879, 1
        %v2882 = vsel %vm1761, %v2877, %v2881
        %v2915 = vunpack.c.l.b16 %v1601
        %v2916 = vunpack.c.l.b16 %v1602
        %v2917 = vunpack.c.l.b16 %v1603
        %v2918 = vunpack.c.l.b16 %v1604
        %v2919 = vunpack.c.l.b16 %v1605
        %v2920 = vunpack.c.l.b16 %v1606
        %v2921 = vunpack.c.l.b16 %v1607
        %v2922 = vunpack.c.l.b16 %v1608
        %v2923 = vunpack.c.l.b16 %v1609
        %v2924 = vunpack.c.l.b16 %v1610
        %v2925 = vunpack.c.l.b16 %v1611
        %v2926 = vunpack.c.l.b16 %v1612
        %v2927 = vunpack.c.l.b16 %v1613
        %v2928 = vunpack.c.l.b16 %v1614
        %v2929 = vunpack.c.l.b16 %v1615
        %v2930 = vunpack.c.l.b16 %v1616
        %v2931 = vpack.c.b16 %v2580, %v2915
        %v2932 = vpack.c.b16 %v2582, %v2916
        %v2933 = vpack.c.b16 %v2584, %v2917
        %v2934 = vpack.c.b16 %v2586, %v2918
        %v2935 = vpack.c.b16 %v2588, %v2919
        %v2936 = vpack.c.b16 %v2590, %v2920
        %v2937 = vpack.c.b16 %v2592, %v2921
        %v2938 = vpack.c.b16 %v2594, %v2922
        %v2939 = vpack.c.b16 %v2596, %v2923
        %v2940 = vpack.c.b16 %v2598, %v2924
        %v2941 = vpack.c.b16 %v2600, %v2925
        %v2942 = vpack.c.b16 %v2602, %v2926
        %v2943 = vpack.c.b16 %v2604, %v2927
        %v2944 = vpack.c.b16 %v2606, %v2928
        %v2945 = vpack.c.b16 %v2608, %v2929
        %v2946 = vpack.c.b16 %v2610, %v2930
        %v2947 = vrot.slane %v2931, 1
        %v2948 = vrot.slane %v2675, 1
        %v2949 = vsel %vm2018, %v2947, %v2948
        %v2950 = vrot.slane %v2932, 1
        %v2951 = vrot.slane %v2676, 1
        %v2952 = vsel %vm2018, %v2950, %v2951
        %v2953 = vrot.slane %v2933, 1
        %v2954 = vrot.slane %v2677, 1
        %v2955 = vsel %vm2018, %v2953, %v2954
        %v2956 = vrot.slane %v2934, 1
        %v2957 = vrot.slane %v2678, 1
        %v2958 = vsel %vm2018, %v2956, %v2957
        %v2959 = vrot.slane %v2935, 1
        %v2960 = vrot.slane %v2679, 1
        %v2961 = vsel %vm2018, %v2959, %v2960
        %v2962 = vrot.slane %v2936, 1
        %v2963 = vrot.slane %v2680, 1
        %v2964 = vsel %vm2018, %v2962, %v2963
        %v2965 = vrot.slane %v2937, 1
        %v2966 = vrot.slane %v2681, 1
        %v2967 = vsel %vm2018, %v2965, %v2966
        %v2968 = vrot.slane %v2938, 1
        %v2969 = vrot.slane %v2682, 1
        %v2970 = vsel %vm2018, %v2968, %v2969
        %v2971 = vrot.slane %v2939, 1
        %v2972 = vrot.slane %v2683, 1
        %v2973 = vsel %vm2018, %v2971, %v2972
        %v2974 = vrot.slane %v2940, 1
        %v2975 = vrot.slane %v2684, 1
        %v2976 = vsel %vm2018, %v2974, %v2975
        %v2977 = vrot.slane %v2941, 1
        %v2978 = vrot.slane %v2685, 1
        %v2979 = vsel %vm2018, %v2977, %v2978
        %v2980 = vrot.slane %v2942, 1
        %v2981 = vrot.slane %v2686, 1
        %v2982 = vsel %vm2018, %v2980, %v2981
        %v2983 = vrot.slane %v2943, 1
        %v2984 = vrot.slane %v2687, 1
        %v2985 = vsel %vm2018, %v2983, %v2984
        %v2986 = vrot.slane %v2944, 1
        %v2987 = vrot.slane %v2688, 1
        %v2988 = vsel %vm2018, %v2986, %v2987
        %v2989 = vrot.slane %v2945, 1
        %v2990 = vrot.slane %v2689, 1
        %v2991 = vsel %vm2018, %v2989, %v2990
        %v2992 = vrot.slane %v2946, 1
        %v2993 = vrot.slane %v2690, 1
        %v2994 = vsel %vm2018, %v2992, %v2993
        %v3011 = vld [vmem:[#allocation8] sm:$0xf]
        %v3012 = vld [vmem:[#allocation8 + $0x4] sm:$0xf]
        %v3013 = vld [vmem:[#allocation8 + $0x8] sm:$0xf]
        %v3014 = vld [vmem:[#allocation8 + $0xc] sm:$0xf]
        %v3015 = vld [vmem:[#allocation8 + $0x10] sm:$0xf]
        %v3016 = vld [vmem:[#allocation8 + $0x14] sm:$0xf]
        %v3017 = vld [vmem:[#allocation8 + $0x18] sm:$0xf]
        %v3018 = vld [vmem:[#allocation8 + $0x1c] sm:$0xf]
        %v3019 = vld [vmem:[#allocation8 + $0x20] sm:$0xf]
        %v3020 = vld [vmem:[#allocation8 + $0x24] sm:$0xf]
        %v3021 = vld [vmem:[#allocation8 + $0x28] sm:$0xf]
        %v3022 = vld [vmem:[#allocation8 + $0x2c] sm:$0xf]
        %v3023 = vld [vmem:[#allocation8 + $0x30] sm:$0xf]
        %v3024 = vld [vmem:[#allocation8 + $0x34] sm:$0xf]
        %v3025 = vld [vmem:[#allocation8 + $0x38] sm:$0xf]
        %v3026 = vld [vmem:[#allocation8 + $0x3c] sm:$0xf]
        %v3027 = vld [vmem:[#allocation8 + $0x40] sm:$0xf]
        %v3028 = vld [vmem:[#allocation8 + $0x44] sm:$0xf]
        %v3029 = vld [vmem:[#allocation8 + $0x48] sm:$0xf]
        %v3030 = vld [vmem:[#allocation8 + $0x4c] sm:$0xf]
        %v3031 = vld [vmem:[#allocation8 + $0x50] sm:$0xf]
        %v3032 = vld [vmem:[#allocation8 + $0x54] sm:$0xf]
        %v3033 = vld [vmem:[#allocation8 + $0x58] sm:$0xf]
        %v3034 = vld [vmem:[#allocation8 + $0x5c] sm:$0xf]
        %v3035 = vld [vmem:[#allocation8 + $0x60] sm:$0xf]
        %v3036 = vld [vmem:[#allocation8 + $0x64] sm:$0xf]
        %v3037 = vld [vmem:[#allocation8 + $0x68] sm:$0xf]
        %v3038 = vld [vmem:[#allocation8 + $0x6c] sm:$0xf]
        %v3039 = vld [vmem:[#allocation8 + $0x70] sm:$0xf]
        %v3040 = vld [vmem:[#allocation8 + $0x74] sm:$0xf]
        %v3041 = vld [vmem:[#allocation8 + $0x78] sm:$0xf]
        %v3042 = vld [vmem:[#allocation8 + $0x7c] sm:$0xf]
        %v3043 = vld [vmem:[#allocation8 + $0x80] sm:$0xf]
        %v3044 = vld [vmem:[#allocation8 + $0x84] sm:$0xf]
        %v3045 = vld [vmem:[#allocation8 + $0x88] sm:$0xf]
        %v3046 = vld [vmem:[#allocation8 + $0x8c] sm:$0xf]
        %v3047 = vld [vmem:[#allocation8 + $0x90] sm:$0xf]
        %v3048 = vld [vmem:[#allocation8 + $0x94] sm:$0xf]
        %v3049 = vld [vmem:[#allocation8 + $0x98] sm:$0xf]
        %v3050 = vld [vmem:[#allocation8 + $0x9c] sm:$0xf]
        %v3051 = vld [vmem:[#allocation8 + $0xa0] sm:$0xf]
        %v3052 = vld [vmem:[#allocation8 + $0xa4] sm:$0xf]
        %v3053 = vld [vmem:[#allocation8 + $0xa8] sm:$0xf]
        %v3054 = vld [vmem:[#allocation8 + $0xac] sm:$0xf]
        %v3055 = vld [vmem:[#allocation8 + $0xb0] sm:$0xf]
        %v3056 = vld [vmem:[#allocation8 + $0xb4] sm:$0xf]
        %v3057 = vld [vmem:[#allocation8 + $0xb8] sm:$0xf]
        %v3058 = vld [vmem:[#allocation8 + $0xbc] sm:$0xf]
        %v3059 = vld [vmem:[#allocation8 + $0xc0] sm:$0xf]
        %v3060 = vld [vmem:[#allocation8 + $0xc4] sm:$0xf]
        %v3061 = vld [vmem:[#allocation8 + $0xc8] sm:$0xf]
        %v3062 = vld [vmem:[#allocation8 + $0xcc] sm:$0xf]
        %v3063 = vld [vmem:[#allocation8 + $0xd0] sm:$0xf]
        %v3064 = vld [vmem:[#allocation8 + $0xd4] sm:$0xf]
        %v3065 = vld [vmem:[#allocation8 + $0xd8] sm:$0xf]
        %v3066 = vld [vmem:[#allocation8 + $0xdc] sm:$0xf]
        %v3067 = vld [vmem:[#allocation8 + $0xe0] sm:$0xf]
        %v3068 = vld [vmem:[#allocation8 + $0xe4] sm:$0xf]
        %v3069 = vld [vmem:[#allocation8 + $0xe8] sm:$0xf]
        %v3070 = vld [vmem:[#allocation8 + $0xec] sm:$0xf]
        %v3071 = vld [vmem:[#allocation8 + $0xf0] sm:$0xf]
        %v3072 = vld [vmem:[#allocation8 + $0xf4] sm:$0xf]
        %v3073 = vld [vmem:[#allocation8 + $0xf8] sm:$0xf]
        %v3074 = vld [vmem:[#allocation8 + $0xfc] sm:$0xf]
        %v3075 = vld [vmem:[#allocation8 + $0x100] sm:$0xf]
        %v3076 = vld [vmem:[#allocation8 + $0x104] sm:$0xf]
        %v3077 = vld [vmem:[#allocation8 + $0x108] sm:$0xf]
        %v3078 = vld [vmem:[#allocation8 + $0x10c] sm:$0xf]
        %v3079 = vld [vmem:[#allocation8 + $0x110] sm:$0xf]
        %v3080 = vld [vmem:[#allocation8 + $0x114] sm:$0xf]
        %v3081 = vld [vmem:[#allocation8 + $0x118] sm:$0xf]
        %v3082 = vld [vmem:[#allocation8 + $0x11c] sm:$0xf]
        %v3083 = vld [vmem:[#allocation8 + $0x120] sm:$0xf]
        %v3084 = vld [vmem:[#allocation8 + $0x124] sm:$0xf]
        %v3085 = vld [vmem:[#allocation8 + $0x128] sm:$0xf]
        %v3086 = vld [vmem:[#allocation8 + $0x12c] sm:$0xf]
        %v3087 = vld [vmem:[#allocation8 + $0x130] sm:$0xf]
        %v3088 = vld [vmem:[#allocation8 + $0x134] sm:$0xf]
        %v3089 = vld [vmem:[#allocation8 + $0x138] sm:$0xf]
        %v3090 = vld [vmem:[#allocation8 + $0x13c] sm:$0xf]
        %v3091 = vld [vmem:[#allocation8 + $0x140] sm:$0xf]
        %v3092 = vld [vmem:[#allocation8 + $0x144] sm:$0xf]
        %v3093 = vld [vmem:[#allocation8 + $0x148] sm:$0xf]
        %v3094 = vld [vmem:[#allocation8 + $0x14c] sm:$0xf]
        %v3095 = vld [vmem:[#allocation8 + $0x150] sm:$0xf]
        %v3096 = vld [vmem:[#allocation8 + $0x154] sm:$0xf]
        %v3097 = vld [vmem:[#allocation8 + $0x158] sm:$0xf]
        %v3098 = vld [vmem:[#allocation8 + $0x15c] sm:$0xf]
        %v3099 = vld [vmem:[#allocation8 + $0x160] sm:$0xf]
        %v3100 = vld [vmem:[#allocation8 + $0x164] sm:$0xf]
        %v3101 = vld [vmem:[#allocation8 + $0x168] sm:$0xf]
        %v3102 = vld [vmem:[#allocation8 + $0x16c] sm:$0xf]
        %v3103 = vld [vmem:[#allocation8 + $0x170] sm:$0xf]
        %v3104 = vld [vmem:[#allocation8 + $0x174] sm:$0xf]
        %v3105 = vld [vmem:[#allocation8 + $0x178] sm:$0xf]
        %v3106 = vld [vmem:[#allocation8 + $0x17c] sm:$0xf]
        %v3107 = vld [vmem:[#allocation8 + $0x180] sm:$0xf]
        %v3108 = vld [vmem:[#allocation8 + $0x184] sm:$0xf]
        %v3109 = vld [vmem:[#allocation8 + $0x188] sm:$0xf]
        %v3110 = vld [vmem:[#allocation8 + $0x18c] sm:$0xf]
        %v3111 = vld [vmem:[#allocation8 + $0x190] sm:$0xf]
        %v3112 = vld [vmem:[#allocation8 + $0x194] sm:$0xf]
        %v3113 = vld [vmem:[#allocation8 + $0x198] sm:$0xf]
        %v3114 = vld [vmem:[#allocation8 + $0x19c] sm:$0xf]
        %v3115 = vld [vmem:[#allocation8 + $0x1a0] sm:$0xf]
        %v3116 = vld [vmem:[#allocation8 + $0x1a4] sm:$0xf]
        %v3117 = vld [vmem:[#allocation8 + $0x1a8] sm:$0xf]
        %v3118 = vld [vmem:[#allocation8 + $0x1ac] sm:$0xf]
        %v3119 = vld [vmem:[#allocation8 + $0x1b0] sm:$0xf]
        %v3120 = vld [vmem:[#allocation8 + $0x1b4] sm:$0xf]
        %v3121 = vld [vmem:[#allocation8 + $0x1b8] sm:$0xf]
        %v3122 = vld [vmem:[#allocation8 + $0x1bc] sm:$0xf]
        %v3123 = vld [vmem:[#allocation8 + $0x1c0] sm:$0xf]
        %v3124 = vld [vmem:[#allocation8 + $0x1c4] sm:$0xf]
        %v3125 = vld [vmem:[#allocation8 + $0x1c8] sm:$0xf]
        %v3126 = vld [vmem:[#allocation8 + $0x1cc] sm:$0xf]
        %v3127 = vld [vmem:[#allocation8 + $0x1d0] sm:$0xf]
        %v3128 = vld [vmem:[#allocation8 + $0x1d4] sm:$0xf]
        %v3129 = vld [vmem:[#allocation8 + $0x1d8] sm:$0xf]
        %v3130 = vld [vmem:[#allocation8 + $0x1dc] sm:$0xf]
        %v3131 = vld [vmem:[#allocation8 + $0x1e0] sm:$0xf]
        %v3132 = vld [vmem:[#allocation8 + $0x1e4] sm:$0xf]
        %v3133 = vld [vmem:[#allocation8 + $0x1e8] sm:$0xf]
        %v3134 = vld [vmem:[#allocation8 + $0x1ec] sm:$0xf]
        %v3135 = vld [vmem:[#allocation8 + $0x1f0] sm:$0xf]
        %v3136 = vld [vmem:[#allocation8 + $0x1f4] sm:$0xf]
        %v3137 = vld [vmem:[#allocation8 + $0x1f8] sm:$0xf]
        %v3138 = vld [vmem:[#allocation8 + $0x1fc] sm:$0xf]
        %v3139 = vld [vmem:[#allocation8 + $0x200] sm:$0xf]
        %v3140 = vld [vmem:[#allocation8 + $0x204] sm:$0xf]
        %v3141 = vld [vmem:[#allocation8 + $0x208] sm:$0xf]
        %v3142 = vld [vmem:[#allocation8 + $0x20c] sm:$0xf]
        %v3143 = vld [vmem:[#allocation8 + $0x210] sm:$0xf]
        %v3144 = vld [vmem:[#allocation8 + $0x214] sm:$0xf]
        %v3145 = vld [vmem:[#allocation8 + $0x218] sm:$0xf]
        %v3146 = vld [vmem:[#allocation8 + $0x21c] sm:$0xf]
        %v3147 = vld [vmem:[#allocation8 + $0x220] sm:$0xf]
        %v3148 = vld [vmem:[#allocation8 + $0x224] sm:$0xf]
        %v3149 = vld [vmem:[#allocation8 + $0x228] sm:$0xf]
        %v3150 = vld [vmem:[#allocation8 + $0x22c] sm:$0xf]
        %v3151 = vld [vmem:[#allocation8 + $0x230] sm:$0xf]
        %v3152 = vld [vmem:[#allocation8 + $0x234] sm:$0xf]
        %v3153 = vld [vmem:[#allocation8 + $0x238] sm:$0xf]
        %v3154 = vld [vmem:[#allocation8 + $0x23c] sm:$0xf]
        %v3156 = vlaneseq
        %v3157 = vshrl.u32 %v3156, 7
        %v3158 = vsub.s32 0, %v3157
        %v3159 = vrot.slane %v380, %v3158
        %v3305 = vunpack.c.l.b16 %v3011
        %v3306 = vunpack.c.l.b16 %v3012
        %v3307 = vunpack.c.l.b16 %v3013
        %v3308 = vunpack.c.l.b16 %v3014
        %v3309 = vunpack.c.l.b16 %v3015
        %v3310 = vunpack.c.l.b16 %v3016
        %v3311 = vunpack.c.l.b16 %v3017
        %v3312 = vunpack.c.l.b16 %v3018
        %v3313 = vunpack.c.l.b16 %v3019
        %v3314 = vunpack.c.l.b16 %v3020
        %v3315 = vunpack.c.l.b16 %v3021
        %v3316 = vunpack.c.l.b16 %v3022
        %v3317 = vunpack.c.l.b16 %v3023
        %v3318 = vunpack.c.l.b16 %v3024
        %v3319 = vunpack.c.l.b16 %v3025
        %v3320 = vunpack.c.l.b16 %v3026
        %v3321 = vunpack.c.l.b16 %v3027
        %v3322 = vunpack.c.l.b16 %v3028
        %v3323 = vunpack.c.l.b16 %v3029
        %v3324 = vunpack.c.l.b16 %v3030
        %v3325 = vunpack.c.l.b16 %v3031
        %v3326 = vunpack.c.l.b16 %v3032
        %v3327 = vunpack.c.l.b16 %v3033
        %v3328 = vunpack.c.l.b16 %v3034
        %v3329 = vunpack.c.l.b16 %v3035
        %v3330 = vunpack.c.l.b16 %v3036
        %v3331 = vunpack.c.l.b16 %v3037
        %v3332 = vunpack.c.l.b16 %v3038
        %v3333 = vunpack.c.l.b16 %v3039
        %v3334 = vunpack.c.l.b16 %v3040
        %v3335 = vunpack.c.l.b16 %v3041
        %v3336 = vunpack.c.l.b16 %v3042
        %v3337 = vunpack.c.l.b16 %v3043
        %v3338 = vunpack.c.l.b16 %v3044
        %v3339 = vunpack.c.l.b16 %v3045
        %v3340 = vunpack.c.l.b16 %v3046
        %v3341 = vunpack.c.l.b16 %v3047
        %v3342 = vunpack.c.l.b16 %v3048
        %v3343 = vunpack.c.l.b16 %v3049
        %v3344 = vunpack.c.l.b16 %v3050
        %v3345 = vunpack.c.l.b16 %v3051
        %v3346 = vunpack.c.l.b16 %v3052
        %v3347 = vunpack.c.l.b16 %v3053
        %v3348 = vunpack.c.l.b16 %v3054
        %v3349 = vunpack.c.l.b16 %v3055
        %v3350 = vunpack.c.l.b16 %v3056
        %v3351 = vunpack.c.l.b16 %v3057
        %v3352 = vunpack.c.l.b16 %v3058
        %v3353 = vunpack.c.l.b16 %v3059
        %v3354 = vunpack.c.l.b16 %v3060
        %v3355 = vunpack.c.l.b16 %v3061
        %v3356 = vunpack.c.l.b16 %v3062
        %v3357 = vunpack.c.l.b16 %v3063
        %v3358 = vunpack.c.l.b16 %v3064
        %v3359 = vunpack.c.l.b16 %v3065
        %v3360 = vunpack.c.l.b16 %v3066
        %v3361 = vunpack.c.l.b16 %v3067
        %v3362 = vunpack.c.l.b16 %v3068
        %v3363 = vunpack.c.l.b16 %v3069
        %v3364 = vunpack.c.l.b16 %v3070
        %v3365 = vunpack.c.l.b16 %v3071
        %v3366 = vunpack.c.l.b16 %v3072
        %v3367 = vunpack.c.l.b16 %v3073
        %v3368 = vunpack.c.l.b16 %v3074
        %v3369 = vunpack.c.l.b16 %v3075
        %v3370 = vunpack.c.l.b16 %v3076
        %v3371 = vunpack.c.l.b16 %v3077
        %v3372 = vunpack.c.l.b16 %v3078
        %v3373 = vunpack.c.l.b16 %v3079
        %v3374 = vunpack.c.l.b16 %v3080
        %v3375 = vunpack.c.l.b16 %v3081
        %v3376 = vunpack.c.l.b16 %v3082
        %v3377 = vunpack.c.l.b16 %v3083
        %v3378 = vunpack.c.l.b16 %v3084
        %v3379 = vunpack.c.l.b16 %v3085
        %v3380 = vunpack.c.l.b16 %v3086
        %v3381 = vunpack.c.l.b16 %v3087
        %v3382 = vunpack.c.l.b16 %v3088
        %v3383 = vunpack.c.l.b16 %v3089
        %v3384 = vunpack.c.l.b16 %v3090
        %v3385 = vunpack.c.l.b16 %v3091
        %v3386 = vunpack.c.l.b16 %v3092
        %v3387 = vunpack.c.l.b16 %v3093
        %v3388 = vunpack.c.l.b16 %v3094
        %v3389 = vunpack.c.l.b16 %v3095
        %v3390 = vunpack.c.l.b16 %v3096
        %v3391 = vunpack.c.l.b16 %v3097
        %v3392 = vunpack.c.l.b16 %v3098
        %v3393 = vunpack.c.l.b16 %v3099
        %v3394 = vunpack.c.l.b16 %v3100
        %v3395 = vunpack.c.l.b16 %v3101
        %v3396 = vunpack.c.l.b16 %v3102
        %v3397 = vunpack.c.l.b16 %v3103
        %v3398 = vunpack.c.l.b16 %v3104
        %v3399 = vunpack.c.l.b16 %v3105
        %v3400 = vunpack.c.l.b16 %v3106
        %v3401 = vunpack.c.l.b16 %v3107
        %v3402 = vunpack.c.l.b16 %v3108
        %v3403 = vunpack.c.l.b16 %v3109
        %v3404 = vunpack.c.l.b16 %v3110
        %v3405 = vunpack.c.l.b16 %v3111
        %v3406 = vunpack.c.l.b16 %v3112
        %v3407 = vunpack.c.l.b16 %v3113
        %v3408 = vunpack.c.l.b16 %v3114
        %v3409 = vunpack.c.l.b16 %v3115
        %v3410 = vunpack.c.l.b16 %v3116
        %v3411 = vunpack.c.l.b16 %v3117
        %v3412 = vunpack.c.l.b16 %v3118
        %v3413 = vunpack.c.l.b16 %v3119
        %v3414 = vunpack.c.l.b16 %v3120
        %v3415 = vunpack.c.l.b16 %v3121
        %v3416 = vunpack.c.l.b16 %v3122
        %v3417 = vunpack.c.l.b16 %v3123
        %v3418 = vunpack.c.l.b16 %v3124
        %v3419 = vunpack.c.l.b16 %v3125
        %v3420 = vunpack.c.l.b16 %v3126
        %v3421 = vunpack.c.l.b16 %v3127
        %v3422 = vunpack.c.l.b16 %v3128
        %v3423 = vunpack.c.l.b16 %v3129
        %v3424 = vunpack.c.l.b16 %v3130
        %v3425 = vunpack.c.l.b16 %v3131
        %v3426 = vunpack.c.l.b16 %v3132
        %v3427 = vunpack.c.l.b16 %v3133
        %v3428 = vunpack.c.l.b16 %v3134
        %v3429 = vunpack.c.l.b16 %v3135
        %v3430 = vunpack.c.l.b16 %v3136
        %v3431 = vunpack.c.l.b16 %v3137
        %v3432 = vunpack.c.l.b16 %v3138
        %v3433 = vunpack.c.l.b16 %v3139
        %v3434 = vunpack.c.l.b16 %v3140
        %v3435 = vunpack.c.l.b16 %v3141
        %v3436 = vunpack.c.l.b16 %v3142
        %v3437 = vunpack.c.l.b16 %v3143
        %v3438 = vunpack.c.l.b16 %v3144
        %v3439 = vunpack.c.l.b16 %v3145
        %v3440 = vunpack.c.l.b16 %v3146
        %v3441 = vunpack.c.l.b16 %v3147
        %v3442 = vunpack.c.l.b16 %v3148
        %v3443 = vunpack.c.l.b16 %v3149
        %v3444 = vunpack.c.l.b16 %v3150
        %v3445 = vunpack.c.l.b16 %v3151
        %v3446 = vunpack.c.l.b16 %v3152
        %v3447 = vunpack.c.l.b16 %v3153
        %v3448 = vunpack.c.l.b16 %v3154
        %v3449 = vpack.c.b16 %v3306, %v3305
        %v3450 = vpack.c.b16 %v3308, %v3307
        %v3451 = vpack.c.b16 %v3310, %v3309
        %v3452 = vpack.c.b16 %v3312, %v3311
        %v3453 = vpack.c.b16 %v3314, %v3313
        %v3454 = vpack.c.b16 %v3316, %v3315
        %v3455 = vpack.c.b16 %v3318, %v3317
        %v3456 = vpack.c.b16 %v3320, %v3319
        %v3457 = vpack.c.b16 %v3322, %v3321
        %v3458 = vpack.c.b16 %v3324, %v3323
        %v3459 = vpack.c.b16 %v3326, %v3325
        %v3460 = vpack.c.b16 %v3328, %v3327
        %v3461 = vpack.c.b16 %v3330, %v3329
        %v3462 = vpack.c.b16 %v3332, %v3331
        %v3463 = vpack.c.b16 %v3334, %v3333
        %v3464 = vpack.c.b16 %v3336, %v3335
        %v3465 = vpack.c.b16 %v3338, %v3337
        %v3466 = vpack.c.b16 %v3340, %v3339
        %v3467 = vpack.c.b16 %v3342, %v3341
        %v3468 = vpack.c.b16 %v3344, %v3343
        %v3469 = vpack.c.b16 %v3346, %v3345
        %v3470 = vpack.c.b16 %v3348, %v3347
        %v3471 = vpack.c.b16 %v3350, %v3349
        %v3472 = vpack.c.b16 %v3352, %v3351
        %v3473 = vpack.c.b16 %v3354, %v3353
        %v3474 = vpack.c.b16 %v3356, %v3355
        %v3475 = vpack.c.b16 %v3358, %v3357
        %v3476 = vpack.c.b16 %v3360, %v3359
        %v3477 = vpack.c.b16 %v3362, %v3361
        %v3478 = vpack.c.b16 %v3364, %v3363
        %v3479 = vpack.c.b16 %v3366, %v3365
        %v3480 = vpack.c.b16 %v3368, %v3367
        %v3481 = vpack.c.b16 %v3370, %v3369
        %v3482 = vpack.c.b16 %v3372, %v3371
        %v3483 = vpack.c.b16 %v3374, %v3373
        %v3484 = vpack.c.b16 %v3376, %v3375
        %v3485 = vpack.c.b16 %v3378, %v3377
        %v3486 = vpack.c.b16 %v3380, %v3379
        %v3487 = vpack.c.b16 %v3382, %v3381
        %v3488 = vpack.c.b16 %v3384, %v3383
        %v3489 = vpack.c.b16 %v3386, %v3385
        %v3490 = vpack.c.b16 %v3388, %v3387
        %v3491 = vpack.c.b16 %v3390, %v3389
        %v3492 = vpack.c.b16 %v3392, %v3391
        %v3493 = vpack.c.b16 %v3394, %v3393
        %v3494 = vpack.c.b16 %v3396, %v3395
        %v3495 = vpack.c.b16 %v3398, %v3397
        %v3496 = vpack.c.b16 %v3400, %v3399
        %v3497 = vpack.c.b16 %v3402, %v3401
        %v3498 = vpack.c.b16 %v3404, %v3403
        %v3499 = vpack.c.b16 %v3406, %v3405
        %v3500 = vpack.c.b16 %v3408, %v3407
        %v3501 = vpack.c.b16 %v3410, %v3409
        %v3502 = vpack.c.b16 %v3412, %v3411
        %v3503 = vpack.c.b16 %v3414, %v3413
        %v3504 = vpack.c.b16 %v3416, %v3415
        %v3505 = vpack.c.b16 %v3418, %v3417
        %v3506 = vpack.c.b16 %v3420, %v3419
        %v3507 = vpack.c.b16 %v3422, %v3421
        %v3508 = vpack.c.b16 %v3424, %v3423
        %v3509 = vpack.c.b16 %v3426, %v3425
        %v3510 = vpack.c.b16 %v3428, %v3427
        %v3511 = vpack.c.b16 %v3430, %v3429
        %v3512 = vpack.c.b16 %v3432, %v3431
        %v3513 = vpack.c.b16 %v3434, %v3433
        %v3514 = vpack.c.b16 %v3436, %v3435
        %v3515 = vpack.c.b16 %v3438, %v3437
        %v3516 = vpack.c.b16 %v3440, %v3439
        %v3517 = vpack.c.b16 %v3442, %v3441
        %v3518 = vpack.c.b16 %v3444, %v3443
        %v3519 = vpack.c.b16 %v3446, %v3445
        %v3520 = vpack.c.b16 %v3448, %v3447
        %3593 = vmatprep.subr.bf16.mxu0 0
        %3594 = vmatpush1.bf16.msra.mxu0 %v3449
        %3595 = vmatprep.subr.bf16.mxu0 0
        %3596 = vmatpush1.bf16.msra.mxu0 %v3450
        %3597 = vmatprep.subr.bf16.mxu0 0
        %3598 = vmatpush1.bf16.msra.mxu0 %v3451
        %3599 = vmatprep.subr.bf16.mxu0 0
        %3600 = vmatpush1.bf16.msra.mxu0 %v3452
        %3601 = vmatprep.subr.bf16.mxu0 0
        %3602 = vmatpush1.bf16.msra.mxu0 %v3453
        %3603 = vmatprep.subr.bf16.mxu0 0
        %3604 = vmatpush1.bf16.msra.mxu0 %v3454
        %3605 = vmatprep.subr.bf16.mxu0 0
        %3606 = vmatpush1.bf16.msra.mxu0 %v3455
        %3607 = vmatprep.subr.bf16.mxu0 0
        %3608 = vmatpush1.bf16.msra.mxu0 %v3456
        %3609 = vmatprep.subr.bf16.mxu0 0
        %3610 = vmatpush1.bf16.msra.mxu0 %v3457
        %3611 = vmatprep.subr.bf16.mxu0 0
        %3612 = vmatpush1.bf16.msra.mxu0 %v3458
        %3613 = vmatprep.subr.bf16.mxu0 0
        %3614 = vmatpush1.bf16.msra.mxu0 %v3459
        %3615 = vmatprep.subr.bf16.mxu0 0
        %3616 = vmatpush1.bf16.msra.mxu0 %v3460
        %3617 = vmatprep.subr.bf16.mxu0 0
        %3618 = vmatpush1.bf16.msra.mxu0 %v3461
        %3619 = vmatprep.subr.bf16.mxu0 0
        %3620 = vmatpush1.bf16.msra.mxu0 %v3462
        %3621 = vmatprep.subr.bf16.mxu0 0
        %3622 = vmatpush1.bf16.msra.mxu0 %v3463
        %3623 = vmatprep.subr.bf16.mxu0 0
        %3624 = vmatpush1.bf16.msra.mxu0 %v3464
        %3625 = vmatprep.mubr.bf16.mxu0 %v1773
        %3626 = vmatmul.mubr.bf16.gmra.mrb[0].mxu0 %v1681
        %v3627 = vpop.f32.mrb[0].mxu0
        %v3628 = vadd.f32 %v3159, %v3627
        %v3629 = vpop.f32.mrb[0].mxu0
        %v3630 = vpop.f32.mrb[0].mxu0
        %v3631 = vadd.f32 %v3159, %v3630
        %v3632 = vpop.f32.mrb[0].mxu0
        %3633 = vmatprep.mubr.bf16.mxu0 %v1785
        %3634 = vmatmul.mubr.bf16.gmra.mrb[0].mxu0 %v1682
        %v3635 = vpop.f32.mrb[0].mxu0
        %v3636 = vadd.f32 %v3159, %v3635
        %v3637 = vpop.f32.mrb[0].mxu0
        %v3638 = vpop.f32.mrb[0].mxu0
        %v3639 = vadd.f32 %v3159, %v3638
        %v3640 = vpop.f32.mrb[0].mxu0
        %3641 = vmatprep.mubr.bf16.mxu0 %v1797
        %3642 = vmatmul.mubr.bf16.gmra.mrb[0].mxu0 %v1683
        %v3643 = vpop.f32.mrb[0].mxu0
        %v3644 = vadd.f32 %v3159, %v3643
        %v3645 = vpop.f32.mrb[0].mxu0
        %v3646 = vpop.f32.mrb[0].mxu0
        %v3647 = vadd.f32 %v3159, %v3646
        %v3648 = vpop.f32.mrb[0].mxu0
        %3649 = vmatprep.mubr.bf16.mxu0 %v1809
        %3650 = vmatmul.mubr.bf16.gmra.mrb[0].mxu0 %v1684
        %v3651 = vpop.f32.mrb[0].mxu0
        %v3652 = vadd.f32 %v3159, %v3651
        %v3653 = vpop.f32.mrb[0].mxu0
        %v3654 = vpop.f32.mrb[0].mxu0
        %v3655 = vadd.f32 %v3159, %v3654
        %v3656 = vpop.f32.mrb[0].mxu0
        %3657 = vmatprep.mubr.bf16.mxu0 %v1821
        %3658 = vmatmul.mubr.bf16.gmra.mrb[0].mxu0 %v1685
        %v3659 = vpop.f32.mrb[0].mxu0
        %v3660 = vadd.f32 %v3159, %v3659
        %v3661 = vpop.f32.mrb[0].mxu0
        %v3662 = vpop.f32.mrb[0].mxu0
        %v3663 = vadd.f32 %v3159, %v3662
        %v3664 = vpop.f32.mrb[0].mxu0
        %3665 = vmatprep.mubr.bf16.mxu0 %v1833
        %3666 = vmatmul.mubr.bf16.gmra.mrb[0].mxu0 %v1686
        %v3667 = vpop.f32.mrb[0].mxu0
        %v3668 = vadd.f32 %v3159, %v3667
        %v3669 = vpop.f32.mrb[0].mxu0
        %v3670 = vpop.f32.mrb[0].mxu0
        %v3671 = vadd.f32 %v3159, %v3670
        %v3672 = vpop.f32.mrb[0].mxu0
        %3673 = vmatprep.mubr.bf16.mxu0 %v1845
        %3674 = vmatmul.mubr.bf16.gmra.mrb[0].mxu0 %v1687
        %v3675 = vpop.f32.mrb[0].mxu0
        %v3676 = vadd.f32 %v3159, %v3675
        %v3677 = vpop.f32.mrb[0].mxu0
        %v3678 = vpop.f32.mrb[0].mxu0
        %v3679 = vadd.f32 %v3159, %v3678
        %v3680 = vpop.f32.mrb[0].mxu0
        %3681 = vmatprep.mubr.bf16.mxu0 %v1857
        %3682 = vmatmul.mubr.bf16.gmra.mrb[0].mxu0 %v1688
        %v3683 = vpop.f32.mrb[0].mxu0
        %v3684 = vadd.f32 %v3159, %v3683
        %v3685 = vpop.f32.mrb[0].mxu0
        %v3686 = vpop.f32.mrb[0].mxu0
        %v3687 = vadd.f32 %v3159, %v3686
        %v3688 = vpop.f32.mrb[0].mxu0
        %3689 = vmatprep.mubr.bf16.mxu0 %v1869
        %3690 = vmatmul.mubr.bf16.gmra.mrb[0].mxu0 %v1689
        %v3691 = vpop.f32.mrb[0].mxu0
        %v3692 = vadd.f32 %v3159, %v3691
        %v3693 = vpop.f32.mrb[0].mxu0
        %v3694 = vpop.f32.mrb[0].mxu0
        %v3695 = vadd.f32 %v3159, %v3694
        %v3696 = vpop.f32.mrb[0].mxu0
        %3697 = vmatprep.mubr.bf16.mxu0 %v1881
        %3698 = vmatmul.mubr.bf16.gmra.mrb[0].mxu0 %v1690
        %v3699 = vpop.f32.mrb[0].mxu0
        %v3700 = vadd.f32 %v3159, %v3699
        %v3701 = vpop.f32.mrb[0].mxu0
        %v3702 = vpop.f32.mrb[0].mxu0
        %v3703 = vadd.f32 %v3159, %v3702
        %v3704 = vpop.f32.mrb[0].mxu0
        %3705 = vmatprep.mubr.bf16.mxu0 %v1893
        %3706 = vmatmul.mubr.bf16.gmra.mrb[0].mxu0 %v1691
        %v3707 = vpop.f32.mrb[0].mxu0
        %v3708 = vadd.f32 %v3159, %v3707
        %v3709 = vpop.f32.mrb[0].mxu0
        %v3710 = vpop.f32.mrb[0].mxu0
        %v3711 = vadd.f32 %v3159, %v3710
        %v3712 = vpop.f32.mrb[0].mxu0
        %3713 = vmatprep.mubr.bf16.mxu0 %v1905
        %3714 = vmatmul.mubr.bf16.gmra.mrb[0].mxu0 %v1692
        %v3715 = vpop.f32.mrb[0].mxu0
        %v3716 = vadd.f32 %v3159, %v3715
        %v3717 = vpop.f32.mrb[0].mxu0
        %v3718 = vpop.f32.mrb[0].mxu0
        %v3719 = vadd.f32 %v3159, %v3718
        %v3720 = vpop.f32.mrb[0].mxu0
        %3721 = vmatprep.mubr.bf16.mxu0 %v1917
        %3722 = vmatmul.mubr.bf16.gmra.mrb[0].mxu0 %v1693
        %v3723 = vpop.f32.mrb[0].mxu0
        %v3724 = vadd.f32 %v3159, %v3723
        %v3725 = vpop.f32.mrb[0].mxu0
        %v3726 = vpop.f32.mrb[0].mxu0
        %v3727 = vadd.f32 %v3159, %v3726
        %v3728 = vpop.f32.mrb[0].mxu0
        %3729 = vmatprep.mubr.bf16.mxu0 %v1929
        %3730 = vmatmul.mubr.bf16.gmra.mrb[0].mxu0 %v1694
        %v3731 = vpop.f32.mrb[0].mxu0
        %v3732 = vadd.f32 %v3159, %v3731
        %v3733 = vpop.f32.mrb[0].mxu0
        %v3734 = vpop.f32.mrb[0].mxu0
        %v3735 = vadd.f32 %v3159, %v3734
        %v3736 = vpop.f32.mrb[0].mxu0
        %3737 = vmatprep.mubr.bf16.mxu0 %v1941
        %3738 = vmatmul.mubr.bf16.gmra.mrb[0].mxu0 %v1695
        %v3739 = vpop.f32.mrb[0].mxu0
        %v3740 = vadd.f32 %v3159, %v3739
        %v3741 = vpop.f32.mrb[0].mxu0
        %v3742 = vpop.f32.mrb[0].mxu0
        %v3743 = vadd.f32 %v3159, %v3742
        %v3744 = vpop.f32.mrb[0].mxu0
        %3745 = vmatprep.mubr.bf16.mxu0 %v1953
        %3746 = vmatmul.mubr.bf16.gmra.mrb[0].mxu0 %v1696
        %v3747 = vpop.f32.mrb[0].mxu0
        %v3748 = vadd.f32 %v3159, %v3747
        %v3749 = vpop.f32.mrb[0].mxu0
        %v3750 = vpop.f32.mrb[0].mxu0
        %v3751 = vadd.f32 %v3159, %v3750
        %v3752 = vpop.f32.mrb[0].mxu0
        %3753 = vdwg.mxu0
        %3754 = vmatprep.subr.bf16.mxu0 0
        %3755 = vmatpush1.bf16.msra.mxu0 %v3465
        %3756 = vmatprep.subr.bf16.mxu0 0
        %3757 = vmatpush1.bf16.msra.mxu0 %v3466
        %3758 = vmatprep.subr.bf16.mxu0 0
        %3759 = vmatpush1.bf16.msra.mxu0 %v3467
        %3760 = vmatprep.subr.bf16.mxu0 0
        %3761 = vmatpush1.bf16.msra.mxu0 %v3468
        %3762 = vmatprep.subr.bf16.mxu0 0
        %3763 = vmatpush1.bf16.msra.mxu0 %v3469
        %3764 = vmatprep.subr.bf16.mxu0 0
        %3765 = vmatpush1.bf16.msra.mxu0 %v3470
        %3766 = vmatprep.subr.bf16.mxu0 0
        %3767 = vmatpush1.bf16.msra.mxu0 %v3471
        %3768 = vmatprep.subr.bf16.mxu0 0
        %3769 = vmatpush1.bf16.msra.mxu0 %v3472
        %3770 = vmatprep.subr.bf16.mxu0 0
        %3771 = vmatpush1.bf16.msra.mxu0 %v3473
        %3772 = vmatprep.subr.bf16.mxu0 0
        %3773 = vmatpush1.bf16.msra.mxu0 %v3474
        %3774 = vmatprep.subr.bf16.mxu0 0
        %3775 = vmatpush1.bf16.msra.mxu0 %v3475
        %3776 = vmatprep.subr.bf16.mxu0 0
        %3777 = vmatpush1.bf16.msra.mxu0 %v3476
        %3778 = vmatprep.subr.bf16.mxu0 0
        %3779 = vmatpush1.bf16.msra.mxu0 %v3477
        %3780 = vmatprep.subr.bf16.mxu0 0
        %3781 = vmatpush1.bf16.msra.mxu0 %v3478
        %3782 = vmatprep.subr.bf16.mxu0 0
        %3783 = vmatpush1.bf16.msra.mxu0 %v3479
        %3784 = vmatprep.subr.bf16.mxu0 0
        %3785 = vmatpush1.bf16.msra.mxu0 %v3480
        %3786 = vmatprep.mubr.bf16.mxu0 %v2147
        %3787 = vmatmul.mubr.bf16.gmra.mrb[0].mxu0 %v2021
        %v3788 = vpop.f32.mrb[0].mxu0
        %v3789 = vadd.f32 %v3628, %v3788
        %v3790 = vpop.f32.mrb[0].mxu0
        %v3791 = vpop.f32.mrb[0].mxu0
        %v3792 = vadd.f32 %v3631, %v3791
        %v3793 = vpop.f32.mrb[0].mxu0
        %3794 = vmatprep.mubr.bf16.mxu0 %v2148
        %3795 = vmatmul.mubr.bf16.gmra.mrb[0].mxu0 %v2024
        %v3796 = vpop.f32.mrb[0].mxu0
        %v3797 = vadd.f32 %v3636, %v3796
        %v3798 = vpop.f32.mrb[0].mxu0
        %v3799 = vpop.f32.mrb[0].mxu0
        %v3800 = vadd.f32 %v3639, %v3799
        %v3801 = vpop.f32.mrb[0].mxu0
        %3802 = vmatprep.mubr.bf16.mxu0 %v2149
        %3803 = vmatmul.mubr.bf16.gmra.mrb[0].mxu0 %v2027
        %v3804 = vpop.f32.mrb[0].mxu0
        %v3805 = vadd.f32 %v3644, %v3804
        %v3806 = vpop.f32.mrb[0].mxu0
        %v3807 = vpop.f32.mrb[0].mxu0
        %v3808 = vadd.f32 %v3647, %v3807
        %v3809 = vpop.f32.mrb[0].mxu0
        %3810 = vmatprep.mubr.bf16.mxu0 %v2150
        %3811 = vmatmul.mubr.bf16.gmra.mrb[0].mxu0 %v2030
        %v3812 = vpop.f32.mrb[0].mxu0
        %v3813 = vadd.f32 %v3652, %v3812
        %v3814 = vpop.f32.mrb[0].mxu0
        %v3815 = vpop.f32.mrb[0].mxu0
        %v3816 = vadd.f32 %v3655, %v3815
        %v3817 = vpop.f32.mrb[0].mxu0
        %3818 = vmatprep.mubr.bf16.mxu0 %v2151
        %3819 = vmatmul.mubr.bf16.gmra.mrb[0].mxu0 %v2033
        %v3820 = vpop.f32.mrb[0].mxu0
        %v3821 = vadd.f32 %v3660, %v3820
        %v3822 = vpop.f32.mrb[0].mxu0
        %v3823 = vpop.f32.mrb[0].mxu0
        %v3824 = vadd.f32 %v3663, %v3823
        %v3825 = vpop.f32.mrb[0].mxu0
        %3826 = vmatprep.mubr.bf16.mxu0 %v2152
        %3827 = vmatmul.mubr.bf16.gmra.mrb[0].mxu0 %v2036
        %v3828 = vpop.f32.mrb[0].mxu0
        %v3829 = vadd.f32 %v3668, %v3828
        %v3830 = vpop.f32.mrb[0].mxu0
        %v3831 = vpop.f32.mrb[0].mxu0
        %v3832 = vadd.f32 %v3671, %v3831
        %v3833 = vpop.f32.mrb[0].mxu0
        %3834 = vmatprep.mubr.bf16.mxu0 %v2153
        %3835 = vmatmul.mubr.bf16.gmra.mrb[0].mxu0 %v2039
        %v3836 = vpop.f32.mrb[0].mxu0
        %v3837 = vadd.f32 %v3676, %v3836
        %v3838 = vpop.f32.mrb[0].mxu0
        %v3839 = vpop.f32.mrb[0].mxu0
        %v3840 = vadd.f32 %v3679, %v3839
        %v3841 = vpop.f32.mrb[0].mxu0
        %3842 = vmatprep.mubr.bf16.mxu0 %v2154
        %3843 = vmatmul.mubr.bf16.gmra.mrb[0].mxu0 %v2042
        %v3844 = vpop.f32.mrb[0].mxu0
        %v3845 = vadd.f32 %v3684, %v3844
        %v3846 = vpop.f32.mrb[0].mxu0
        %v3847 = vpop.f32.mrb[0].mxu0
        %v3848 = vadd.f32 %v3687, %v3847
        %v3849 = vpop.f32.mrb[0].mxu0
        %3850 = vmatprep.mubr.bf16.mxu0 %v2155
        %3851 = vmatmul.mubr.bf16.gmra.mrb[0].mxu0 %v2045
        %v3852 = vpop.f32.mrb[0].mxu0
        %v3853 = vadd.f32 %v3692, %v3852
        %v3854 = vpop.f32.mrb[0].mxu0
        %v3855 = vpop.f32.mrb[0].mxu0
        %v3856 = vadd.f32 %v3695, %v3855
        %v3857 = vpop.f32.mrb[0].mxu0
        %3858 = vmatprep.mubr.bf16.mxu0 %v2156
        %3859 = vmatmul.mubr.bf16.gmra.mrb[0].mxu0 %v2048
        %v3860 = vpop.f32.mrb[0].mxu0
        %v3861 = vadd.f32 %v3700, %v3860
        %v3862 = vpop.f32.mrb[0].mxu0
        %v3863 = vpop.f32.mrb[0].mxu0
        %v3864 = vadd.f32 %v3703, %v3863
        %v3865 = vpop.f32.mrb[0].mxu0
        %3866 = vmatprep.mubr.bf16.mxu0 %v2157
        %3867 = vmatmul.mubr.bf16.gmra.mrb[0].mxu0 %v2051
        %v3868 = vpop.f32.mrb[0].mxu0
        %v3869 = vadd.f32 %v3708, %v3868
        %v3870 = vpop.f32.mrb[0].mxu0
        %v3871 = vpop.f32.mrb[0].mxu0
        %v3872 = vadd.f32 %v3711, %v3871
        %v3873 = vpop.f32.mrb[0].mxu0
        %3874 = vmatprep.mubr.bf16.mxu0 %v2158
        %3875 = vmatmul.mubr.bf16.gmra.mrb[0].mxu0 %v2054
        %v3876 = vpop.f32.mrb[0].mxu0
        %v3877 = vadd.f32 %v3716, %v3876
        %v3878 = vpop.f32.mrb[0].mxu0
        %v3879 = vpop.f32.mrb[0].mxu0
        %v3880 = vadd.f32 %v3719, %v3879
        %v3881 = vpop.f32.mrb[0].mxu0
        %3882 = vmatprep.mubr.bf16.mxu0 %v2159
        %3883 = vmatmul.mubr.bf16.gmra.mrb[0].mxu0 %v2057
        %v3884 = vpop.f32.mrb[0].mxu0
        %v3885 = vadd.f32 %v3724, %v3884
        %v3886 = vpop.f32.mrb[0].mxu0
        %v3887 = vpop.f32.mrb[0].mxu0
        %v3888 = vadd.f32 %v3727, %v3887
        %v3889 = vpop.f32.mrb[0].mxu0
        %3890 = vmatprep.mubr.bf16.mxu0 %v2160
        %3891 = vmatmul.mubr.bf16.gmra.mrb[0].mxu0 %v2060
        %v3892 = vpop.f32.mrb[0].mxu0
        %v3893 = vadd.f32 %v3732, %v3892
        %v3894 = vpop.f32.mrb[0].mxu0
        %v3895 = vpop.f32.mrb[0].mxu0
        %v3896 = vadd.f32 %v3735, %v3895
        %v3897 = vpop.f32.mrb[0].mxu0
        %3898 = vmatprep.mubr.bf16.mxu0 %v2161
        %3899 = vmatmul.mubr.bf16.gmra.mrb[0].mxu0 %v2063
        %v3900 = vpop.f32.mrb[0].mxu0
        %v3901 = vadd.f32 %v3740, %v3900
        %v3902 = vpop.f32.mrb[0].mxu0
        %v3903 = vpop.f32.mrb[0].mxu0
        %v3904 = vadd.f32 %v3743, %v3903
        %v3905 = vpop.f32.mrb[0].mxu0
        %3906 = vmatprep.mubr.bf16.mxu0 %v2162
        %3907 = vmatmul.mubr.bf16.gmra.mrb[0].mxu0 %v2066
        %v3908 = vpop.f32.mrb[0].mxu0
        %v3909 = vadd.f32 %v3748, %v3908
        %v3910 = vpop.f32.mrb[0].mxu0
        %v3911 = vpop.f32.mrb[0].mxu0
        %v3912 = vadd.f32 %v3751, %v3911
        %v3913 = vpop.f32.mrb[0].mxu0
        %3914 = vdwg.mxu0
        %3915 = vmatprep.subr.bf16.mxu0 0
        %3916 = vmatpush1.bf16.msra.mxu0 %v3481
        %3917 = vmatprep.subr.bf16.mxu0 0
        %3918 = vmatpush1.bf16.msra.mxu0 %v3482
        %3919 = vmatprep.subr.bf16.mxu0 0
        %3920 = vmatpush1.bf16.msra.mxu0 %v3483
        %3921 = vmatprep.subr.bf16.mxu0 0
        %3922 = vmatpush1.bf16.msra.mxu0 %v3484
        %3923 = vmatprep.subr.bf16.mxu0 0
        %3924 = vmatpush1.bf16.msra.mxu0 %v3485
        %3925 = vmatprep.subr.bf16.mxu0 0
        %3926 = vmatpush1.bf16.msra.mxu0 %v3486
        %3927 = vmatprep.subr.bf16.mxu0 0
        %3928 = vmatpush1.bf16.msra.mxu0 %v3487
        %3929 = vmatprep.subr.bf16.mxu0 0
        %3930 = vmatpush1.bf16.msra.mxu0 %v3488
        %3931 = vmatprep.subr.bf16.mxu0 0
        %3932 = vmatpush1.bf16.msra.mxu0 %v3489
        %3933 = vmatprep.subr.bf16.mxu0 0
        %3934 = vmatpush1.bf16.msra.mxu0 %v3490
        %3935 = vmatprep.subr.bf16.mxu0 0
        %3936 = vmatpush1.bf16.msra.mxu0 %v3491
        %3937 = vmatprep.subr.bf16.mxu0 0
        %3938 = vmatpush1.bf16.msra.mxu0 %v3492
        %3939 = vmatprep.subr.bf16.mxu0 0
        %3940 = vmatpush1.bf16.msra.mxu0 %v3493
        %3941 = vmatprep.subr.bf16.mxu0 0
        %3942 = vmatpush1.bf16.msra.mxu0 %v3494
        %3943 = vmatprep.subr.bf16.mxu0 0
        %3944 = vmatpush1.bf16.msra.mxu0 %v3495
        %3945 = vmatprep.subr.bf16.mxu0 0
        %3946 = vmatpush1.bf16.msra.mxu0 %v3496
        %3947 = vmatprep.mubr.bf16.mxu0 %v2485
        %3948 = vmatmul.mubr.bf16.gmra.mrb[0].mxu0 %v2238
        %v3949 = vpop.f32.mrb[0].mxu0
        %v3950 = vadd.f32 %v3789, %v3949
        %v3951 = vpop.f32.mrb[0].mxu0
        %v3952 = vpop.f32.mrb[0].mxu0
        %v3953 = vadd.f32 %v3792, %v3952
        %v3954 = vpop.f32.mrb[0].mxu0
        %3955 = vmatprep.mubr.bf16.mxu0 %v2488
        %3956 = vmatmul.mubr.bf16.gmra.mrb[0].mxu0 %v2250
        %v3957 = vpop.f32.mrb[0].mxu0
        %v3958 = vadd.f32 %v3797, %v3957
        %v3959 = vpop.f32.mrb[0].mxu0
        %v3960 = vpop.f32.mrb[0].mxu0
        %v3961 = vadd.f32 %v3800, %v3960
        %v3962 = vpop.f32.mrb[0].mxu0
        %3963 = vmatprep.mubr.bf16.mxu0 %v2491
        %3964 = vmatmul.mubr.bf16.gmra.mrb[0].mxu0 %v2262
        %v3965 = vpop.f32.mrb[0].mxu0
        %v3966 = vadd.f32 %v3805, %v3965
        %v3967 = vpop.f32.mrb[0].mxu0
        %v3968 = vpop.f32.mrb[0].mxu0
        %v3969 = vadd.f32 %v3808, %v3968
        %v3970 = vpop.f32.mrb[0].mxu0
        %3971 = vmatprep.mubr.bf16.mxu0 %v2494
        %3972 = vmatmul.mubr.bf16.gmra.mrb[0].mxu0 %v2274
        %v3973 = vpop.f32.mrb[0].mxu0
        %v3974 = vadd.f32 %v3813, %v3973
        %v3975 = vpop.f32.mrb[0].mxu0
        %v3976 = vpop.f32.mrb[0].mxu0
        %v3977 = vadd.f32 %v3816, %v3976
        %v3978 = vpop.f32.mrb[0].mxu0
        %3979 = vmatprep.mubr.bf16.mxu0 %v2497
        %3980 = vmatmul.mubr.bf16.gmra.mrb[0].mxu0 %v2286
        %v3981 = vpop.f32.mrb[0].mxu0
        %v3982 = vadd.f32 %v3821, %v3981
        %v3983 = vpop.f32.mrb[0].mxu0
        %v3984 = vpop.f32.mrb[0].mxu0
        %v3985 = vadd.f32 %v3824, %v3984
        %v3986 = vpop.f32.mrb[0].mxu0
        %3987 = vmatprep.mubr.bf16.mxu0 %v2500
        %3988 = vmatmul.mubr.bf16.gmra.mrb[0].mxu0 %v2298
        %v3989 = vpop.f32.mrb[0].mxu0
        %v3990 = vadd.f32 %v3829, %v3989
        %v3991 = vpop.f32.mrb[0].mxu0
        %v3992 = vpop.f32.mrb[0].mxu0
        %v3993 = vadd.f32 %v3832, %v3992
        %v3994 = vpop.f32.mrb[0].mxu0
        %3995 = vmatprep.mubr.bf16.mxu0 %v2503
        %3996 = vmatmul.mubr.bf16.gmra.mrb[0].mxu0 %v2310
        %v3997 = vpop.f32.mrb[0].mxu0
        %v3998 = vadd.f32 %v3837, %v3997
        %v3999 = vpop.f32.mrb[0].mxu0
        %v4000 = vpop.f32.mrb[0].mxu0
        %v4001 = vadd.f32 %v3840, %v4000
        %v4002 = vpop.f32.mrb[0].mxu0
        %4003 = vmatprep.mubr.bf16.mxu0 %v2506
        %4004 = vmatmul.mubr.bf16.gmra.mrb[0].mxu0 %v2322
        %v4005 = vpop.f32.mrb[0].mxu0
        %v4006 = vadd.f32 %v3845, %v4005
        %v4007 = vpop.f32.mrb[0].mxu0
        %v4008 = vpop.f32.mrb[0].mxu0
        %v4009 = vadd.f32 %v3848, %v4008
        %v4010 = vpop.f32.mrb[0].mxu0
        %4011 = vmatprep.mubr.bf16.mxu0 %v2509
        %4012 = vmatmul.mubr.bf16.gmra.mrb[0].mxu0 %v2334
        %v4013 = vpop.f32.mrb[0].mxu0
        %v4014 = vadd.f32 %v3853, %v4013
        %v4015 = vpop.f32.mrb[0].mxu0
        %v4016 = vpop.f32.mrb[0].mxu0
        %v4017 = vadd.f32 %v3856, %v4016
        %v4018 = vpop.f32.mrb[0].mxu0
        %4019 = vmatprep.mubr.bf16.mxu0 %v2512
        %4020 = vmatmul.mubr.bf16.gmra.mrb[0].mxu0 %v2346
        %v4021 = vpop.f32.mrb[0].mxu0
        %v4022 = vadd.f32 %v3861, %v4021
        %v4023 = vpop.f32.mrb[0].mxu0
        %v4024 = vpop.f32.mrb[0].mxu0
        %v4025 = vadd.f32 %v3864, %v4024
        %v4026 = vpop.f32.mrb[0].mxu0
        %4027 = vmatprep.mubr.bf16.mxu0 %v2515
        %4028 = vmatmul.mubr.bf16.gmra.mrb[0].mxu0 %v2358
        %v4029 = vpop.f32.mrb[0].mxu0
        %v4030 = vadd.f32 %v3869, %v4029
        %v4031 = vpop.f32.mrb[0].mxu0
        %v4032 = vpop.f32.mrb[0].mxu0
        %v4033 = vadd.f32 %v3872, %v4032
        %v4034 = vpop.f32.mrb[0].mxu0
        %4035 = vmatprep.mubr.bf16.mxu0 %v2518
        %4036 = vmatmul.mubr.bf16.gmra.mrb[0].mxu0 %v2370
        %v4037 = vpop.f32.mrb[0].mxu0
        %v4038 = vadd.f32 %v3877, %v4037
        %v4039 = vpop.f32.mrb[0].mxu0
        %v4040 = vpop.f32.mrb[0].mxu0
        %v4041 = vadd.f32 %v3880, %v4040
        %v4042 = vpop.f32.mrb[0].mxu0
        %4043 = vmatprep.mubr.bf16.mxu0 %v2521
        %4044 = vmatmul.mubr.bf16.gmra.mrb[0].mxu0 %v2382
        %v4045 = vpop.f32.mrb[0].mxu0
        %v4046 = vadd.f32 %v3885, %v4045
        %v4047 = vpop.f32.mrb[0].mxu0
        %v4048 = vpop.f32.mrb[0].mxu0
        %v4049 = vadd.f32 %v3888, %v4048
        %v4050 = vpop.f32.mrb[0].mxu0
        %4051 = vmatprep.mubr.bf16.mxu0 %v2524
        %4052 = vmatmul.mubr.bf16.gmra.mrb[0].mxu0 %v2394
        %v4053 = vpop.f32.mrb[0].mxu0
        %v4054 = vadd.f32 %v3893, %v4053
        %v4055 = vpop.f32.mrb[0].mxu0
        %v4056 = vpop.f32.mrb[0].mxu0
        %v4057 = vadd.f32 %v3896, %v4056
        %v4058 = vpop.f32.mrb[0].mxu0
        %4059 = vmatprep.mubr.bf16.mxu0 %v2527
        %4060 = vmatmul.mubr.bf16.gmra.mrb[0].mxu0 %v2406
        %v4061 = vpop.f32.mrb[0].mxu0
        %v4062 = vadd.f32 %v3901, %v4061
        %v4063 = vpop.f32.mrb[0].mxu0
        %v4064 = vpop.f32.mrb[0].mxu0
        %v4065 = vadd.f32 %v3904, %v4064
        %v4066 = vpop.f32.mrb[0].mxu0
        %4067 = vmatprep.mubr.bf16.mxu0 %v2530
        %4068 = vmatmul.mubr.bf16.gmra.mrb[0].mxu0 %v2418
        %v4069 = vpop.f32.mrb[0].mxu0
        %v4070 = vadd.f32 %v3909, %v4069
        %v4071 = vpop.f32.mrb[0].mxu0
        %v4072 = vpop.f32.mrb[0].mxu0
        %v4073 = vadd.f32 %v3912, %v4072
        %v4074 = vpop.f32.mrb[0].mxu0
        %4075 = vdwg.mxu0
        %4076 = vmatprep.subr.bf16.mxu0 0
        %4077 = vmatpush1.bf16.msra.mxu0 %v3497
        %4078 = vmatprep.subr.bf16.mxu0 0
        %4079 = vmatpush1.bf16.msra.mxu0 %v3498
        %4080 = vmatprep.subr.bf16.mxu0 0
        %4081 = vmatpush1.bf16.msra.mxu0 %v3499
        %4082 = vmatprep.subr.bf16.mxu0 0
        %4083 = vmatpush1.bf16.msra.mxu0 %v3500
        %4084 = vmatprep.subr.bf16.mxu0 0
        %4085 = vmatpush1.bf16.msra.mxu0 %v3501
        %4086 = vmatprep.subr.bf16.mxu0 0
        %4087 = vmatpush1.bf16.msra.mxu0 %v3502
        %4088 = vmatprep.subr.bf16.mxu0 0
        %4089 = vmatpush1.bf16.msra.mxu0 %v3503
        %4090 = vmatprep.subr.bf16.mxu0 0
        %4091 = vmatpush1.bf16.msra.mxu0 %v3504
        %4092 = vmatprep.subr.bf16.mxu0 0
        %4093 = vmatpush1.bf16.msra.mxu0 %v3505
        %4094 = vmatprep.subr.bf16.mxu0 0
        %4095 = vmatpush1.bf16.msra.mxu0 %v3506
        %4096 = vmatprep.subr.bf16.mxu0 0
        %4097 = vmatpush1.bf16.msra.mxu0 %v3507
        %4098 = vmatprep.subr.bf16.mxu0 0
        %4099 = vmatpush1.bf16.msra.mxu0 %v3508
        %4100 = vmatprep.subr.bf16.mxu0 0
        %4101 = vmatpush1.bf16.msra.mxu0 %v3509
        %4102 = vmatprep.subr.bf16.mxu0 0
        %4103 = vmatpush1.bf16.msra.mxu0 %v3510
        %4104 = vmatprep.subr.bf16.mxu0 0
        %4105 = vmatpush1.bf16.msra.mxu0 %v3511
        %4106 = vmatprep.subr.bf16.mxu0 0
        %4107 = vmatpush1.bf16.msra.mxu0 %v3512
        %4108 = vmatprep.mubr.bf16.mxu0 %v2702
        %4109 = vmatmul.mubr.bf16.gmra.mrb[0].mxu0 %v2611
        %v4110 = vpop.f32.mrb[0].mxu0
        %v4111 = vadd.f32 %v3950, %v4110
        %v4112 = vpop.f32.mrb[0].mxu0
        %v4113 = vpop.f32.mrb[0].mxu0
        %v4114 = vadd.f32 %v3953, %v4113
        %v4115 = vpop.f32.mrb[0].mxu0
        %4116 = vmatprep.mubr.bf16.mxu0 %v2714
        %4117 = vmatmul.mubr.bf16.gmra.mrb[0].mxu0 %v2612
        %v4118 = vpop.f32.mrb[0].mxu0
        %v4119 = vadd.f32 %v3958, %v4118
        %v4120 = vpop.f32.mrb[0].mxu0
        %v4121 = vpop.f32.mrb[0].mxu0
        %v4122 = vadd.f32 %v3961, %v4121
        %v4123 = vpop.f32.mrb[0].mxu0
        %4124 = vmatprep.mubr.bf16.mxu0 %v2726
        %4125 = vmatmul.mubr.bf16.gmra.mrb[0].mxu0 %v2613
        %v4126 = vpop.f32.mrb[0].mxu0
        %v4127 = vadd.f32 %v3966, %v4126
        %v4128 = vpop.f32.mrb[0].mxu0
        %v4129 = vpop.f32.mrb[0].mxu0
        %v4130 = vadd.f32 %v3969, %v4129
        %v4131 = vpop.f32.mrb[0].mxu0
        %4132 = vmatprep.mubr.bf16.mxu0 %v2738
        %4133 = vmatmul.mubr.bf16.gmra.mrb[0].mxu0 %v2614
        %v4134 = vpop.f32.mrb[0].mxu0
        %v4135 = vadd.f32 %v3974, %v4134
        %v4136 = vpop.f32.mrb[0].mxu0
        %v4137 = vpop.f32.mrb[0].mxu0
        %v4138 = vadd.f32 %v3977, %v4137
        %v4139 = vpop.f32.mrb[0].mxu0
        %4140 = vmatprep.mubr.bf16.mxu0 %v2750
        %4141 = vmatmul.mubr.bf16.gmra.mrb[0].mxu0 %v2615
        %v4142 = vpop.f32.mrb[0].mxu0
        %v4143 = vadd.f32 %v3982, %v4142
        %v4144 = vpop.f32.mrb[0].mxu0
        %v4145 = vpop.f32.mrb[0].mxu0
        %v4146 = vadd.f32 %v3985, %v4145
        %v4147 = vpop.f32.mrb[0].mxu0
        %4148 = vmatprep.mubr.bf16.mxu0 %v2762
        %4149 = vmatmul.mubr.bf16.gmra.mrb[0].mxu0 %v2616
        %v4150 = vpop.f32.mrb[0].mxu0
        %v4151 = vadd.f32 %v3990, %v4150
        %v4152 = vpop.f32.mrb[0].mxu0
        %v4153 = vpop.f32.mrb[0].mxu0
        %v4154 = vadd.f32 %v3993, %v4153
        %v4155 = vpop.f32.mrb[0].mxu0
        %4156 = vmatprep.mubr.bf16.mxu0 %v2774
        %4157 = vmatmul.mubr.bf16.gmra.mrb[0].mxu0 %v2617
        %v4158 = vpop.f32.mrb[0].mxu0
        %v4159 = vadd.f32 %v3998, %v4158
        %v4160 = vpop.f32.mrb[0].mxu0
        %v4161 = vpop.f32.mrb[0].mxu0
        %v4162 = vadd.f32 %v4001, %v4161
        %v4163 = vpop.f32.mrb[0].mxu0
        %4164 = vmatprep.mubr.bf16.mxu0 %v2786
        %4165 = vmatmul.mubr.bf16.gmra.mrb[0].mxu0 %v2618
        %v4166 = vpop.f32.mrb[0].mxu0
        %v4167 = vadd.f32 %v4006, %v4166
        %v4168 = vpop.f32.mrb[0].mxu0
        %v4169 = vpop.f32.mrb[0].mxu0
        %v4170 = vadd.f32 %v4009, %v4169
        %v4171 = vpop.f32.mrb[0].mxu0
        %4172 = vmatprep.mubr.bf16.mxu0 %v2798
        %4173 = vmatmul.mubr.bf16.gmra.mrb[0].mxu0 %v2619
        %v4174 = vpop.f32.mrb[0].mxu0
        %v4175 = vadd.f32 %v4014, %v4174
        %v4176 = vpop.f32.mrb[0].mxu0
        %v4177 = vpop.f32.mrb[0].mxu0
        %v4178 = vadd.f32 %v4017, %v4177
        %v4179 = vpop.f32.mrb[0].mxu0
        %4180 = vmatprep.mubr.bf16.mxu0 %v2810
        %4181 = vmatmul.mubr.bf16.gmra.mrb[0].mxu0 %v2620
        %v4182 = vpop.f32.mrb[0].mxu0
        %v4183 = vadd.f32 %v4022, %v4182
        %v4184 = vpop.f32.mrb[0].mxu0
        %v4185 = vpop.f32.mrb[0].mxu0
        %v4186 = vadd.f32 %v4025, %v4185
        %v4187 = vpop.f32.mrb[0].mxu0
        %4188 = vmatprep.mubr.bf16.mxu0 %v2822
        %4189 = vmatmul.mubr.bf16.gmra.mrb[0].mxu0 %v2621
        %v4190 = vpop.f32.mrb[0].mxu0
        %v4191 = vadd.f32 %v4030, %v4190
        %v4192 = vpop.f32.mrb[0].mxu0
        %v4193 = vpop.f32.mrb[0].mxu0
        %v4194 = vadd.f32 %v4033, %v4193
        %v4195 = vpop.f32.mrb[0].mxu0
        %4196 = vmatprep.mubr.bf16.mxu0 %v2834
        %4197 = vmatmul.mubr.bf16.gmra.mrb[0].mxu0 %v2622
        %v4198 = vpop.f32.mrb[0].mxu0
        %v4199 = vadd.f32 %v4038, %v4198
        %v4200 = vpop.f32.mrb[0].mxu0
        %v4201 = vpop.f32.mrb[0].mxu0
        %v4202 = vadd.f32 %v4041, %v4201
        %v4203 = vpop.f32.mrb[0].mxu0
        %4204 = vmatprep.mubr.bf16.mxu0 %v2846
        %4205 = vmatmul.mubr.bf16.gmra.mrb[0].mxu0 %v2623
        %v4206 = vpop.f32.mrb[0].mxu0
        %v4207 = vadd.f32 %v4046, %v4206
        %v4208 = vpop.f32.mrb[0].mxu0
        %v4209 = vpop.f32.mrb[0].mxu0
        %v4210 = vadd.f32 %v4049, %v4209
        %v4211 = vpop.f32.mrb[0].mxu0
        %4212 = vmatprep.mubr.bf16.mxu0 %v2858
        %4213 = vmatmul.mubr.bf16.gmra.mrb[0].mxu0 %v2624
        %v4214 = vpop.f32.mrb[0].mxu0
        %v4215 = vadd.f32 %v4054, %v4214
        %v4216 = vpop.f32.mrb[0].mxu0
        %v4217 = vpop.f32.mrb[0].mxu0
        %v4218 = vadd.f32 %v4057, %v4217
        %v4219 = vpop.f32.mrb[0].mxu0
        %4220 = vmatprep.mubr.bf16.mxu0 %v2870
        %4221 = vmatmul.mubr.bf16.gmra.mrb[0].mxu0 %v2625
        %v4222 = vpop.f32.mrb[0].mxu0
        %v4223 = vadd.f32 %v4062, %v4222
        %v4224 = vpop.f32.mrb[0].mxu0
        %v4225 = vpop.f32.mrb[0].mxu0
        %v4226 = vadd.f32 %v4065, %v4225
        %v4227 = vpop.f32.mrb[0].mxu0
        %4228 = vmatprep.mubr.bf16.mxu0 %v2882
        %4229 = vmatmul.mubr.bf16.gmra.mrb[0].mxu0 %v2626
        %v4230 = vpop.f32.mrb[0].mxu0
        %v4231 = vadd.f32 %v4070, %v4230
        %v4232 = vpop.f32.mrb[0].mxu0
        %v4233 = vpop.f32.mrb[0].mxu0
        %v4234 = vadd.f32 %v4073, %v4233
        %v4235 = vpop.f32.mrb[0].mxu0
        %4236 = vdwg.mxu0
        %4237 = vmatprep.subr.bf16.mxu0 0
        %4238 = vmatpush1.bf16.msra.mxu0 %v3513
        %4239 = vmatprep.subr.bf16.mxu0 0
        %4240 = vmatpush1.bf16.msra.mxu0 %v3514
        %4241 = vmatprep.subr.bf16.mxu0 0
        %4242 = vmatpush1.bf16.msra.mxu0 %v3515
        %4243 = vmatprep.subr.bf16.mxu0 0
        %4244 = vmatpush1.bf16.msra.mxu0 %v3516
        %4245 = vmatprep.subr.bf16.mxu0 0
        %4246 = vmatpush1.bf16.msra.mxu0 %v3517
        %4247 = vmatprep.subr.bf16.mxu0 0
        %4248 = vmatpush1.bf16.msra.mxu0 %v3518
        %4249 = vmatprep.subr.bf16.mxu0 0
        %4250 = vmatpush1.bf16.msra.mxu0 %v3519
        %4251 = vmatprep.subr.bf16.mxu0 0
        %4252 = vmatpush1.bf16.msra.mxu0 %v3520
        %4253 = vmatprep.subr.bf16.mxu0 0
        %4254 = vmatpush1.bf16.msra.mxu0 0
        %4255 = vmatprep.subr.bf16.mxu0 0
        %4256 = vmatpush1.bf16.msra.mxu0 0
        %4257 = vmatprep.subr.bf16.mxu0 0
        %4258 = vmatpush1.bf16.msra.mxu0 0
        %4259 = vmatprep.subr.bf16.mxu0 0
        %4260 = vmatpush1.bf16.msra.mxu0 0
        %4261 = vmatprep.subr.bf16.mxu0 0
        %4262 = vmatpush1.bf16.msra.mxu0 0
        %4263 = vmatprep.subr.bf16.mxu0 0
        %4264 = vmatpush1.bf16.msra.mxu0 0
        %4265 = vmatprep.subr.bf16.mxu0 0
        %4266 = vmatpush1.bf16.msra.mxu0 0
        %4267 = vmatprep.subr.bf16.mxu0 0
        %4268 = vmatpush1.bf16.msra.mxu0 0
        %4269 = vmatprep.mubr.bf16.mxu0 0
        %4270 = vmatmul.mubr.bf16.gmra.mrb[0].mxu0 %v2949
        %v4271 = vpop.f32.mrb[0].mxu0
        %v4272 = vadd.f32 %v4111, %v4271
        %v4273 = vpop.f32.mrb[0].mxu0
        %v4274 = vpop.f32.mrb[0].mxu0
        %v4275 = vadd.f32 %v4114, %v4274
        %v4276 = vpop.f32.mrb[0].mxu0
        %4277 = vmatprep.mubr.bf16.mxu0 0
        %4278 = vmatmul.mubr.bf16.gmra.mrb[0].mxu0 %v2952
        %v4279 = vpop.f32.mrb[0].mxu0
        %v4280 = vadd.f32 %v4119, %v4279
        %v4281 = vpop.f32.mrb[0].mxu0
        %v4282 = vpop.f32.mrb[0].mxu0
        %v4283 = vadd.f32 %v4122, %v4282
        %v4284 = vpop.f32.mrb[0].mxu0
        %4285 = vmatprep.mubr.bf16.mxu0 0
        %4286 = vmatmul.mubr.bf16.gmra.mrb[0].mxu0 %v2955
        %v4287 = vpop.f32.mrb[0].mxu0
        %v4288 = vadd.f32 %v4127, %v4287
        %v4289 = vpop.f32.mrb[0].mxu0
        %v4290 = vpop.f32.mrb[0].mxu0
        %v4291 = vadd.f32 %v4130, %v4290
        %v4292 = vpop.f32.mrb[0].mxu0
        %4293 = vmatprep.mubr.bf16.mxu0 0
        %4294 = vmatmul.mubr.bf16.gmra.mrb[0].mxu0 %v2958
        %v4295 = vpop.f32.mrb[0].mxu0
        %v4296 = vadd.f32 %v4135, %v4295
        %v4297 = vpop.f32.mrb[0].mxu0
        %v4298 = vpop.f32.mrb[0].mxu0
        %v4299 = vadd.f32 %v4138, %v4298
        %v4300 = vpop.f32.mrb[0].mxu0
        %4301 = vmatprep.mubr.bf16.mxu0 0
        %4302 = vmatmul.mubr.bf16.gmra.mrb[0].mxu0 %v2961
        %v4303 = vpop.f32.mrb[0].mxu0
        %v4304 = vadd.f32 %v4143, %v4303
        %v4305 = vpop.f32.mrb[0].mxu0
        %v4306 = vpop.f32.mrb[0].mxu0
        %v4307 = vadd.f32 %v4146, %v4306
        %v4308 = vpop.f32.mrb[0].mxu0
        %4309 = vmatprep.mubr.bf16.mxu0 0
        %4310 = vmatmul.mubr.bf16.gmra.mrb[0].mxu0 %v2964
        %v4311 = vpop.f32.mrb[0].mxu0
        %v4312 = vadd.f32 %v4151, %v4311
        %v4313 = vpop.f32.mrb[0].mxu0
        %v4314 = vpop.f32.mrb[0].mxu0
        %v4315 = vadd.f32 %v4154, %v4314
        %v4316 = vpop.f32.mrb[0].mxu0
        %4317 = vmatprep.mubr.bf16.mxu0 0
        %4318 = vmatmul.mubr.bf16.gmra.mrb[0].mxu0 %v2967
        %v4319 = vpop.f32.mrb[0].mxu0
        %v4320 = vadd.f32 %v4159, %v4319
        %v4321 = vpop.f32.mrb[0].mxu0
        %v4322 = vpop.f32.mrb[0].mxu0
        %v4323 = vadd.f32 %v4162, %v4322
        %v4324 = vpop.f32.mrb[0].mxu0
        %4325 = vmatprep.mubr.bf16.mxu0 0
        %4326 = vmatmul.mubr.bf16.gmra.mrb[0].mxu0 %v2970
        %v4327 = vpop.f32.mrb[0].mxu0
        %v4328 = vadd.f32 %v4167, %v4327
        %v4329 = vpop.f32.mrb[0].mxu0
        %v4330 = vpop.f32.mrb[0].mxu0
        %v4331 = vadd.f32 %v4170, %v4330
        %v4332 = vpop.f32.mrb[0].mxu0
        %4333 = vmatprep.mubr.bf16.mxu0 0
        %4334 = vmatmul.mubr.bf16.gmra.mrb[0].mxu0 %v2973
        %v4335 = vpop.f32.mrb[0].mxu0
        %v4336 = vadd.f32 %v4175, %v4335
        %v4337 = vpop.f32.mrb[0].mxu0
        %v4338 = vpop.f32.mrb[0].mxu0
        %v4339 = vadd.f32 %v4178, %v4338
        %v4340 = vpop.f32.mrb[0].mxu0
        %4341 = vmatprep.mubr.bf16.mxu0 0
        %4342 = vmatmul.mubr.bf16.gmra.mrb[0].mxu0 %v2976
        %v4343 = vpop.f32.mrb[0].mxu0
        %v4344 = vadd.f32 %v4183, %v4343
        %v4345 = vpop.f32.mrb[0].mxu0
        %v4346 = vpop.f32.mrb[0].mxu0
        %v4347 = vadd.f32 %v4186, %v4346
        %v4348 = vpop.f32.mrb[0].mxu0
        %4349 = vmatprep.mubr.bf16.mxu0 0
        %4350 = vmatmul.mubr.bf16.gmra.mrb[0].mxu0 %v2979
        %v4351 = vpop.f32.mrb[0].mxu0
        %v4352 = vadd.f32 %v4191, %v4351
        %v4353 = vpop.f32.mrb[0].mxu0
        %v4354 = vpop.f32.mrb[0].mxu0
        %v4355 = vadd.f32 %v4194, %v4354
        %v4356 = vpop.f32.mrb[0].mxu0
        %4357 = vmatprep.mubr.bf16.mxu0 0
        %4358 = vmatmul.mubr.bf16.gmra.mrb[0].mxu0 %v2982
        %v4359 = vpop.f32.mrb[0].mxu0
        %v4360 = vadd.f32 %v4199, %v4359
        %v4361 = vpop.f32.mrb[0].mxu0
        %v4362 = vpop.f32.mrb[0].mxu0
        %v4363 = vadd.f32 %v4202, %v4362
        %v4364 = vpop.f32.mrb[0].mxu0
        %4365 = vmatprep.mubr.bf16.mxu0 0
        %4366 = vmatmul.mubr.bf16.gmra.mrb[0].mxu0 %v2985
        %v4367 = vpop.f32.mrb[0].mxu0
        %v4368 = vadd.f32 %v4207, %v4367
        %v4369 = vpop.f32.mrb[0].mxu0
        %v4370 = vpop.f32.mrb[0].mxu0
        %v4371 = vadd.f32 %v4210, %v4370
        %v4372 = vpop.f32.mrb[0].mxu0
        %4373 = vmatprep.mubr.bf16.mxu0 0
        %4374 = vmatmul.mubr.bf16.gmra.mrb[0].mxu0 %v2988
        %v4375 = vpop.f32.mrb[0].mxu0
        %v4376 = vadd.f32 %v4215, %v4375
        %v4377 = vpop.f32.mrb[0].mxu0
        %v4378 = vpop.f32.mrb[0].mxu0
        %v4379 = vadd.f32 %v4218, %v4378
        %v4380 = vpop.f32.mrb[0].mxu0
        %4381 = vmatprep.mubr.bf16.mxu0 0
        %4382 = vmatmul.mubr.bf16.gmra.mrb[0].mxu0 %v2991
        %v4383 = vpop.f32.mrb[0].mxu0
        %v4384 = vadd.f32 %v4223, %v4383
        %v4385 = vpop.f32.mrb[0].mxu0
        %v4386 = vpop.f32.mrb[0].mxu0
        %v4387 = vadd.f32 %v4226, %v4386
        %v4388 = vpop.f32.mrb[0].mxu0
        %4389 = vmatprep.mubr.bf16.mxu0 0
        %4390 = vmatmul.mubr.bf16.gmra.mrb[0].mxu0 %v2994
        %v4391 = vpop.f32.mrb[0].mxu0
        %v4392 = vadd.f32 %v4231, %v4391
        %v4393 = vpop.f32.mrb[0].mxu0
        %v4394 = vpop.f32.mrb[0].mxu0
        %v4395 = vadd.f32 %v4234, %v4394
        %v4396 = vpop.f32.mrb[0].mxu0
        %4397 = vdwg.mxu0
        %v4398 = vmax.f32 %v4272, 0.0
        %v4399 = vmax.f32 %v4275, 0.0
        %v4400 = vmax.f32 %v4280, 0.0
        %v4401 = vmax.f32 %v4283, 0.0
        %v4402 = vmax.f32 %v4288, 0.0
        %v4403 = vmax.f32 %v4291, 0.0
        %v4404 = vmax.f32 %v4296, 0.0
        %v4405 = vmax.f32 %v4299, 0.0
        %v4406 = vmax.f32 %v4304, 0.0
        %v4407 = vmax.f32 %v4307, 0.0
        %v4408 = vmax.f32 %v4312, 0.0
        %v4409 = vmax.f32 %v4315, 0.0
        %v4410 = vmax.f32 %v4320, 0.0
        %v4411 = vmax.f32 %v4323, 0.0
        %v4412 = vmax.f32 %v4328, 0.0
        %v4413 = vmax.f32 %v4331, 0.0
        %v4414 = vmax.f32 %v4336, 0.0
        %v4415 = vmax.f32 %v4339, 0.0
        %v4416 = vmax.f32 %v4344, 0.0
        %v4417 = vmax.f32 %v4347, 0.0
        %v4418 = vmax.f32 %v4352, 0.0
        %v4419 = vmax.f32 %v4355, 0.0
        %v4420 = vmax.f32 %v4360, 0.0
        %v4421 = vmax.f32 %v4363, 0.0
        %v4422 = vmax.f32 %v4368, 0.0
        %v4423 = vmax.f32 %v4371, 0.0
        %v4424 = vmax.f32 %v4376, 0.0
        %v4425 = vmax.f32 %v4379, 0.0
        %v4426 = vmax.f32 %v4384, 0.0
        %v4427 = vmax.f32 %v4387, 0.0
        %v4428 = vmax.f32 %v4392, 0.0
        %v4429 = vmax.f32 %v4395, 0.0
        %v4430 = vpack.c.bf16 %v4399, %v4398
        %v4431 = vpack.c.bf16 %v4401, %v4400
        %v4432 = vpack.c.bf16 %v4403, %v4402
        %v4433 = vpack.c.bf16 %v4405, %v4404
        %v4434 = vpack.c.bf16 %v4407, %v4406
        %v4435 = vpack.c.bf16 %v4409, %v4408
        %v4436 = vpack.c.bf16 %v4411, %v4410
        %v4437 = vpack.c.bf16 %v4413, %v4412
        %v4438 = vpack.c.bf16 %v4415, %v4414
        %v4439 = vpack.c.bf16 %v4417, %v4416
        %v4440 = vpack.c.bf16 %v4419, %v4418
        %v4441 = vpack.c.bf16 %v4421, %v4420
        %v4442 = vpack.c.bf16 %v4423, %v4422
        %v4443 = vpack.c.bf16 %v4425, %v4424
        %v4444 = vpack.c.bf16 %v4427, %v4426
        %v4445 = vpack.c.bf16 %v4429, %v4428
        %v4446 = vld [vmem:[#allocation9] sm:$0xf]
        %v4447 = vld [vmem:[#allocation9 + $0x4] sm:$0xf]
        %v4448 = vld [vmem:[#allocation9 + $0x8] sm:$0xf]
        %v4449 = vld [vmem:[#allocation9 + $0xc] sm:$0xf]
        %v4450 = vld [vmem:[#allocation9 + $0x10] sm:$0xf]
        %v4451 = vld [vmem:[#allocation9 + $0x14] sm:$0xf]
        %v4452 = vld [vmem:[#allocation9 + $0x18] sm:$0xf]
        %v4453 = vld [vmem:[#allocation9 + $0x1c] sm:$0xf]
        %v4454 = vld [vmem:[#allocation9 + $0x20] sm:$0xf]
        %v4455 = vld [vmem:[#allocation9 + $0x24] sm:$0xf]
        %v4456 = vld [vmem:[#allocation9 + $0x28] sm:$0xf]
        %v4457 = vld [vmem:[#allocation9 + $0x2c] sm:$0xf]
        %v4458 = vld [vmem:[#allocation9 + $0x30] sm:$0xf]
        %v4459 = vld [vmem:[#allocation9 + $0x34] sm:$0xf]
        %v4460 = vld [vmem:[#allocation9 + $0x38] sm:$0xf]
        %v4461 = vld [vmem:[#allocation9 + $0x3c] sm:$0xf]
        %s4462 = smul.u32 0, 2
        %s4463 = smul.addr %s4462, 4
        %s4464 = scalar_lea.vmem %s323, %s4463 [#allocation3]
        %v4465 = vld [vmem:[%s4464] sm:$0xf]
        %v4466 = vld [vmem:[%s4464 + $0x4] sm:$0xf]
        %v4467 = vld [vmem:[%s4464 + $0x8] sm:$0xf]
        %v4468 = vld [vmem:[%s4464 + $0xc] sm:$0xf]
        %v4469 = vld [vmem:[%s4464 + $0x10] sm:$0xf]
        %v4470 = vld [vmem:[%s4464 + $0x14] sm:$0xf]
        %v4471 = vld [vmem:[%s4464 + $0x18] sm:$0xf]
        %v4472 = vld [vmem:[%s4464 + $0x1c] sm:$0xf]
        %v4473 = vld [vmem:[%s4464 + $0x20] sm:$0xf]
        %v4474 = vld [vmem:[%s4464 + $0x24] sm:$0xf]
        %v4475 = vld [vmem:[%s4464 + $0x28] sm:$0xf]
        %v4476 = vld [vmem:[%s4464 + $0x2c] sm:$0xf]
        %v4477 = vld [vmem:[%s4464 + $0x30] sm:$0xf]
        %v4478 = vld [vmem:[%s4464 + $0x34] sm:$0xf]
        %v4479 = vld [vmem:[%s4464 + $0x38] sm:$0xf]
        %v4480 = vld [vmem:[%s4464 + $0x3c] sm:$0xf]
        %v4481 = vld [vmem:[%s4464 + $0x40] sm:$0xf]
        %v4482 = vld [vmem:[%s4464 + $0x44] sm:$0xf]
        %v4483 = vld [vmem:[%s4464 + $0x48] sm:$0xf]
        %v4484 = vld [vmem:[%s4464 + $0x4c] sm:$0xf]
        %v4485 = vld [vmem:[%s4464 + $0x50] sm:$0xf]
        %v4486 = vld [vmem:[%s4464 + $0x54] sm:$0xf]
        %v4487 = vld [vmem:[%s4464 + $0x58] sm:$0xf]
        %v4488 = vld [vmem:[%s4464 + $0x5c] sm:$0xf]
        %v4489 = vld [vmem:[%s4464 + $0x60] sm:$0xf]
        %v4490 = vld [vmem:[%s4464 + $0x64] sm:$0xf]
        %v4491 = vld [vmem:[%s4464 + $0x68] sm:$0xf]
        %v4492 = vld [vmem:[%s4464 + $0x6c] sm:$0xf]
        %v4493 = vld [vmem:[%s4464 + $0x70] sm:$0xf]
        %v4494 = vld [vmem:[%s4464 + $0x74] sm:$0xf]
        %v4495 = vld [vmem:[%s4464 + $0x78] sm:$0xf]
        %v4496 = vld [vmem:[%s4464 + $0x7c] sm:$0xf]
        %v4497 = vunpack.c.l.bf16 %v4465
        %v4498 = vunpack.c.l.bf16 %v4466
        %v4499 = vunpack.c.l.bf16 %v4467
        %v4500 = vunpack.c.l.bf16 %v4468
        %v4501 = vunpack.c.l.bf16 %v4469
        %v4502 = vunpack.c.l.bf16 %v4470
        %v4503 = vunpack.c.l.bf16 %v4471
        %v4504 = vunpack.c.l.bf16 %v4472
        %v4505 = vunpack.c.l.bf16 %v4473
        %v4506 = vunpack.c.l.bf16 %v4474
        %v4507 = vunpack.c.l.bf16 %v4475
        %v4508 = vunpack.c.l.bf16 %v4476
        %v4509 = vunpack.c.l.bf16 %v4477
        %v4510 = vunpack.c.l.bf16 %v4478
        %v4511 = vunpack.c.l.bf16 %v4479
        %v4512 = vunpack.c.l.bf16 %v4480
        %v4513 = vunpack.c.l.bf16 %v4481
        %v4514 = vunpack.c.l.bf16 %v4482
        %v4515 = vunpack.c.l.bf16 %v4483
        %v4516 = vunpack.c.l.bf16 %v4484
        %v4517 = vunpack.c.l.bf16 %v4485
        %v4518 = vunpack.c.l.bf16 %v4486
        %v4519 = vunpack.c.l.bf16 %v4487
        %v4520 = vunpack.c.l.bf16 %v4488
        %v4521 = vunpack.c.l.bf16 %v4489
        %v4522 = vunpack.c.l.bf16 %v4490
        %v4523 = vunpack.c.l.bf16 %v4491
        %v4524 = vunpack.c.l.bf16 %v4492
        %v4525 = vunpack.c.l.bf16 %v4493
        %v4526 = vunpack.c.l.bf16 %v4494
        %v4527 = vunpack.c.l.bf16 %v4495
        %v4528 = vunpack.c.l.bf16 %v4496
        %v4530 = vlaneseq
        %v4531 = vshrl.u32 %v4530, 7
        %v4532 = vsub.s32 0, %v4531
        %v4533 = vrot.slane %v381, %v4532
        %v4551 = vunpack.c.l.b16 %v4446
        %v4552 = vunpack.c.l.b16 %v4447
        %v4553 = vunpack.c.l.b16 %v4448
        %v4554 = vunpack.c.l.b16 %v4449
        %v4555 = vunpack.c.l.b16 %v4450
        %v4556 = vunpack.c.l.b16 %v4451
        %v4557 = vunpack.c.l.b16 %v4452
        %v4558 = vunpack.c.l.b16 %v4453
        %v4559 = vunpack.c.l.b16 %v4454
        %v4560 = vunpack.c.l.b16 %v4455
        %v4561 = vunpack.c.l.b16 %v4456
        %v4562 = vunpack.c.l.b16 %v4457
        %v4563 = vunpack.c.l.b16 %v4458
        %v4564 = vunpack.c.l.b16 %v4459
        %v4565 = vunpack.c.l.b16 %v4460
        %v4566 = vunpack.c.l.b16 %v4461
        %v4567 = vpack.c.b16 %v4552, %v4551
        %v4568 = vpack.c.b16 %v4554, %v4553
        %v4569 = vpack.c.b16 %v4556, %v4555
        %v4570 = vpack.c.b16 %v4558, %v4557
        %v4571 = vpack.c.b16 %v4560, %v4559
        %v4572 = vpack.c.b16 %v4562, %v4561
        %v4573 = vpack.c.b16 %v4564, %v4563
        %v4574 = vpack.c.b16 %v4566, %v4565
        %4583 = vmatprep.subr.bf16.mxu0 0
        %4584 = vmatpush1.bf16.msra.mxu0 %v4567
        %4585 = vmatprep.subr.bf16.mxu0 0
        %4586 = vmatpush1.bf16.msra.mxu0 %v4568
        %4587 = vmatprep.subr.bf16.mxu0 0
        %4588 = vmatpush1.bf16.msra.mxu0 %v4569
        %4589 = vmatprep.subr.bf16.mxu0 0
        %4590 = vmatpush1.bf16.msra.mxu0 %v4570
        %4591 = vmatprep.subr.bf16.mxu0 0
        %4592 = vmatpush1.bf16.msra.mxu0 %v4571
        %4593 = vmatprep.subr.bf16.mxu0 0
        %4594 = vmatpush1.bf16.msra.mxu0 %v4572
        %4595 = vmatprep.subr.bf16.mxu0 0
        %4596 = vmatpush1.bf16.msra.mxu0 %v4573
        %4597 = vmatprep.subr.bf16.mxu0 0
        %4598 = vmatpush1.bf16.msra.mxu0 %v4574
        %4599 = vmatprep.subr.bf16.mxu0 0
        %4600 = vmatpush1.bf16.msra.mxu0 0
        %4601 = vmatprep.subr.bf16.mxu0 0
        %4602 = vmatpush1.bf16.msra.mxu0 0
        %4603 = vmatprep.subr.bf16.mxu0 0
        %4604 = vmatpush1.bf16.msra.mxu0 0
        %4605 = vmatprep.subr.bf16.mxu0 0
        %4606 = vmatpush1.bf16.msra.mxu0 0
        %4607 = vmatprep.subr.bf16.mxu0 0
        %4608 = vmatpush1.bf16.msra.mxu0 0
        %4609 = vmatprep.subr.bf16.mxu0 0
        %4610 = vmatpush1.bf16.msra.mxu0 0
        %4611 = vmatprep.subr.bf16.mxu0 0
        %4612 = vmatpush1.bf16.msra.mxu0 0
        %4613 = vmatprep.subr.bf16.mxu0 0
        %4614 = vmatpush1.bf16.msra.mxu0 0
        %4615 = vmatprep.mubr.bf16.mxu0 0
        %4616 = vmatmul.mubr.bf16.gmra.mrb[0].mxu0 %v4430
        %v4617 = vpop.f32.mrb[0].mxu0
        %v4618 = vadd.f32 %v4533, %v4617
        %v4619 = vpop.f32.mrb[0].mxu0
        %v4620 = vpop.f32.mrb[0].mxu0
        %v4621 = vadd.f32 %v4533, %v4620
        %v4622 = vpop.f32.mrb[0].mxu0
        %4623 = vmatprep.mubr.bf16.mxu0 0
        %4624 = vmatmul.mubr.bf16.gmra.mrb[0].mxu0 %v4431
        %v4625 = vpop.f32.mrb[0].mxu0
        %v4626 = vadd.f32 %v4533, %v4625
        %v4627 = vpop.f32.mrb[0].mxu0
        %v4628 = vpop.f32.mrb[0].mxu0
        %v4629 = vadd.f32 %v4533, %v4628
        %v4630 = vpop.f32.mrb[0].mxu0
        %4631 = vmatprep.mubr.bf16.mxu0 0
        %4632 = vmatmul.mubr.bf16.gmra.mrb[0].mxu0 %v4432
        %v4633 = vpop.f32.mrb[0].mxu0
        %v4634 = vadd.f32 %v4533, %v4633
        %v4635 = vpop.f32.mrb[0].mxu0
        %v4636 = vpop.f32.mrb[0].mxu0
        %v4637 = vadd.f32 %v4533, %v4636
        %v4638 = vpop.f32.mrb[0].mxu0
        %4639 = vmatprep.mubr.bf16.mxu0 0
        %4640 = vmatmul.mubr.bf16.gmra.mrb[0].mxu0 %v4433
        %v4641 = vpop.f32.mrb[0].mxu0
        %v4642 = vadd.f32 %v4533, %v4641
        %v4643 = vpop.f32.mrb[0].mxu0
        %v4644 = vpop.f32.mrb[0].mxu0
        %v4645 = vadd.f32 %v4533, %v4644
        %v4646 = vpop.f32.mrb[0].mxu0
        %4647 = vmatprep.mubr.bf16.mxu0 0
        %4648 = vmatmul.mubr.bf16.gmra.mrb[0].mxu0 %v4434
        %v4649 = vpop.f32.mrb[0].mxu0
        %v4650 = vadd.f32 %v4533, %v4649
        %v4651 = vpop.f32.mrb[0].mxu0
        %v4652 = vpop.f32.mrb[0].mxu0
        %v4653 = vadd.f32 %v4533, %v4652
        %v4654 = vpop.f32.mrb[0].mxu0
        %4655 = vmatprep.mubr.bf16.mxu0 0
        %4656 = vmatmul.mubr.bf16.gmra.mrb[0].mxu0 %v4435
        %v4657 = vpop.f32.mrb[0].mxu0
        %v4658 = vadd.f32 %v4533, %v4657
        %v4659 = vpop.f32.mrb[0].mxu0
        %v4660 = vpop.f32.mrb[0].mxu0
        %v4661 = vadd.f32 %v4533, %v4660
        %v4662 = vpop.f32.mrb[0].mxu0
        %4663 = vmatprep.mubr.bf16.mxu0 0
        %4664 = vmatmul.mubr.bf16.gmra.mrb[0].mxu0 %v4436
        %v4665 = vpop.f32.mrb[0].mxu0
        %v4666 = vadd.f32 %v4533, %v4665
        %v4667 = vpop.f32.mrb[0].mxu0
        %v4668 = vpop.f32.mrb[0].mxu0
        %v4669 = vadd.f32 %v4533, %v4668
        %v4670 = vpop.f32.mrb[0].mxu0
        %4671 = vmatprep.mubr.bf16.mxu0 0
        %4672 = vmatmul.mubr.bf16.gmra.mrb[0].mxu0 %v4437
        %v4673 = vpop.f32.mrb[0].mxu0
        %v4674 = vadd.f32 %v4533, %v4673
        %v4675 = vpop.f32.mrb[0].mxu0
        %v4676 = vpop.f32.mrb[0].mxu0
        %v4677 = vadd.f32 %v4533, %v4676
        %v4678 = vpop.f32.mrb[0].mxu0
        %4679 = vmatprep.mubr.bf16.mxu0 0
        %4680 = vmatmul.mubr.bf16.gmra.mrb[0].mxu0 %v4438
        %v4681 = vpop.f32.mrb[0].mxu0
        %v4682 = vadd.f32 %v4533, %v4681
        %v4683 = vpop.f32.mrb[0].mxu0
        %v4684 = vpop.f32.mrb[0].mxu0
        %v4685 = vadd.f32 %v4533, %v4684
        %v4686 = vpop.f32.mrb[0].mxu0
        %4687 = vmatprep.mubr.bf16.mxu0 0
        %4688 = vmatmul.mubr.bf16.gmra.mrb[0].mxu0 %v4439
        %v4689 = vpop.f32.mrb[0].mxu0
        %v4690 = vadd.f32 %v4533, %v4689
        %v4691 = vpop.f32.mrb[0].mxu0
        %v4692 = vpop.f32.mrb[0].mxu0
        %v4693 = vadd.f32 %v4533, %v4692
        %v4694 = vpop.f32.mrb[0].mxu0
        %4695 = vmatprep.mubr.bf16.mxu0 0
        %4696 = vmatmul.mubr.bf16.gmra.mrb[0].mxu0 %v4440
        %v4697 = vpop.f32.mrb[0].mxu0
        %v4698 = vadd.f32 %v4533, %v4697
        %v4699 = vpop.f32.mrb[0].mxu0
        %v4700 = vpop.f32.mrb[0].mxu0
        %v4701 = vadd.f32 %v4533, %v4700
        %v4702 = vpop.f32.mrb[0].mxu0
        %4703 = vmatprep.mubr.bf16.mxu0 0
        %4704 = vmatmul.mubr.bf16.gmra.mrb[0].mxu0 %v4441
        %v4705 = vpop.f32.mrb[0].mxu0
        %v4706 = vadd.f32 %v4533, %v4705
        %v4707 = vpop.f32.mrb[0].mxu0
        %v4708 = vpop.f32.mrb[0].mxu0
        %v4709 = vadd.f32 %v4533, %v4708
        %v4710 = vpop.f32.mrb[0].mxu0
        %4711 = vmatprep.mubr.bf16.mxu0 0
        %4712 = vmatmul.mubr.bf16.gmra.mrb[0].mxu0 %v4442
        %v4713 = vpop.f32.mrb[0].mxu0
        %v4714 = vadd.f32 %v4533, %v4713
        %v4715 = vpop.f32.mrb[0].mxu0
        %v4716 = vpop.f32.mrb[0].mxu0
        %v4717 = vadd.f32 %v4533, %v4716
        %v4718 = vpop.f32.mrb[0].mxu0
        %4719 = vmatprep.mubr.bf16.mxu0 0
        %4720 = vmatmul.mubr.bf16.gmra.mrb[0].mxu0 %v4443
        %v4721 = vpop.f32.mrb[0].mxu0
        %v4722 = vadd.f32 %v4533, %v4721
        %v4723 = vpop.f32.mrb[0].mxu0
        %v4724 = vpop.f32.mrb[0].mxu0
        %v4725 = vadd.f32 %v4533, %v4724
        %v4726 = vpop.f32.mrb[0].mxu0
        %4727 = vmatprep.mubr.bf16.mxu0 0
        %4728 = vmatmul.mubr.bf16.gmra.mrb[0].mxu0 %v4444
        %v4729 = vpop.f32.mrb[0].mxu0
        %v4730 = vadd.f32 %v4533, %v4729
        %v4731 = vpop.f32.mrb[0].mxu0
        %v4732 = vpop.f32.mrb[0].mxu0
        %v4733 = vadd.f32 %v4533, %v4732
        %v4734 = vpop.f32.mrb[0].mxu0
        %4735 = vmatprep.mubr.bf16.mxu0 0
        %4736 = vmatmul.mubr.bf16.gmra.mrb[0].mxu0 %v4445
        %v4737 = vpop.f32.mrb[0].mxu0
        %v4738 = vadd.f32 %v4533, %v4737
        %v4739 = vpop.f32.mrb[0].mxu0
        %v4740 = vpop.f32.mrb[0].mxu0
        %v4741 = vadd.f32 %v4533, %v4740
        %v4742 = vpop.f32.mrb[0].mxu0
        %4743 = vdwg.mxu0
        %v4744 = vadd.f32 %v4618, %v4497
        %v4745 = vadd.f32 %v4621, %v4498
        %v4746 = vadd.f32 %v4626, %v4499
        %v4747 = vadd.f32 %v4629, %v4500
        %v4748 = vadd.f32 %v4634, %v4501
        %v4749 = vadd.f32 %v4637, %v4502
        %v4750 = vadd.f32 %v4642, %v4503
        %v4751 = vadd.f32 %v4645, %v4504
        %v4752 = vadd.f32 %v4650, %v4505
        %v4753 = vadd.f32 %v4653, %v4506
        %v4754 = vadd.f32 %v4658, %v4507
        %v4755 = vadd.f32 %v4661, %v4508
        %v4756 = vadd.f32 %v4666, %v4509
        %v4757 = vadd.f32 %v4669, %v4510
        %v4758 = vadd.f32 %v4674, %v4511
        %v4759 = vadd.f32 %v4677, %v4512
        %v4760 = vadd.f32 %v4682, %v4513
        %v4761 = vadd.f32 %v4685, %v4514
        %v4762 = vadd.f32 %v4690, %v4515
        %v4763 = vadd.f32 %v4693, %v4516
        %v4764 = vadd.f32 %v4698, %v4517
        %v4765 = vadd.f32 %v4701, %v4518
        %v4766 = vadd.f32 %v4706, %v4519
        %v4767 = vadd.f32 %v4709, %v4520
        %v4768 = vadd.f32 %v4714, %v4521
        %v4769 = vadd.f32 %v4717, %v4522
        %v4770 = vadd.f32 %v4722, %v4523
        %v4771 = vadd.f32 %v4725, %v4524
        %v4772 = vadd.f32 %v4730, %v4525
        %v4773 = vadd.f32 %v4733, %v4526
        %v4774 = vadd.f32 %v4738, %v4527
        %v4775 = vadd.f32 %v4741, %v4528
        %v4776 = vmax.f32 %v4744, 0.0
        %v4777 = vmax.f32 %v4745, 0.0
        %v4778 = vmax.f32 %v4746, 0.0
        %v4779 = vmax.f32 %v4747, 0.0
        %v4780 = vmax.f32 %v4748, 0.0
        %v4781 = vmax.f32 %v4749, 0.0
        %v4782 = vmax.f32 %v4750, 0.0
        %v4783 = vmax.f32 %v4751, 0.0
        %v4784 = vmax.f32 %v4752, 0.0
        %v4785 = vmax.f32 %v4753, 0.0
        %v4786 = vmax.f32 %v4754, 0.0
        %v4787 = vmax.f32 %v4755, 0.0
        %v4788 = vmax.f32 %v4756, 0.0
        %v4789 = vmax.f32 %v4757, 0.0
        %v4790 = vmax.f32 %v4758, 0.0
        %v4791 = vmax.f32 %v4759, 0.0
        %v4792 = vmax.f32 %v4760, 0.0
        %v4793 = vmax.f32 %v4761, 0.0
        %v4794 = vmax.f32 %v4762, 0.0
        %v4795 = vmax.f32 %v4763, 0.0
        %v4796 = vmax.f32 %v4764, 0.0
        %v4797 = vmax.f32 %v4765, 0.0
        %v4798 = vmax.f32 %v4766, 0.0
        %v4799 = vmax.f32 %v4767, 0.0
        %v4800 = vmax.f32 %v4768, 0.0
        %v4801 = vmax.f32 %v4769, 0.0
        %v4802 = vmax.f32 %v4770, 0.0
        %v4803 = vmax.f32 %v4771, 0.0
        %v4804 = vmax.f32 %v4772, 0.0
        %v4805 = vmax.f32 %v4773, 0.0
        %v4806 = vmax.f32 %v4774, 0.0
        %v4807 = vmax.f32 %v4775, 0.0
        %v4808 = vpack.c.bf16 %v4777, %v4776
        %v4809 = vpack.c.bf16 %v4779, %v4778
        %v4810 = vpack.c.bf16 %v4781, %v4780
        %v4811 = vpack.c.bf16 %v4783, %v4782
        %v4812 = vpack.c.bf16 %v4785, %v4784
        %v4813 = vpack.c.bf16 %v4787, %v4786
        %v4814 = vpack.c.bf16 %v4789, %v4788
        %v4815 = vpack.c.bf16 %v4791, %v4790
        %v4816 = vpack.c.bf16 %v4793, %v4792
        %v4817 = vpack.c.bf16 %v4795, %v4794
        %v4818 = vpack.c.bf16 %v4797, %v4796
        %v4819 = vpack.c.bf16 %v4799, %v4798
        %v4820 = vpack.c.bf16 %v4801, %v4800
        %v4821 = vpack.c.bf16 %v4803, %v4802
        %v4822 = vpack.c.bf16 %v4805, %v4804
        %v4823 = vpack.c.bf16 %v4807, %v4806
        %v4840 = vunpack.c.l.b16 %v4808
        %v4841 = vunpack.c.h.b16 %v4808
        %v4842 = vunpack.c.l.b16 %v4809
        %v4843 = vunpack.c.h.b16 %v4809
        %v4844 = vunpack.c.l.b16 %v4810
        %v4845 = vunpack.c.h.b16 %v4810
        %v4846 = vunpack.c.l.b16 %v4811
        %v4847 = vunpack.c.h.b16 %v4811
        %v4848 = vunpack.c.l.b16 %v4812
        %v4849 = vunpack.c.h.b16 %v4812
        %v4850 = vunpack.c.l.b16 %v4813
        %v4851 = vunpack.c.h.b16 %v4813
        %v4852 = vunpack.c.l.b16 %v4814
        %v4853 = vunpack.c.h.b16 %v4814
        %v4854 = vunpack.c.l.b16 %v4815
        %v4855 = vunpack.c.h.b16 %v4815
        %v4856 = vunpack.c.l.b16 %v4816
        %v4857 = vunpack.c.h.b16 %v4816
        %v4858 = vunpack.c.l.b16 %v4817
        %v4859 = vunpack.c.h.b16 %v4817
        %v4860 = vunpack.c.l.b16 %v4818
        %v4861 = vunpack.c.h.b16 %v4818
        %v4862 = vunpack.c.l.b16 %v4819
        %v4863 = vunpack.c.h.b16 %v4819
        %v4864 = vunpack.c.l.b16 %v4820
        %v4865 = vunpack.c.h.b16 %v4820
        %v4866 = vunpack.c.l.b16 %v4821
        %v4867 = vunpack.c.h.b16 %v4821
        %v4868 = vunpack.c.l.b16 %v4822
        %v4869 = vunpack.c.h.b16 %v4822
        %v4870 = vunpack.c.l.b16 %v4823
        %v4871 = vunpack.c.h.b16 %v4823
        %v4872 = vpack.c.b16 %v4840, %v4840
        %v4873 = vpack.c.b16 %v4841, %v4841
        %v4874 = vpack.c.b16 %v4842, %v4842
        %v4875 = vpack.c.b16 %v4843, %v4843
        %v4876 = vpack.c.b16 %v4844, %v4844
        %v4877 = vpack.c.b16 %v4845, %v4845
        %v4878 = vpack.c.b16 %v4846, %v4846
        %v4879 = vpack.c.b16 %v4847, %v4847
        %v4880 = vpack.c.b16 %v4848, %v4848
        %v4881 = vpack.c.b16 %v4849, %v4849
        %v4882 = vpack.c.b16 %v4850, %v4850
        %v4883 = vpack.c.b16 %v4851, %v4851
        %v4884 = vpack.c.b16 %v4852, %v4852
        %v4885 = vpack.c.b16 %v4853, %v4853
        %v4886 = vpack.c.b16 %v4854, %v4854
        %v4887 = vpack.c.b16 %v4855, %v4855
        %v4888 = vpack.c.b16 %v4856, %v4856
        %v4889 = vpack.c.b16 %v4857, %v4857
        %v4890 = vpack.c.b16 %v4858, %v4858
        %v4891 = vpack.c.b16 %v4859, %v4859
        %v4892 = vpack.c.b16 %v4860, %v4860
        %v4893 = vpack.c.b16 %v4861, %v4861
        %v4894 = vpack.c.b16 %v4862, %v4862
        %v4895 = vpack.c.b16 %v4863, %v4863
        %v4896 = vpack.c.b16 %v4864, %v4864
        %v4897 = vpack.c.b16 %v4865, %v4865
        %v4898 = vpack.c.b16 %v4866, %v4866
        %v4899 = vpack.c.b16 %v4867, %v4867
        %v4900 = vpack.c.b16 %v4868, %v4868
        %v4901 = vpack.c.b16 %v4869, %v4869
        %v4902 = vpack.c.b16 %v4870, %v4870
        %v4903 = vpack.c.b16 %v4871, %v4871
        %s4936 = smul.addr %s4462, 4
        %s4937 = scalar_lea.vmem %s377, %s4936 [#allocation15]
        %4938 = vst [vmem:[%s4937] sm:$0xf] %v4872
        %4939 = vst [vmem:[%s4937 + $0x4] sm:$0xf] %v4873
        %4940 = vst [vmem:[%s4937 + $0x8] sm:$0xf] %v4874
        %4941 = vst [vmem:[%s4937 + $0xc] sm:$0xf] %v4875
        %4942 = vst [vmem:[%s4937 + $0x10] sm:$0xf] %v4876
        %4943 = vst [vmem:[%s4937 + $0x14] sm:$0xf] %v4877
        %4944 = vst [vmem:[%s4937 + $0x18] sm:$0xf] %v4878
        %4945 = vst [vmem:[%s4937 + $0x1c] sm:$0xf] %v4879
        %4946 = vst [vmem:[%s4937 + $0x20] sm:$0xf] %v4880
        %4947 = vst [vmem:[%s4937 + $0x24] sm:$0xf] %v4881
        %4948 = vst [vmem:[%s4937 + $0x28] sm:$0xf] %v4882
        %4949 = vst [vmem:[%s4937 + $0x2c] sm:$0xf] %v4883
        %4950 = vst [vmem:[%s4937 + $0x30] sm:$0xf] %v4884
        %4951 = vst [vmem:[%s4937 + $0x34] sm:$0xf] %v4885
        %4952 = vst [vmem:[%s4937 + $0x38] sm:$0xf] %v4886
        %4953 = vst [vmem:[%s4937 + $0x3c] sm:$0xf] %v4887
        %4954 = vst [vmem:[%s4937 + $0x40] sm:$0xf] %v4888
        %4955 = vst [vmem:[%s4937 + $0x44] sm:$0xf] %v4889
        %4956 = vst [vmem:[%s4937 + $0x48] sm:$0xf] %v4890
        %4957 = vst [vmem:[%s4937 + $0x4c] sm:$0xf] %v4891
        %4958 = vst [vmem:[%s4937 + $0x50] sm:$0xf] %v4892
        %4959 = vst [vmem:[%s4937 + $0x54] sm:$0xf] %v4893
        %4960 = vst [vmem:[%s4937 + $0x58] sm:$0xf] %v4894
        %4961 = vst [vmem:[%s4937 + $0x5c] sm:$0xf] %v4895
        %4962 = vst [vmem:[%s4937 + $0x60] sm:$0xf] %v4896
        %4963 = vst [vmem:[%s4937 + $0x64] sm:$0xf] %v4897
        %4964 = vst [vmem:[%s4937 + $0x68] sm:$0xf] %v4898
        %4965 = vst [vmem:[%s4937 + $0x6c] sm:$0xf] %v4899
        %4966 = vst [vmem:[%s4937 + $0x70] sm:$0xf] %v4900
        %4967 = vst [vmem:[%s4937 + $0x74] sm:$0xf] %v4901
        %4968 = vst [vmem:[%s4937 + $0x78] sm:$0xf] %v4902
        %4969 = vst [vmem:[%s4937 + $0x7c] sm:$0xf] %v4903
        %s4970 = sand.u32 %s187, 1
        %s4971 = scalar_lea.sflag [#allocation5], %s4970
        %s4972 = sand.u32 %s187, 1
        %s4973 = smul.addr %s4972, 128
        %s4974 = scalar_lea.vmem [#allocation15], %s4973
        // Predicated region
        $region77: #{bottleneck_forward.1} parent=47 // pred_check
          %p4975 = pneg %p197
        $region78: #{bottleneck_forward.1} parent=47 // pred_check_branch
          %4977 = sbr.rel (%p4975) target = $region80
        $region79: #{bottleneck_forward.1} parent=47 // pred_region
          %s4979 = ssub.s32 2048, 2048
          %4980 = vsyncadd %s4971, %s4979
          %s4981 = smul.addr %s27, 32
          %s4982 = smul.addr %s4981, 64
          %s4983 = scalar_lea.hbm %s7, %s4982
          %s4984 = sshll.u32 %s4974, 4
          %s4985 = int_to_ptr.vmem [resolvable:$true] %s4984
          %4990 = dma.vmem_to_hbm [thread:$0]  %s4985, 2048, %s4983, %s4971, 64, 64, 4
        $region80: #{bottleneck_forward.1} parent=47 // pred_fallthru
          _
      $region48: #{bottleneck_forward.1} parent=5 // pred_fallthru
        _
      %p4991 = scmp.le.s32.totalorder 2, %s22
      // Predicated region
      $region81: #{bottleneck_forward.1} parent=5 // pred_check
        %p4992 = pneg %p4991
      $region82: #{bottleneck_forward.1} parent=5 // pred_check_branch
        %4994 = sbr.rel (%p4992) target = $region84
      $region83: #{bottleneck_forward.1} parent=5 // pred_region
        %s4995 = ssub.s32 %s22, 2
        // Predicated region
        $region85: #{bottleneck_forward.1} parent=83 // pred_check
          %p4996 = pneg %p203
        $region86: #{bottleneck_forward.1} parent=83 // pred_check_branch
          %4998 = sbr.rel (%p4996) target = $region88
        $region87: #{bottleneck_forward.1} parent=83 // pred_region
          %s4999 = sand.u32 %s188, 1
          %s5000 = scalar_lea.sflag [#allocation5], %s4999
          %s5001 = sand.u32 %s188, 1
          %s5002 = smul.addr %s5001, 128
          %s5003 = scalar_lea.vmem [#allocation15], %s5002
          %5004 = dma.done %s5000, 2048
        $region88: #{bottleneck_forward.1} parent=83 // pred_fallthru
          _
      $region84: #{bottleneck_forward.1} parent=5 // pred_fallthru
        _
    $region6: #{bottleneck_forward.1} parent=1 // loop_footer
      %s26 = sadd.s32 1, %s22
    $region7: #{bottleneck_forward.1} parent=1 // loop_footer_branch
      %21 = sbr.rel target = $region3
    $region8: #{bottleneck_forward.1} parent=1 // loop_exit
      _
    %5005 = vsyncpa [#allocation4], 1
    %s5006 = scalar_lea.sflag [#allocation4], 1
    %5007 = vsyncpa %s5006, 1
    %5008 = vsyncpa [#allocation7], 1
    %5009 = vsyncpa [#allocation10], 1
    %5010 = vsyncpa [#allocation13], 1
    %5011 = vsyncpa [#allocation5], 1
    %s5012 = scalar_lea.sflag [#allocation5], 1
    %5013 = vsyncpa %s5012, 1

</llo_original>
